<compile_context>
chip_gen: v6e
topology: v6e:2x2x1
jax: 0.10.0
libtpu: 0.0.40
codegen_flags: <defaults>
</compile_context>

<pallas_src>
import math
from functools import partial

import jax
import jax.numpy as jnp
from jax.experimental import pallas as pl
from jax.experimental.pallas import tpu as pltpu

EPS = 1e-5            # ScaleNorm clamp, matches torch.norm(...).clamp(min=eps)
NEG_INF = -1e9        # matches masked_fill(mask == 0, -1e9)
VMEM_LIMIT_BYTES = 64 * 1024 * 1024


# ------------------------------ small helpers ------------------------------
def _row_tile(m):
    """Largest multiple-of-8 row tile dividing m, preferring >=2 grid steps."""
    candidates = [t for t in (512, 256, 128, 64, 32, 16, 8) if m % t == 0]
    if not candidates:
        return m
    multi = [t for t in candidates if m // t >= 2]
    return multi[0] if multi else candidates[0]


def _f_tile(f):
    """Hidden-dim tile for the FF kernel (bounds resident W1/W2 VMEM for large F)."""
    if f <= 2048:
        return f
    for t in (2048, 1024, 512, 256, 128):
        if f % t == 0:
            return t
    return f


def _cparams(semantics):
    return pltpu.CompilerParams(dimension_semantics=semantics,
                                vmem_limit_bytes=VMEM_LIMIT_BYTES)


def _scale_norm_rows(x, g):
    # x: (R, D) f32, g: scalar.  ScaleNorm: g * x / ||x||_2.clamp(min=eps)
    nrm = jnp.maximum(jnp.sqrt(jnp.sum(x * x, axis=-1, keepdims=True)), EPS)
    return x * (g / nrm)


def _attention_heads(q, k, v, bias, ctx_ref, *, num_heads, mxu_dtype):
    """Per-head softmax attention; each head's context is written into a lane-dense
    (Tq, D) VMEM slab so the output projection is one full-width matmul."""
    D = q.shape[-1]
    dh = D // num_heads
    q = q.astype(mxu_dtype)
    k = k.astype(mxu_dtype)
    v = v.astype(mxu_dtype)
    # TODO(synk): for large H, switch the static unroll to lax.fori_loop to bound liveness.
    for h in range(num_heads):
        lo = h * dh
        s = jax.lax.dot_general(q[:, lo:lo + dh], k[:, lo:lo + dh],
                                (((1,), (1,)), ((), ())),
                                preferred_element_type=jnp.float32)          # (Tq, Tk) f32
        if bias is not None:
            s = s + bias                                                      # additive mask: one add
        m = jnp.max(s, axis=-1, keepdims=True)
        p = jnp.exp(s - m)                                                    # unnormalized probs
        l = jnp.sum(p, axis=-1, keepdims=True)
        ctx_h = jnp.dot(p.astype(mxu_dtype), v[:, lo:lo + dh],
                        preferred_element_type=jnp.float32)                   # (Tq, dh)
        # Normalize the (Tq, dh) context instead of the (Tq, Tk) probabilities.
        ctx_ref[:, lo:lo + dh] = ctx_h * pl.reciprocal(l, approx=True)
    return ctx_ref[...]


# ------------------------------ fused kernels ------------------------------
def _self_attn_sublayer_kernel(*refs, num_heads, mxu_dtype, causal, has_bias):
    # sublayer: x + self_attn(ScaleNorm(x)); one batch element per grid step.
    ctx_ref = refs[-1]
    if has_bias:
        x_ref, bias_ref, wqkv_ref, bqkv_ref, wo_ref, bo_ref, g_ref, o_ref = refs[:-1]
    else:
        x_ref, wqkv_ref, bqkv_ref, wo_ref, bo_ref, g_ref, o_ref = refs[:-1]
        bias_ref = None

    x = x_ref[0].astype(jnp.float32)                                 # (T, D) residual
    T, D = x.shape
    xn = _scale_norm_rows(x, g_ref[0, 0]).astype(mxu_dtype)
    # Fused full-width QKV projection: (T,D) x (D,3D).
    qkv = jnp.dot(xn, wqkv_ref[...], preferred_element_type=jnp.float32) + bqkv_ref[...]
    q, k, v = qkv[:, :D], qkv[:, D:2 * D], qkv[:, 2 * D:]

    if has_bias:
        bias = bias_ref[0].astype(jnp.float32)                       # (R, T), R in {1, T}
    elif causal:
        row = jax.lax.broadcasted_iota(jnp.int32, (T, T), 0)
        col = jax.lax.broadcasted_iota(jnp.int32, (T, T), 1)
        bias = jnp.where(row >= col, 0.0, NEG_INF).astype(jnp.float32)
    else:
        bias = None

    ctx = _attention_heads(q, k, v, bias, ctx_ref,
                           num_heads=num_heads, mxu_dtype=mxu_dtype)
    out = jnp.dot(ctx.astype(mxu_dtype), wo_ref[...],
                  preferred_element_type=jnp.float32) + bo_ref[...] + x
    o_ref[0] = out.astype(o_ref.dtype)


def _cross_attn_sublayer_kernel(*refs, num_heads, mxu_dtype, has_bias):
    # sublayer: x + cross_attn(ScaleNorm(x), src, src); K/V from RAW src_encs (as in reference).
    ctx_ref = refs[-1]
    if has_bias:
        (x_ref, src_ref, bias_ref, wq_ref, bq_ref, wkv_ref, bkv_ref,
         wo_ref, bo_ref, g_ref, o_ref) = refs[:-1]
    else:
        (x_ref, src_ref, wq_ref, bq_ref, wkv_ref, bkv_ref,
         wo_ref, bo_ref, g_ref, o_ref) = refs[:-1]
        bias_ref = None

    x = x_ref[0].astype(jnp.float32)                                 # (T, D) residual
    D = x.shape[1]
    xn = _scale_norm_rows(x, g_ref[0, 0]).astype(mxu_dtype)
    src = src_ref[0].astype(mxu_dtype)                               # (S, D), not normalized
    q = jnp.dot(xn, wq_ref[...], preferred_element_type=jnp.float32) + bq_ref[...]
    kv = jnp.dot(src, wkv_ref[...], preferred_element_type=jnp.float32) + bkv_ref[...]
    k, v = kv[:, :D], kv[:, D:]

    bias = bias_ref[0].astype(jnp.float32) if has_bias else None     # (R, S), R in {1, T}
    ctx = _attention_heads(q, k, v, bias, ctx_ref,
                           num_heads=num_heads, mxu_dtype=mxu_dtype)
    out = jnp.dot(ctx.astype(mxu_dtype), wo_ref[...],
                  preferred_element_type=jnp.float32) + bo_ref[...] + x
    o_ref[0] = out.astype(o_ref.dtype)


def _ff_sublayer_kernel(x_ref, w1_ref, b1_ref, w2_ref, b2_ref, g_ref, o_ref, acc_ref,
                        *, mxu_dtype):
    # sublayer: x + W2(relu(W1(ScaleNorm(x)))); rows parallel, hidden dim streamed.
    fi = pl.program_id(1)

    @pl.when(fi == 0)
    def _():
        acc_ref[...] = jnp.zeros_like(acc_ref)

    x = x_ref[...].astype(jnp.float32)                               # (TM, D) residual
    xn = _scale_norm_rows(x, g_ref[0, 0]).astype(mxu_dtype)
    h = jnp.dot(xn, w1_ref[...], preferred_element_type=jnp.float32) + b1_ref[...]
    h = jnp.maximum(h, 0.0)
    acc_ref[...] += jnp.dot(h.astype(mxu_dtype), w2_ref[...],
                            preferred_element_type=jnp.float32)

    @pl.when(fi == pl.num_programs(1) - 1)
    def _():
        o_ref[...] = (acc_ref[...] + b2_ref[...] + x).astype(o_ref.dtype)


def _scale_norm_kernel(x_ref, g_ref, o_ref):
    x = x_ref[...].astype(jnp.float32)
    o_ref[...] = _scale_norm_rows(x, g_ref[0, 0]).astype(o_ref.dtype)


# ------------------------------ pallas_call wrappers ------------------------------
def self_attn_sublayer(x, tgt_bias, p, g, num_heads, mxu_dtype, causal):
    B, T, D = x.shape
    g2 = jnp.reshape(g, (1, 1)).astype(jnp.float32)
    has_bias = tgt_bias is not None

    operands = [x]
    in_specs = [pl.BlockSpec((1, T, D), lambda b: (b, 0, 0))]
    if has_bias:
        Bb, R, _ = tgt_bias.shape
        operands.append(tgt_bias)
        if Bb == 1:
            in_specs.append(pl.BlockSpec((1, R, T), lambda b: (0, 0, 0)))
        else:
            in_specs.append(pl.BlockSpec((1, R, T), lambda b: (b, 0, 0)))
    operands += [p["wqkv"], p["bqkv"], p["wo"], p["bo"], g2]
    in_specs += [
        pl.BlockSpec((D, 3 * D), lambda b: (0, 0)),                  # fused Wqkv (bf16)
        pl.BlockSpec((1, 3 * D), lambda b: (0, 0)),                  # fused bqkv (f32)
        pl.BlockSpec((D, D), lambda b: (0, 0)),                      # Wo
        pl.BlockSpec((1, D), lambda b: (0, 0)),                      # bo
        pl.BlockSpec(memory_space=pltpu.SMEM),                       # ScaleNorm g
    ]
    return pl.pallas_call(
        partial(_self_attn_sublayer_kernel, num_heads=num_heads,
                mxu_dtype=mxu_dtype, causal=causal, has_bias=has_bias),
        out_shape=jax.ShapeDtypeStruct((B, T, D), x.dtype),
        grid=(B,),
        in_specs=in_specs,
        out_specs=pl.BlockSpec((1, T, D), lambda b: (b, 0, 0)),
        scratch_shapes=[pltpu.VMEM((T, D), jnp.float32)],            # lane-dense ctx slab
        compiler_params=_cparams(("parallel",)),
    )(*operands)


def cross_attn_sublayer(x, kv, src_bias, p, g, num_heads, mxu_dtype):
    B, T, D = x.shape
    S = kv.shape[1]
    g2 = jnp.reshape(g, (1, 1)).astype(jnp.float32)
    has_bias = src_bias is not None

    operands = [x, kv]
    in_specs = [pl.BlockSpec((1, T, D), lambda b: (b, 0, 0)),
                pl.BlockSpec((1, S, D), lambda b: (b, 0, 0))]
    if has_bias:
        Bb, R, _ = src_bias.shape
        operands.append(src_bias)
        if Bb == 1:
            in_specs.append(pl.BlockSpec((1, R, S), lambda b: (0, 0, 0)))
        else:
            in_specs.append(pl.BlockSpec((1, R, S), lambda b: (b, 0, 0)))
    operands += [p["wq"], p["bq"], p["wkv"], p["bkv"], p["wo"], p["bo"], g2]
    in_specs += [
        pl.BlockSpec((D, D), lambda b: (0, 0)),                      # Wq (scale folded)
        pl.BlockSpec((1, D), lambda b: (0, 0)),                      # bq
        pl.BlockSpec((D, 2 * D), lambda b: (0, 0)),                  # fused Wkv
        pl.BlockSpec((1, 2 * D), lambda b: (0, 0)),                  # fused bkv
        pl.BlockSpec((D, D), lambda b: (0, 0)),                      # Wo
        pl.BlockSpec((1, D), lambda b: (0, 0)),                      # bo
        pl.BlockSpec(memory_space=pltpu.SMEM),                       # ScaleNorm g
    ]
    return pl.pallas_call(
        partial(_cross_attn_sublayer_kernel, num_heads=num_heads,
                mxu_dtype=mxu_dtype, has_bias=has_bias),
        out_shape=jax.ShapeDtypeStruct((B, T, D), x.dtype),
        grid=(B,),
        in_specs=in_specs,
        out_specs=pl.BlockSpec((1, T, D), lambda b: (b, 0, 0)),
        scratch_shapes=[pltpu.VMEM((T, D), jnp.float32)],            # lane-dense ctx slab
        compiler_params=_cparams(("parallel",)),
    )(*operands)


def ff_sublayer(x, p, g, mxu_dtype):
    B, T, D = x.shape
    Fdim = p["w1"].shape[1]
    M = B * T
    tm = _row_tile(M)
    tf = _f_tile(Fdim)
    x2 = x.reshape(M, D)
    g2 = jnp.reshape(g, (1, 1)).astype(jnp.float32)
    out = pl.pallas_call(
        partial(_ff_sublayer_kernel, mxu_dtype=mxu_dtype),
        out_shape=jax.ShapeDtypeStruct((M, D), x.dtype),
        grid=(M // tm, Fdim // tf),
        in_specs=[
            pl.BlockSpec((tm, D), lambda i, f: (i, 0)),              # x rows (residual + norm)
            pl.BlockSpec((D, tf), lambda i, f: (0, f)),              # W1 tile
            pl.BlockSpec((1, tf), lambda i, f: (0, f)),              # b1 tile
            pl.BlockSpec((tf, D), lambda i, f: (f, 0)),              # W2 tile
            pl.BlockSpec((1, D), lambda i, f: (0, 0)),               # b2
            pl.BlockSpec(memory_space=pltpu.SMEM),                   # ScaleNorm g
        ],
        out_specs=pl.BlockSpec((tm, D), lambda i, f: (i, 0)),
        scratch_shapes=[pltpu.VMEM((tm, D), jnp.float32)],           # F-streaming accumulator
        compiler_params=_cparams(("parallel", "arbitrary")),
    )(x2, p["w1"], p["b1"], p["w2"], p["b2"], g2)
    return out.reshape(B, T, D)


def scale_norm(x, g):
    B, T, D = x.shape
    M = B * T
    tm = _row_tile(M)
    x2 = x.reshape(M, D)
    g2 = jnp.reshape(g, (1, 1)).astype(jnp.float32)
    out = pl.pallas_call(
        _scale_norm_kernel,
        out_shape=jax.ShapeDtypeStruct((M, D), x.dtype),
        grid=(M // tm,),
        in_specs=[pl.BlockSpec((tm, D), lambda i: (i, 0)),
                  pl.BlockSpec(memory_space=pltpu.SMEM)],
        out_specs=pl.BlockSpec((tm, D), lambda i: (i, 0)),
        compiler_params=_cparams(("parallel",)),
    )(x2, g2)
    return out.reshape(B, T, D)


# ------------------------------- model (JAX glue) -------------------------------
def decoder_layer(src_encs, tgt_encs, lp, src_bias, tgt_bias, causal, num_heads, mxu_dtype):
    tgt_encs = self_attn_sublayer(tgt_encs, tgt_bias, lp["self_attn"], lp["g0"],
                                  num_heads, mxu_dtype, causal)
    tgt_encs = cross_attn_sublayer(tgt_encs, src_encs, src_bias, lp["crss_attn"], lp["g1"],
                                   num_heads, mxu_dtype)
    tgt_encs = ff_sublayer(tgt_encs, lp["ff"], lp["g2"], mxu_dtype)
    return tgt_encs


def decoder(src_encs, tgt_embs, params, src_mask=None, tgt_mask="causal", *,
            num_heads, mxu_dtype=jnp.bfloat16):
    """tgt_mask: "causal" (generated in-kernel, no HBM mask), None (no mask), or a 0/1
    mask of shape (T,T)/(B,T,T)/(B,1,T).  src_mask: None, (B,S) key-padding 0/1 mask,
    or (B,1,S)/(B,T,S) 0/1 mask.  Masks are converted once to additive -1e9 biases."""
    B, T, D = tgt_embs.shape
    assert D % num_heads == 0

    if isinstance(tgt_mask, str):
        assert tgt_mask == "causal"
        causal, tgt_bias = True, None
    elif tgt_mask is None:
        causal, tgt_bias = False, None
    else:
        causal = False
        m = tgt_mask if tgt_mask.ndim == 3 else tgt_mask[None]
        tgt_bias = jnp.where(m > 0, 0.0, NEG_INF).astype(jnp.float32)

    if src_mask is None:
        src_bias = None
    else:
        m = src_mask if src_mask.ndim == 3 else src_mask[:, None, :]
        src_bias = jnp.where(m > 0, 0.0, NEG_INF).astype(jnp.float32)

    tgt_encs = tgt_embs
    for lp in params["layers"]:
        tgt_encs = decoder_layer(src_encs, tgt_encs, lp, src_bias, tgt_bias, causal,
                                 num_heads, mxu_dtype)
    return scale_norm(tgt_encs, params["g_final"])


# ------------------------------- deterministic init -------------------------------
def init_linear(key, fan_in, fan_out):
    bound = 1.0 / math.sqrt(fan_in)           # matches nn.Linear default init
    kw, kb = jax.random.split(key)
    w = jax.random.uniform(kw, (fan_in, fan_out), jnp.float32, -bound, bound)
    b = jax.random.uniform(kb, (fan_out,), jnp.float32, -bound, bound)
    return w, b


def init_mha(key, D, num_heads, *, fuse_qkv, param_dtype):
    dh = D // num_heads
    scale = 1.0 / math.sqrt(dh)
    kq, kk, kv, ko = jax.random.split(key, 4)
    wq, bq = init_linear(kq, D, D)
    wk, bk = init_linear(kk, D, D)
    wv, bv = init_linear(kv, D, D)
    wo, bo = init_linear(ko, D, D)
    wq, bq = wq * scale, bq * scale           # fold 1/sqrt(dh) into Q projection (host, once)
    p = {"wo": wo.astype(param_dtype), "bo": bo.reshape(1, D).astype(jnp.float32)}
    if fuse_qkv:      # self-attention: single (D, 3D) projection
        p["wqkv"] = jnp.concatenate([wq, wk, wv], axis=1).astype(param_dtype)
        p["bqkv"] = jnp.concatenate([bq, bk, bv]).reshape(1, 3 * D).astype(jnp.float32)
    else:             # cross-attention: Q from tgt, fused (D, 2D) KV from src
        p["wq"] = wq.astype(param_dtype)
        p["bq"] = bq.reshape(1, D).astype(jnp.float32)
        p["wkv"] = jnp.concatenate([wk, wv], axis=1).astype(param_dtype)
        p["bkv"] = jnp.concatenate([bk, bv]).reshape(1, 2 * D).astype(jnp.float32)
    return p


def init_params(key, D, F, L, num_heads, param_dtype=jnp.bfloat16):
    params = {"layers": []}
    for lk in jax.random.split(key, L):
        k1, k2, k3, k4 = jax.random.split(lk, 4)
        w1, b1 = init_linear(k3, D, F)
        w2, b2 = init_linear(k4, F, D)
        params["layers"].append({
            "self_attn": init_mha(k1, D, num_heads, fuse_qkv=True, param_dtype=param_dtype),
            "crss_attn": init_mha(k2, D, num_heads, fuse_qkv=False, param_dtype=param_dtype),
            "ff": {"w1": w1.astype(param_dtype), "b1": b1.reshape(1, F),
                   "w2": w2.astype(param_dtype), "b2": b2.reshape(1, D)},
            "g0": jnp.float32(math.sqrt(D)),
            "g1": jnp.float32(math.sqrt(D)),
            "g2": jnp.float32(math.sqrt(D)),
        })
    params["g_final"] = jnp.float32(math.sqrt(D))
    return params


if __name__ == "__main__":
    B, S, T, D, H, F, L = 2, 10, 8, 32, 4, 64, 2
    key = jax.random.PRNGKey(0)
    kp, ks, kt = jax.random.split(key, 3)
    # bf16 weights / bf16 MXU operands (f32 accumulation); pass param_dtype/mxu_dtype=f32
    # for bit-closer parity with the PyTorch f32 reference.
    params = init_params(kp, D, F, L, H)

    src_encs = jax.random.normal(ks, (B, S, D), jnp.float32)
    tgt_embs = jax.random.normal(kt, (B, T, D), jnp.float32)

    # Target mask: causal, generated inside the kernel (semantically identical to a tril mask).
    # Source mask: (B, S) key-padding mask; batch 1 has its last 3 positions padded.
    src_valid = jnp.array([[1.0] * S, [1.0] * (S - 3) + [0.0] * 3], jnp.float32)

    fwd = jax.jit(partial(decoder, num_heads=H))
    out = jax.block_until_ready(fwd(src_encs, tgt_embs, params, src_valid))

    assert out.shape == (B, T, D) and out.dtype == jnp.float32
    assert bool(jnp.all(jnp.isfinite(out)))
    print("KERNEL_OK")
</pallas_src>

<mosaic_0001>
module attributes {stable_mosaic.version = 11 : i64} {
  func.func @_cross_attn_sublayer_kernel(%arg0: i32, %arg1: memref<1x8x32xf32, #tpu.memory_space<vmem>>, %arg2: memref<1x10x32xf32, #tpu.memory_space<vmem>>, %arg3: memref<1x1x10xf32, #tpu.memory_space<vmem>>, %arg4: memref<32x32xbf16, #tpu.memory_space<vmem>>, %arg5: memref<1x32xf32, #tpu.memory_space<vmem>>, %arg6: memref<32x64xbf16, #tpu.memory_space<vmem>>, %arg7: memref<1x64xf32, #tpu.memory_space<vmem>>, %arg8: memref<32x32xbf16, #tpu.memory_space<vmem>>, %arg9: memref<1x32xf32, #tpu.memory_space<vmem>>, %arg10: memref<1x1xf32, #tpu.memory_space<smem>>, %arg11: memref<1x8x32xf32, #tpu.memory_space<vmem>>, %arg12: memref<8x32xf32, #tpu.memory_space<vmem>>) attributes {dimension_semantics = [#tpu.dimension_semantics<parallel>], iteration_bounds = array<i64: 2>, scalar_prefetch = 0 : i64, scratch_operands = 1 : i64, tpu.core_type = #tpu.core_type<tc>, window_params = [{transform_indices = @transform_0, window_bounds = array<i64: 1, 8, 32>}, {transform_indices = @transform_1, window_bounds = array<i64: 1, 10, 32>}, {transform_indices = @transform_2, window_bounds = array<i64: 1, 1, 10>}, {pipeline_mode = #tpu.pipeline_mode<synchronous>, transform_indices = @transform_3, window_bounds = array<i64: 32, 32>}, {pipeline_mode = #tpu.pipeline_mode<synchronous>, transform_indices = @transform_4, window_bounds = array<i64: 1, 32>}, {pipeline_mode = #tpu.pipeline_mode<synchronous>, transform_indices = @transform_5, window_bounds = array<i64: 32, 64>}, {pipeline_mode = #tpu.pipeline_mode<synchronous>, transform_indices = @transform_6, window_bounds = array<i64: 1, 64>}, {pipeline_mode = #tpu.pipeline_mode<synchronous>, transform_indices = @transform_7, window_bounds = array<i64: 32, 32>}, {pipeline_mode = #tpu.pipeline_mode<synchronous>, transform_indices = @transform_8, window_bounds = array<i64: 1, 32>}, {transform_indices = @transform_9, window_bounds = array<i64: 1, 1>}, {transform_indices = @transform_10, window_bounds = array<i64: 1, 8, 32>}]} {
    %c0 = arith.constant 0 : index
    %c0_0 = arith.constant 0 : index
    %c0_1 = arith.constant 0 : index
    %0 = vector.load %arg1[%c0, %c0_0, %c0_1] : memref<1x8x32xf32, #tpu.memory_space<vmem>>, vector<1x8x32xf32>
    %1 = vector.shape_cast %0 : vector<1x8x32xf32> to vector<8x32xf32>
    %c0_2 = arith.constant 0 : index
    %c0_3 = arith.constant 0 : index
    %2 = memref.load %arg10[%c0_2, %c0_3] : memref<1x1xf32, #tpu.memory_space<smem>>
    %3 = arith.mulf %1, %1 : vector<8x32xf32>
    %cst = arith.constant dense<0.000000e+00> : vector<8xf32>
    %4 = vector.multi_reduction <add>, %3, %cst [1] : vector<8x32xf32> to vector<8xf32>
    %5 = vector.shape_cast %4 : vector<8xf32> to vector<8x1xf32>
    %6 = math.sqrt %5 : vector<8x1xf32>
    %cst_4 = arith.constant 9.99999974E-6 : f32
    %7 = vector.broadcast %cst_4 : f32 to vector<8x1xf32>
    %8 = arith.maximumf %6, %7 : vector<8x1xf32>
    %9 = vector.broadcast %2 : f32 to vector<8x1xf32>
    %10 = arith.divf %9, %8 : vector<8x1xf32>
    %11 = vector.broadcast %10 : vector<8x1xf32> to vector<8x32xf32>
    %12 = arith.mulf %1, %11 : vector<8x32xf32>
    %13 = arith.truncf %12 : vector<8x32xf32> to vector<8x32xbf16>
    %c0_5 = arith.constant 0 : index
    %c0_6 = arith.constant 0 : index
    %c0_7 = arith.constant 0 : index
    %14 = vector.load %arg2[%c0_5, %c0_6, %c0_7] : memref<1x10x32xf32, #tpu.memory_space<vmem>>, vector<1x10x32xf32>
    %15 = vector.shape_cast %14 : vector<1x10x32xf32> to vector<10x32xf32>
    %16 = arith.truncf %15 : vector<10x32xf32> to vector<10x32xbf16>
    %c0_8 = arith.constant 0 : index
    %c0_9 = arith.constant 0 : index
    %17 = vector.load %arg4[%c0_8, %c0_9] : memref<32x32xbf16, #tpu.memory_space<vmem>>, vector<32x32xbf16>
    %cst_10 = arith.constant dense<0.000000e+00> : vector<8x32xf32>
    %18 = tpu.matmul %13, %17, %cst_10 {dimension_numbers = #tpu.dot_dimension_numbers<[1], [0], [0], [1], [0, 0, 1, 1], [], []>} : vector<8x32xbf16>, vector<32x32xbf16>, vector<8x32xf32> -> vector<8x32xf32>
    %c0_11 = arith.constant 0 : index
    %c0_12 = arith.constant 0 : index
    %19 = vector.load %arg5[%c0_11, %c0_12] : memref<1x32xf32, #tpu.memory_space<vmem>>, vector<1x32xf32>
    %20 = vector.broadcast %19 : vector<1x32xf32> to vector<8x32xf32>
    %21 = arith.addf %18, %20 : vector<8x32xf32>
    %c0_13 = arith.constant 0 : index
    %c0_14 = arith.constant 0 : index
    %22 = vector.load %arg6[%c0_13, %c0_14] : memref<32x64xbf16, #tpu.memory_space<vmem>>, vector<32x64xbf16>
    %cst_15 = arith.constant dense<0.000000e+00> : vector<10x64xf32>
    %23 = tpu.matmul %16, %22, %cst_15 {dimension_numbers = #tpu.dot_dimension_numbers<[1], [0], [0], [1], [0, 0, 1, 1], [], []>} : vector<10x32xbf16>, vector<32x64xbf16>, vector<10x64xf32> -> vector<10x64xf32>
    %c0_16 = arith.constant 0 : index
    %c0_17 = arith.constant 0 : index
    %24 = vector.load %arg7[%c0_16, %c0_17] : memref<1x64xf32, #tpu.memory_space<vmem>>, vector<1x64xf32>
    %25 = vector.broadcast %24 : vector<1x64xf32> to vector<10x64xf32>
    %26 = arith.addf %23, %25 : vector<10x64xf32>
    %27 = vector.extract_strided_slice %26 {offsets = [0, 0], sizes = [10, 32], strides = [1, 1]} : vector<10x64xf32> to vector<10x32xf32>
    %28 = vector.extract_strided_slice %26 {offsets = [0, 32], sizes = [10, 32], strides = [1, 1]} : vector<10x64xf32> to vector<10x32xf32>
    %c0_18 = arith.constant 0 : index
    %c0_19 = arith.constant 0 : index
    %c0_20 = arith.constant 0 : index
    %29 = vector.load %arg3[%c0_18, %c0_19, %c0_20] : memref<1x1x10xf32, #tpu.memory_space<vmem>>, vector<1x1x10xf32>
    %30 = vector.shape_cast %29 : vector<1x1x10xf32> to vector<1x10xf32>
    %31 = arith.truncf %21 : vector<8x32xf32> to vector<8x32xbf16>
    %32 = arith.truncf %27 : vector<10x32xf32> to vector<10x32xbf16>
    %33 = arith.truncf %28 : vector<10x32xf32> to vector<10x32xbf16>
    %34 = vector.extract_strided_slice %31 {offsets = [0, 0], sizes = [8, 8], strides = [1, 1]} : vector<8x32xbf16> to vector<8x8xbf16>
    %35 = vector.extract_strided_slice %32 {offsets = [0, 0], sizes = [10, 8], strides = [1, 1]} : vector<10x32xbf16> to vector<10x8xbf16>
    %cst_21 = arith.constant dense<0.000000e+00> : vector<8x10xf32>
    %36 = tpu.matmul %34, %35, %cst_21 {dimension_numbers = #tpu.dot_dimension_numbers<[1], [1], [0], [0], [0, 0, 1, 0], [], []>} : vector<8x8xbf16>, vector<10x8xbf16>, vector<8x10xf32> -> vector<8x10xf32>
    %37 = vector.broadcast %30 : vector<1x10xf32> to vector<8x10xf32>
    %38 = arith.addf %36, %37 : vector<8x10xf32>
    %cst_22 = arith.constant dense<0xFF800000> : vector<8xf32>
    %39 = vector.multi_reduction <maximumf>, %38, %cst_22 [1] : vector<8x10xf32> to vector<8xf32>
    %40 = vector.shape_cast %39 : vector<8xf32> to vector<8x1xf32>
    %41 = vector.broadcast %40 : vector<8x1xf32> to vector<8x10xf32>
    %42 = arith.subf %38, %41 : vector<8x10xf32>
    %43 = math.exp %42 : vector<8x10xf32>
    %cst_23 = arith.constant dense<0.000000e+00> : vector<8xf32>
    %44 = vector.multi_reduction <add>, %43, %cst_23 [1] : vector<8x10xf32> to vector<8xf32>
    %45 = vector.shape_cast %44 : vector<8xf32> to vector<8x1xf32>
    %46 = arith.truncf %43 : vector<8x10xf32> to vector<8x10xbf16>
    %47 = vector.extract_strided_slice %33 {offsets = [0, 0], sizes = [10, 8], strides = [1, 1]} : vector<10x32xbf16> to vector<10x8xbf16>
    %cst_24 = arith.constant dense<0.000000e+00> : vector<8x8xf32>
    %48 = tpu.matmul %46, %47, %cst_24 {dimension_numbers = #tpu.dot_dimension_numbers<[1], [0], [0], [1], [0, 0, 1, 1], [], []>} : vector<8x10xbf16>, vector<10x8xbf16>, vector<8x8xf32> -> vector<8x8xf32>
    %49 = tpu.reciprocal %45 {approx = true} : vector<8x1xf32> -> vector<8x1xf32>
    %50 = vector.broadcast %49 : vector<8x1xf32> to vector<8x8xf32>
    %51 = arith.mulf %48, %50 : vector<8x8xf32>
    %c0_25 = arith.constant 0 : index
    %c0_26 = arith.constant 0 : index
    %52 = vector.load %arg12[%c0_25, %c0_26] : memref<8x32xf32, #tpu.memory_space<vmem>>, vector<8x8xf32>
    tpu.vector_store %arg12[%c0_25, %c0_26], %51 {strides = array<i32>} : memref<8x32xf32, #tpu.memory_space<vmem>>, vector<8x8xf32>,
    %53 = vector.extract_strided_slice %31 {offsets = [0, 8], sizes = [8, 8], strides = [1, 1]} : vector<8x32xbf16> to vector<8x8xbf16>
    %54 = vector.extract_strided_slice %32 {offsets = [0, 8], sizes = [10, 8], strides = [1, 1]} : vector<10x32xbf16> to vector<10x8xbf16>
    %cst_27 = arith.constant dense<0.000000e+00> : vector<8x10xf32>
    %55 = tpu.matmul %53, %54, %cst_27 {dimension_numbers = #tpu.dot_dimension_numbers<[1], [1], [0], [0], [0, 0, 1, 0], [], []>} : vector<8x8xbf16>, vector<10x8xbf16>, vector<8x10xf32> -> vector<8x10xf32>
    %56 = vector.broadcast %30 : vector<1x10xf32> to vector<8x10xf32>
    %57 = arith.addf %55, %56 : vector<8x10xf32>
    %cst_28 = arith.constant dense<0xFF800000> : vector<8xf32>
    %58 = vector.multi_reduction <maximumf>, %57, %cst_28 [1] : vector<8x10xf32> to vector<8xf32>
    %59 = vector.shape_cast %58 : vector<8xf32> to vector<8x1xf32>
    %60 = vector.broadcast %59 : vector<8x1xf32> to vector<8x10xf32>
    %61 = arith.subf %57, %60 : vector<8x10xf32>
    %62 = math.exp %61 : vector<8x10xf32>
    %cst_29 = arith.constant dense<0.000000e+00> : vector<8xf32>
    %63 = vector.multi_reduction <add>, %62, %cst_29 [1] : vector<8x10xf32> to vector<8xf32>
    %64 = vector.shape_cast %63 : vector<8xf32> to vector<8x1xf32>
    %65 = arith.truncf %62 : vector<8x10xf32> to vector<8x10xbf16>
    %66 = vector.extract_strided_slice %33 {offsets = [0, 8], sizes = [10, 8], strides = [1, 1]} : vector<10x32xbf16> to vector<10x8xbf16>
    %cst_30 = arith.constant dense<0.000000e+00> : vector<8x8xf32>
    %67 = tpu.matmul %65, %66, %cst_30 {dimension_numbers = #tpu.dot_dimension_numbers<[1], [0], [0], [1], [0, 0, 1, 1], [], []>} : vector<8x10xbf16>, vector<10x8xbf16>, vector<8x8xf32> -> vector<8x8xf32>
    %68 = tpu.reciprocal %64 {approx = true} : vector<8x1xf32> -> vector<8x1xf32>
    %69 = vector.broadcast %68 : vector<8x1xf32> to vector<8x8xf32>
    %70 = arith.mulf %67, %69 : vector<8x8xf32>
    %c0_31 = arith.constant 0 : index
    %c8 = arith.constant 8 : index
    %71 = vector.load %arg12[%c0_31, %c8] : memref<8x32xf32, #tpu.memory_space<vmem>>, vector<8x8xf32>
    tpu.vector_store %arg12[%c0_31, %c8], %70 {strides = array<i32>} : memref<8x32xf32, #tpu.memory_space<vmem>>, vector<8x8xf32>,
    %72 = vector.extract_strided_slice %31 {offsets = [0, 16], sizes = [8, 8], strides = [1, 1]} : vector<8x32xbf16> to vector<8x8xbf16>
    %73 = vector.extract_strided_slice %32 {offsets = [0, 16], sizes = [10, 8], strides = [1, 1]} : vector<10x32xbf16> to vector<10x8xbf16>
    %cst_32 = arith.constant dense<0.000000e+00> : vector<8x10xf32>
    %74 = tpu.matmul %72, %73, %cst_32 {dimension_numbers = #tpu.dot_dimension_numbers<[1], [1], [0], [0], [0, 0, 1, 0], [], []>} : vector<8x8xbf16>, vector<10x8xbf16>, vector<8x10xf32> -> vector<8x10xf32>
    %75 = vector.broadcast %30 : vector<1x10xf32> to vector<8x10xf32>
    %76 = arith.addf %74, %75 : vector<8x10xf32>
    %cst_33 = arith.constant dense<0xFF800000> : vector<8xf32>
    %77 = vector.multi_reduction <maximumf>, %76, %cst_33 [1] : vector<8x10xf32> to vector<8xf32>
    %78 = vector.shape_cast %77 : vector<8xf32> to vector<8x1xf32>
    %79 = vector.broadcast %78 : vector<8x1xf32> to vector<8x10xf32>
    %80 = arith.subf %76, %79 : vector<8x10xf32>
    %81 = math.exp %80 : vector<8x10xf32>
    %cst_34 = arith.constant dense<0.000000e+00> : vector<8xf32>
    %82 = vector.multi_reduction <add>, %81, %cst_34 [1] : vector<8x10xf32> to vector<8xf32>
    %83 = vector.shape_cast %82 : vector<8xf32> to vector<8x1xf32>
    %84 = arith.truncf %81 : vector<8x10xf32> to vector<8x10xbf16>
    %85 = vector.extract_strided_slice %33 {offsets = [0, 16], sizes = [10, 8], strides = [1, 1]} : vector<10x32xbf16> to vector<10x8xbf16>
    %cst_35 = arith.constant dense<0.000000e+00> : vector<8x8xf32>
    %86 = tpu.matmul %84, %85, %cst_35 {dimension_numbers = #tpu.dot_dimension_numbers<[1], [0], [0], [1], [0, 0, 1, 1], [], []>} : vector<8x10xbf16>, vector<10x8xbf16>, vector<8x8xf32> -> vector<8x8xf32>
    %87 = tpu.reciprocal %83 {approx = true} : vector<8x1xf32> -> vector<8x1xf32>
    %88 = vector.broadcast %87 : vector<8x1xf32> to vector<8x8xf32>
    %89 = arith.mulf %86, %88 : vector<8x8xf32>
    %c0_36 = arith.constant 0 : index
    %c16 = arith.constant 16 : index
    %90 = vector.load %arg12[%c0_36, %c16] : memref<8x32xf32, #tpu.memory_space<vmem>>, vector<8x8xf32>
    tpu.vector_store %arg12[%c0_36, %c16], %89 {strides = array<i32>} : memref<8x32xf32, #tpu.memory_space<vmem>>, vector<8x8xf32>,
    %91 = vector.extract_strided_slice %31 {offsets = [0, 24], sizes = [8, 8], strides = [1, 1]} : vector<8x32xbf16> to vector<8x8xbf16>
    %92 = vector.extract_strided_slice %32 {offsets = [0, 24], sizes = [10, 8], strides = [1, 1]} : vector<10x32xbf16> to vector<10x8xbf16>
    %cst_37 = arith.constant dense<0.000000e+00> : vector<8x10xf32>
    %93 = tpu.matmul %91, %92, %cst_37 {dimension_numbers = #tpu.dot_dimension_numbers<[1], [1], [0], [0], [0, 0, 1, 0], [], []>} : vector<8x8xbf16>, vector<10x8xbf16>, vector<8x10xf32> -> vector<8x10xf32>
    %94 = vector.broadcast %30 : vector<1x10xf32> to vector<8x10xf32>
    %95 = arith.addf %93, %94 : vector<8x10xf32>
    %cst_38 = arith.constant dense<0xFF800000> : vector<8xf32>
    %96 = vector.multi_reduction <maximumf>, %95, %cst_38 [1] : vector<8x10xf32> to vector<8xf32>
    %97 = vector.shape_cast %96 : vector<8xf32> to vector<8x1xf32>
    %98 = vector.broadcast %97 : vector<8x1xf32> to vector<8x10xf32>
    %99 = arith.subf %95, %98 : vector<8x10xf32>
    %100 = math.exp %99 : vector<8x10xf32>
    %cst_39 = arith.constant dense<0.000000e+00> : vector<8xf32>
    %101 = vector.multi_reduction <add>, %100, %cst_39 [1] : vector<8x10xf32> to vector<8xf32>
    %102 = vector.shape_cast %101 : vector<8xf32> to vector<8x1xf32>
    %103 = arith.truncf %100 : vector<8x10xf32> to vector<8x10xbf16>
    %104 = vector.extract_strided_slice %33 {offsets = [0, 24], sizes = [10, 8], strides = [1, 1]} : vector<10x32xbf16> to vector<10x8xbf16>
    %cst_40 = arith.constant dense<0.000000e+00> : vector<8x8xf32>
    %105 = tpu.matmul %103, %104, %cst_40 {dimension_numbers = #tpu.dot_dimension_numbers<[1], [0], [0], [1], [0, 0, 1, 1], [], []>} : vector<8x10xbf16>, vector<10x8xbf16>, vector<8x8xf32> -> vector<8x8xf32>
    %106 = tpu.reciprocal %102 {approx = true} : vector<8x1xf32> -> vector<8x1xf32>
    %107 = vector.broadcast %106 : vector<8x1xf32> to vector<8x8xf32>
    %108 = arith.mulf %105, %107 : vector<8x8xf32>
    %c0_41 = arith.constant 0 : index
    %c24 = arith.constant 24 : index
    %109 = vector.load %arg12[%c0_41, %c24] : memref<8x32xf32, #tpu.memory_space<vmem>>, vector<8x8xf32>
    tpu.vector_store %arg12[%c0_41, %c24], %108 {strides = array<i32>} : memref<8x32xf32, #tpu.memory_space<vmem>>, vector<8x8xf32>,
    %c0_42 = arith.constant 0 : index
    %c0_43 = arith.constant 0 : index
    %110 = vector.load %arg12[%c0_42, %c0_43] : memref<8x32xf32, #tpu.memory_space<vmem>>, vector<8x32xf32>
    %111 = arith.truncf %110 : vector<8x32xf32> to vector<8x32xbf16>
    %c0_44 = arith.constant 0 : index
    %c0_45 = arith.constant 0 : index
    %112 = vector.load %arg8[%c0_44, %c0_45] : memref<32x32xbf16, #tpu.memory_space<vmem>>, vector<32x32xbf16>
    %cst_46 = arith.constant dense<0.000000e+00> : vector<8x32xf32>
    %113 = tpu.matmul %111, %112, %cst_46 {dimension_numbers = #tpu.dot_dimension_numbers<[1], [0], [0], [1], [0, 0, 1, 1], [], []>} : vector<8x32xbf16>, vector<32x32xbf16>, vector<8x32xf32> -> vector<8x32xf32>
    %c0_47 = arith.constant 0 : index
    %c0_48 = arith.constant 0 : index
    %114 = vector.load %arg9[%c0_47, %c0_48] : memref<1x32xf32, #tpu.memory_space<vmem>>, vector<1x32xf32>
    %115 = vector.broadcast %114 : vector<1x32xf32> to vector<8x32xf32>
    %116 = arith.addf %113, %115 : vector<8x32xf32>
    %117 = arith.addf %116, %1 : vector<8x32xf32>
    %c0_49 = arith.constant 0 : index
    %c0_50 = arith.constant 0 : index
    %c0_51 = arith.constant 0 : index
    %118 = vector.load %arg11[%c0_49, %c0_50, %c0_51] : memref<1x8x32xf32, #tpu.memory_space<vmem>>, vector<1x8x32xf32>
    %119 = vector.shape_cast %118 : vector<1x8x32xf32> to vector<8x32xf32>
    %120 = vector.shape_cast %117 : vector<8x32xf32> to vector<1x8x32xf32>
    tpu.vector_store %arg11[%c0_49, %c0_50, %c0_51], %120 {strides = array<i32>} : memref<1x8x32xf32, #tpu.memory_space<vmem>>, vector<1x8x32xf32>,
    return
  }
  func.func @transform_0(%arg0: i32) -> (i32, i32, i32) {
    %c0_i32 = arith.constant 0 : i32
    %c0_i32_0 = arith.constant 0 : i32
    %c0_i32_1 = arith.constant 0 : i32
    return %arg0, %c0_i32, %c0_i32_0 : i32, i32, i32
  }
  func.func @transform_1(%arg0: i32) -> (i32, i32, i32) {
    %c0_i32 = arith.constant 0 : i32
    %c0_i32_0 = arith.constant 0 : i32
    %c0_i32_1 = arith.constant 0 : i32
    return %arg0, %c0_i32, %c0_i32_0 : i32, i32, i32
  }
  func.func @transform_2(%arg0: i32) -> (i32, i32, i32) {
    %c0_i32 = arith.constant 0 : i32
    %c0_i32_0 = arith.constant 0 : i32
    %c0_i32_1 = arith.constant 0 : i32
    return %arg0, %c0_i32, %c0_i32_0 : i32, i32, i32
  }
  func.func @transform_3(%arg0: i32) -> (i32, i32) {
    %c0_i32 = arith.constant 0 : i32
    %c0_i32_0 = arith.constant 0 : i32
    %c0_i32_1 = arith.constant 0 : i32
    return %c0_i32, %c0_i32_0 : i32, i32
  }
  func.func @transform_4(%arg0: i32) -> (i32, i32) {
    %c0_i32 = arith.constant 0 : i32
    %c0_i32_0 = arith.constant 0 : i32
    %c0_i32_1 = arith.constant 0 : i32
    return %c0_i32, %c0_i32_0 : i32, i32
  }
  func.func @transform_5(%arg0: i32) -> (i32, i32) {
    %c0_i32 = arith.constant 0 : i32
    %c0_i32_0 = arith.constant 0 : i32
    %c0_i32_1 = arith.constant 0 : i32
    return %c0_i32, %c0_i32_0 : i32, i32
  }
  func.func @transform_6(%arg0: i32) -> (i32, i32) {
    %c0_i32 = arith.constant 0 : i32
    %c0_i32_0 = arith.constant 0 : i32
    %c0_i32_1 = arith.constant 0 : i32
    return %c0_i32, %c0_i32_0 : i32, i32
  }
  func.func @transform_7(%arg0: i32) -> (i32, i32) {
    %c0_i32 = arith.constant 0 : i32
    %c0_i32_0 = arith.constant 0 : i32
    %c0_i32_1 = arith.constant 0 : i32
    return %c0_i32, %c0_i32_0 : i32, i32
  }
  func.func @transform_8(%arg0: i32) -> (i32, i32) {
    %c0_i32 = arith.constant 0 : i32
    %c0_i32_0 = arith.constant 0 : i32
    %c0_i32_1 = arith.constant 0 : i32
    return %c0_i32, %c0_i32_0 : i32, i32
  }
  func.func @transform_9(%arg0: i32) -> (i32, i32) {
    %c0_i32 = arith.constant 0 : i32
    %c0_i32_0 = arith.constant 0 : i32
    %c0_i32_1 = arith.constant 0 : i32
    return %c0_i32, %c0_i32_0 : i32, i32
  }
  func.func @transform_10(%arg0: i32) -> (i32, i32, i32) {
    %c0_i32 = arith.constant 0 : i32
    %c0_i32_0 = arith.constant 0 : i32
    %c0_i32_1 = arith.constant 0 : i32
    return %arg0, %c0_i32, %c0_i32_0 : i32, i32, i32
  }
}

module attributes {stable_mosaic.version = 11 : i64} {
  func.func @_self_attn_sublayer_kernel(%arg0: i32, %arg1: memref<1x8x32xf32, #tpu.memory_space<vmem>>, %arg2: memref<32x96xbf16, #tpu.memory_space<vmem>>, %arg3: memref<1x96xf32, #tpu.memory_space<vmem>>, %arg4: memref<32x32xbf16, #tpu.memory_space<vmem>>, %arg5: memref<1x32xf32, #tpu.memory_space<vmem>>, %arg6: memref<1x1xf32, #tpu.memory_space<smem>>, %arg7: memref<1x8x32xf32, #tpu.memory_space<vmem>>, %arg8: memref<8x32xf32, #tpu.memory_space<vmem>>) attributes {dimension_semantics = [#tpu.dimension_semantics<parallel>], iteration_bounds = array<i64: 2>, scalar_prefetch = 0 : i64, scratch_operands = 1 : i64, tpu.core_type = #tpu.core_type<tc>, window_params = [{transform_indices = @transform_0, window_bounds = array<i64: 1, 8, 32>}, {pipeline_mode = #tpu.pipeline_mode<synchronous>, transform_indices = @transform_1, window_bounds = array<i64: 32, 96>}, {pipeline_mode = #tpu.pipeline_mode<synchronous>, transform_indices = @transform_2, window_bounds = array<i64: 1, 96>}, {pipeline_mode = #tpu.pipeline_mode<synchronous>, transform_indices = @transform_3, window_bounds = array<i64: 32, 32>}, {pipeline_mode = #tpu.pipeline_mode<synchronous>, transform_indices = @transform_4, window_bounds = array<i64: 1, 32>}, {transform_indices = @transform_5, window_bounds = array<i64: 1, 1>}, {transform_indices = @transform_6, window_bounds = array<i64: 1, 8, 32>}]} {
    %c0 = arith.constant 0 : index
    %c0_0 = arith.constant 0 : index
    %c0_1 = arith.constant 0 : index
    %0 = vector.load %arg1[%c0, %c0_0, %c0_1] : memref<1x8x32xf32, #tpu.memory_space<vmem>>, vector<1x8x32xf32>
    %1 = vector.shape_cast %0 : vector<1x8x32xf32> to vector<8x32xf32>
    %c0_2 = arith.constant 0 : index
    %c0_3 = arith.constant 0 : index
    %2 = memref.load %arg6[%c0_2, %c0_3] : memref<1x1xf32, #tpu.memory_space<smem>>
    %3 = arith.mulf %1, %1 : vector<8x32xf32>
    %cst = arith.constant dense<0.000000e+00> : vector<8xf32>
    %4 = vector.multi_reduction <add>, %3, %cst [1] : vector<8x32xf32> to vector<8xf32>
    %5 = vector.shape_cast %4 : vector<8xf32> to vector<8x1xf32>
    %6 = math.sqrt %5 : vector<8x1xf32>
    %cst_4 = arith.constant 9.99999974E-6 : f32
    %7 = vector.broadcast %cst_4 : f32 to vector<8x1xf32>
    %8 = arith.maximumf %6, %7 : vector<8x1xf32>
    %9 = vector.broadcast %2 : f32 to vector<8x1xf32>
    %10 = arith.divf %9, %8 : vector<8x1xf32>
    %11 = vector.broadcast %10 : vector<8x1xf32> to vector<8x32xf32>
    %12 = arith.mulf %1, %11 : vector<8x32xf32>
    %13 = arith.truncf %12 : vector<8x32xf32> to vector<8x32xbf16>
    %c0_5 = arith.constant 0 : index
    %c0_6 = arith.constant 0 : index
    %14 = vector.load %arg2[%c0_5, %c0_6] : memref<32x96xbf16, #tpu.memory_space<vmem>>, vector<32x96xbf16>
    %cst_7 = arith.constant dense<0.000000e+00> : vector<8x96xf32>
    %15 = tpu.matmul %13, %14, %cst_7 {dimension_numbers = #tpu.dot_dimension_numbers<[1], [0], [0], [1], [0, 0, 1, 1], [], []>} : vector<8x32xbf16>, vector<32x96xbf16>, vector<8x96xf32> -> vector<8x96xf32>
    %c0_8 = arith.constant 0 : index
    %c0_9 = arith.constant 0 : index
    %16 = vector.load %arg3[%c0_8, %c0_9] : memref<1x96xf32, #tpu.memory_space<vmem>>, vector<1x96xf32>
    %17 = vector.broadcast %16 : vector<1x96xf32> to vector<8x96xf32>
    %18 = arith.addf %15, %17 : vector<8x96xf32>
    %19 = vector.extract_strided_slice %18 {offsets = [0, 0], sizes = [8, 32], strides = [1, 1]} : vector<8x96xf32> to vector<8x32xf32>
    %20 = vector.extract_strided_slice %18 {offsets = [0, 32], sizes = [8, 32], strides = [1, 1]} : vector<8x96xf32> to vector<8x32xf32>
    %21 = vector.extract_strided_slice %18 {offsets = [0, 64], sizes = [8, 32], strides = [1, 1]} : vector<8x96xf32> to vector<8x32xf32>
    %22 = tpu.iota {dimensions = array<i32: 0>} : vector<8x8xi32>
    %23 = tpu.iota {dimensions = array<i32: 1>} : vector<8x8xi32>
    %24 = arith.cmpi sge, %22, %23 : vector<8x8xi32>
    %cst_10 = arith.constant 0.000000e+00 : f32
    %cst_11 = arith.constant -1.000000e+09 : f32
    %25 = vector.broadcast %cst_10 : f32 to vector<8x8xf32>
    %26 = vector.broadcast %cst_11 : f32 to vector<8x8xf32>
    %27 = arith.select %24, %25, %26 : vector<8x8xi1>, vector<8x8xf32>
    %28 = arith.truncf %19 : vector<8x32xf32> to vector<8x32xbf16>
    %29 = arith.truncf %20 : vector<8x32xf32> to vector<8x32xbf16>
    %30 = arith.truncf %21 : vector<8x32xf32> to vector<8x32xbf16>
    %31 = vector.extract_strided_slice %28 {offsets = [0, 0], sizes = [8, 8], strides = [1, 1]} : vector<8x32xbf16> to vector<8x8xbf16>
    %32 = vector.extract_strided_slice %29 {offsets = [0, 0], sizes = [8, 8], strides = [1, 1]} : vector<8x32xbf16> to vector<8x8xbf16>
    %cst_12 = arith.constant dense<0.000000e+00> : vector<8x8xf32>
    %33 = tpu.matmul %31, %32, %cst_12 {dimension_numbers = #tpu.dot_dimension_numbers<[1], [1], [0], [0], [0, 0, 1, 0], [], []>} : vector<8x8xbf16>, vector<8x8xbf16>, vector<8x8xf32> -> vector<8x8xf32>
    %34 = arith.addf %33, %27 : vector<8x8xf32>
    %cst_13 = arith.constant dense<0xFF800000> : vector<8xf32>
    %35 = vector.multi_reduction <maximumf>, %34, %cst_13 [1] : vector<8x8xf32> to vector<8xf32>
    %36 = vector.shape_cast %35 : vector<8xf32> to vector<8x1xf32>
    %37 = vector.broadcast %36 : vector<8x1xf32> to vector<8x8xf32>
    %38 = arith.subf %34, %37 : vector<8x8xf32>
    %39 = math.exp %38 : vector<8x8xf32>
    %cst_14 = arith.constant dense<0.000000e+00> : vector<8xf32>
    %40 = vector.multi_reduction <add>, %39, %cst_14 [1] : vector<8x8xf32> to vector<8xf32>
    %41 = vector.shape_cast %40 : vector<8xf32> to vector<8x1xf32>
    %42 = arith.truncf %39 : vector<8x8xf32> to vector<8x8xbf16>
    %43 = vector.extract_strided_slice %30 {offsets = [0, 0], sizes = [8, 8], strides = [1, 1]} : vector<8x32xbf16> to vector<8x8xbf16>
    %cst_15 = arith.constant dense<0.000000e+00> : vector<8x8xf32>
    %44 = tpu.matmul %42, %43, %cst_15 {dimension_numbers = #tpu.dot_dimension_numbers<[1], [0], [0], [1], [0, 0, 1, 1], [], []>} : vector<8x8xbf16>, vector<8x8xbf16>, vector<8x8xf32> -> vector<8x8xf32>
    %45 = tpu.reciprocal %41 {approx = true} : vector<8x1xf32> -> vector<8x1xf32>
    %46 = vector.broadcast %45 : vector<8x1xf32> to vector<8x8xf32>
    %47 = arith.mulf %44, %46 : vector<8x8xf32>
    %c0_16 = arith.constant 0 : index
    %c0_17 = arith.constant 0 : index
    %48 = vector.load %arg8[%c0_16, %c0_17] : memref<8x32xf32, #tpu.memory_space<vmem>>, vector<8x8xf32>
    tpu.vector_store %arg8[%c0_16, %c0_17], %47 {strides = array<i32>} : memref<8x32xf32, #tpu.memory_space<vmem>>, vector<8x8xf32>,
    %49 = vector.extract_strided_slice %28 {offsets = [0, 8], sizes = [8, 8], strides = [1, 1]} : vector<8x32xbf16> to vector<8x8xbf16>
    %50 = vector.extract_strided_slice %29 {offsets = [0, 8], sizes = [8, 8], strides = [1, 1]} : vector<8x32xbf16> to vector<8x8xbf16>
    %cst_18 = arith.constant dense<0.000000e+00> : vector<8x8xf32>
    %51 = tpu.matmul %49, %50, %cst_18 {dimension_numbers = #tpu.dot_dimension_numbers<[1], [1], [0], [0], [0, 0, 1, 0], [], []>} : vector<8x8xbf16>, vector<8x8xbf16>, vector<8x8xf32> -> vector<8x8xf32>
    %52 = arith.addf %51, %27 : vector<8x8xf32>
    %cst_19 = arith.constant dense<0xFF800000> : vector<8xf32>
    %53 = vector.multi_reduction <maximumf>, %52, %cst_19 [1] : vector<8x8xf32> to vector<8xf32>
    %54 = vector.shape_cast %53 : vector<8xf32> to vector<8x1xf32>
    %55 = vector.broadcast %54 : vector<8x1xf32> to vector<8x8xf32>
    %56 = arith.subf %52, %55 : vector<8x8xf32>
    %57 = math.exp %56 : vector<8x8xf32>
    %cst_20 = arith.constant dense<0.000000e+00> : vector<8xf32>
    %58 = vector.multi_reduction <add>, %57, %cst_20 [1] : vector<8x8xf32> to vector<8xf32>
    %59 = vector.shape_cast %58 : vector<8xf32> to vector<8x1xf32>
    %60 = arith.truncf %57 : vector<8x8xf32> to vector<8x8xbf16>
    %61 = vector.extract_strided_slice %30 {offsets = [0, 8], sizes = [8, 8], strides = [1, 1]} : vector<8x32xbf16> to vector<8x8xbf16>
    %cst_21 = arith.constant dense<0.000000e+00> : vector<8x8xf32>
    %62 = tpu.matmul %60, %61, %cst_21 {dimension_numbers = #tpu.dot_dimension_numbers<[1], [0], [0], [1], [0, 0, 1, 1], [], []>} : vector<8x8xbf16>, vector<8x8xbf16>, vector<8x8xf32> -> vector<8x8xf32>
    %63 = tpu.reciprocal %59 {approx = true} : vector<8x1xf32> -> vector<8x1xf32>
    %64 = vector.broadcast %63 : vector<8x1xf32> to vector<8x8xf32>
    %65 = arith.mulf %62, %64 : vector<8x8xf32>
    %c0_22 = arith.constant 0 : index
    %c8 = arith.constant 8 : index
    %66 = vector.load %arg8[%c0_22, %c8] : memref<8x32xf32, #tpu.memory_space<vmem>>, vector<8x8xf32>
    tpu.vector_store %arg8[%c0_22, %c8], %65 {strides = array<i32>} : memref<8x32xf32, #tpu.memory_space<vmem>>, vector<8x8xf32>,
    %67 = vector.extract_strided_slice %28 {offsets = [0, 16], sizes = [8, 8], strides = [1, 1]} : vector<8x32xbf16> to vector<8x8xbf16>
    %68 = vector.extract_strided_slice %29 {offsets = [0, 16], sizes = [8, 8], strides = [1, 1]} : vector<8x32xbf16> to vector<8x8xbf16>
    %cst_23 = arith.constant dense<0.000000e+00> : vector<8x8xf32>
    %69 = tpu.matmul %67, %68, %cst_23 {dimension_numbers = #tpu.dot_dimension_numbers<[1], [1], [0], [0], [0, 0, 1, 0], [], []>} : vector<8x8xbf16>, vector<8x8xbf16>, vector<8x8xf32> -> vector<8x8xf32>
    %70 = arith.addf %69, %27 : vector<8x8xf32>
    %cst_24 = arith.constant dense<0xFF800000> : vector<8xf32>
    %71 = vector.multi_reduction <maximumf>, %70, %cst_24 [1] : vector<8x8xf32> to vector<8xf32>
    %72 = vector.shape_cast %71 : vector<8xf32> to vector<8x1xf32>
    %73 = vector.broadcast %72 : vector<8x1xf32> to vector<8x8xf32>
    %74 = arith.subf %70, %73 : vector<8x8xf32>
    %75 = math.exp %74 : vector<8x8xf32>
    %cst_25 = arith.constant dense<0.000000e+00> : vector<8xf32>
    %76 = vector.multi_reduction <add>, %75, %cst_25 [1] : vector<8x8xf32> to vector<8xf32>
    %77 = vector.shape_cast %76 : vector<8xf32> to vector<8x1xf32>
    %78 = arith.truncf %75 : vector<8x8xf32> to vector<8x8xbf16>
    %79 = vector.extract_strided_slice %30 {offsets = [0, 16], sizes = [8, 8], strides = [1, 1]} : vector<8x32xbf16> to vector<8x8xbf16>
    %cst_26 = arith.constant dense<0.000000e+00> : vector<8x8xf32>
    %80 = tpu.matmul %78, %79, %cst_26 {dimension_numbers = #tpu.dot_dimension_numbers<[1], [0], [0], [1], [0, 0, 1, 1], [], []>} : vector<8x8xbf16>, vector<8x8xbf16>, vector<8x8xf32> -> vector<8x8xf32>
    %81 = tpu.reciprocal %77 {approx = true} : vector<8x1xf32> -> vector<8x1xf32>
    %82 = vector.broadcast %81 : vector<8x1xf32> to vector<8x8xf32>
    %83 = arith.mulf %80, %82 : vector<8x8xf32>
    %c0_27 = arith.constant 0 : index
    %c16 = arith.constant 16 : index
    %84 = vector.load %arg8[%c0_27, %c16] : memref<8x32xf32, #tpu.memory_space<vmem>>, vector<8x8xf32>
    tpu.vector_store %arg8[%c0_27, %c16], %83 {strides = array<i32>} : memref<8x32xf32, #tpu.memory_space<vmem>>, vector<8x8xf32>,
    %85 = vector.extract_strided_slice %28 {offsets = [0, 24], sizes = [8, 8], strides = [1, 1]} : vector<8x32xbf16> to vector<8x8xbf16>
    %86 = vector.extract_strided_slice %29 {offsets = [0, 24], sizes = [8, 8], strides = [1, 1]} : vector<8x32xbf16> to vector<8x8xbf16>
    %cst_28 = arith.constant dense<0.000000e+00> : vector<8x8xf32>
    %87 = tpu.matmul %85, %86, %cst_28 {dimension_numbers = #tpu.dot_dimension_numbers<[1], [1], [0], [0], [0, 0, 1, 0], [], []>} : vector<8x8xbf16>, vector<8x8xbf16>, vector<8x8xf32> -> vector<8x8xf32>
    %88 = arith.addf %87, %27 : vector<8x8xf32>
    %cst_29 = arith.constant dense<0xFF800000> : vector<8xf32>
    %89 = vector.multi_reduction <maximumf>, %88, %cst_29 [1] : vector<8x8xf32> to vector<8xf32>
    %90 = vector.shape_cast %89 : vector<8xf32> to vector<8x1xf32>
    %91 = vector.broadcast %90 : vector<8x1xf32> to vector<8x8xf32>
    %92 = arith.subf %88, %91 : vector<8x8xf32>
    %93 = math.exp %92 : vector<8x8xf32>
    %cst_30 = arith.constant dense<0.000000e+00> : vector<8xf32>
    %94 = vector.multi_reduction <add>, %93, %cst_30 [1] : vector<8x8xf32> to vector<8xf32>
    %95 = vector.shape_cast %94 : vector<8xf32> to vector<8x1xf32>
    %96 = arith.truncf %93 : vector<8x8xf32> to vector<8x8xbf16>
    %97 = vector.extract_strided_slice %30 {offsets = [0, 24], sizes = [8, 8], strides = [1, 1]} : vector<8x32xbf16> to vector<8x8xbf16>
    %cst_31 = arith.constant dense<0.000000e+00> : vector<8x8xf32>
    %98 = tpu.matmul %96, %97, %cst_31 {dimension_numbers = #tpu.dot_dimension_numbers<[1], [0], [0], [1], [0, 0, 1, 1], [], []>} : vector<8x8xbf16>, vector<8x8xbf16>, vector<8x8xf32> -> vector<8x8xf32>
    %99 = tpu.reciprocal %95 {approx = true} : vector<8x1xf32> -> vector<8x1xf32>
    %100 = vector.broadcast %99 : vector<8x1xf32> to vector<8x8xf32>
    %101 = arith.mulf %98, %100 : vector<8x8xf32>
    %c0_32 = arith.constant 0 : index
    %c24 = arith.constant 24 : index
    %102 = vector.load %arg8[%c0_32, %c24] : memref<8x32xf32, #tpu.memory_space<vmem>>, vector<8x8xf32>
    tpu.vector_store %arg8[%c0_32, %c24], %101 {strides = array<i32>} : memref<8x32xf32, #tpu.memory_space<vmem>>, vector<8x8xf32>,
    %c0_33 = arith.constant 0 : index
    %c0_34 = arith.constant 0 : index
    %103 = vector.load %arg8[%c0_33, %c0_34] : memref<8x32xf32, #tpu.memory_space<vmem>>, vector<8x32xf32>
    %104 = arith.truncf %103 : vector<8x32xf32> to vector<8x32xbf16>
    %c0_35 = arith.constant 0 : index
    %c0_36 = arith.constant 0 : index
    %105 = vector.load %arg4[%c0_35, %c0_36] : memref<32x32xbf16, #tpu.memory_space<vmem>>, vector<32x32xbf16>
    %cst_37 = arith.constant dense<0.000000e+00> : vector<8x32xf32>
    %106 = tpu.matmul %104, %105, %cst_37 {dimension_numbers = #tpu.dot_dimension_numbers<[1], [0], [0], [1], [0, 0, 1, 1], [], []>} : vector<8x32xbf16>, vector<32x32xbf16>, vector<8x32xf32> -> vector<8x32xf32>
    %c0_38 = arith.constant 0 : index
    %c0_39 = arith.constant 0 : index
    %107 = vector.load %arg5[%c0_38, %c0_39] : memref<1x32xf32, #tpu.memory_space<vmem>>, vector<1x32xf32>
    %108 = vector.broadcast %107 : vector<1x32xf32> to vector<8x32xf32>
    %109 = arith.addf %106, %108 : vector<8x32xf32>
    %110 = arith.addf %109, %1 : vector<8x32xf32>
    %c0_40 = arith.constant 0 : index
    %c0_41 = arith.constant 0 : index
    %c0_42 = arith.constant 0 : index
    %111 = vector.load %arg7[%c0_40, %c0_41, %c0_42] : memref<1x8x32xf32, #tpu.memory_space<vmem>>, vector<1x8x32xf32>
    %112 = vector.shape_cast %111 : vector<1x8x32xf32> to vector<8x32xf32>
    %113 = vector.shape_cast %110 : vector<8x32xf32> to vector<1x8x32xf32>
    tpu.vector_store %arg7[%c0_40, %c0_41, %c0_42], %113 {strides = array<i32>} : memref<1x8x32xf32, #tpu.memory_space<vmem>>, vector<1x8x32xf32>,
    return
  }
  func.func @transform_0(%arg0: i32) -> (i32, i32, i32) {
    %c0_i32 = arith.constant 0 : i32
    %c0_i32_0 = arith.constant 0 : i32
    %c0_i32_1 = arith.constant 0 : i32
    return %arg0, %c0_i32, %c0_i32_0 : i32, i32, i32
  }
  func.func @transform_1(%arg0: i32) -> (i32, i32) {
    %c0_i32 = arith.constant 0 : i32
    %c0_i32_0 = arith.constant 0 : i32
    %c0_i32_1 = arith.constant 0 : i32
    return %c0_i32, %c0_i32_0 : i32, i32
  }
  func.func @transform_2(%arg0: i32) -> (i32, i32) {
    %c0_i32 = arith.constant 0 : i32
    %c0_i32_0 = arith.constant 0 : i32
    %c0_i32_1 = arith.constant 0 : i32
    return %c0_i32, %c0_i32_0 : i32, i32
  }
  func.func @transform_3(%arg0: i32) -> (i32, i32) {
    %c0_i32 = arith.constant 0 : i32
    %c0_i32_0 = arith.constant 0 : i32
    %c0_i32_1 = arith.constant 0 : i32
    return %c0_i32, %c0_i32_0 : i32, i32
  }
  func.func @transform_4(%arg0: i32) -> (i32, i32) {
    %c0_i32 = arith.constant 0 : i32
    %c0_i32_0 = arith.constant 0 : i32
    %c0_i32_1 = arith.constant 0 : i32
    return %c0_i32, %c0_i32_0 : i32, i32
  }
  func.func @transform_5(%arg0: i32) -> (i32, i32) {
    %c0_i32 = arith.constant 0 : i32
    %c0_i32_0 = arith.constant 0 : i32
    %c0_i32_1 = arith.constant 0 : i32
    return %c0_i32, %c0_i32_0 : i32, i32
  }
  func.func @transform_6(%arg0: i32) -> (i32, i32, i32) {
    %c0_i32 = arith.constant 0 : i32
    %c0_i32_0 = arith.constant 0 : i32
    %c0_i32_1 = arith.constant 0 : i32
    return %arg0, %c0_i32, %c0_i32_0 : i32, i32, i32
  }
}

module attributes {stable_mosaic.version = 11 : i64} {
  func.func @_ff_sublayer_kernel(%arg0: i32, %arg1: i32, %arg2: memref<8x32xf32, #tpu.memory_space<vmem>>, %arg3: memref<32x64xbf16, #tpu.memory_space<vmem>>, %arg4: memref<1x64xf32, #tpu.memory_space<vmem>>, %arg5: memref<64x32xbf16, #tpu.memory_space<vmem>>, %arg6: memref<1x32xf32, #tpu.memory_space<vmem>>, %arg7: memref<1x1xf32, #tpu.memory_space<smem>>, %arg8: memref<8x32xf32, #tpu.memory_space<vmem>>, %arg9: memref<8x32xf32, #tpu.memory_space<vmem>>) attributes {dimension_semantics = [#tpu.dimension_semantics<parallel>, #tpu.dimension_semantics<arbitrary>], iteration_bounds = array<i64: 2, 1>, scalar_prefetch = 0 : i64, scratch_operands = 1 : i64, tpu.core_type = #tpu.core_type<tc>, window_params = [{transform_indices = @transform_0, window_bounds = array<i64: 8, 32>}, {transform_indices = @transform_1, window_bounds = array<i64: 32, 64>}, {transform_indices = @transform_2, window_bounds = array<i64: 1, 64>}, {transform_indices = @transform_3, window_bounds = array<i64: 64, 32>}, {pipeline_mode = #tpu.pipeline_mode<synchronous>, transform_indices = @transform_4, window_bounds = array<i64: 1, 32>}, {transform_indices = @transform_5, window_bounds = array<i64: 1, 1>}, {transform_indices = @transform_6, window_bounds = array<i64: 8, 32>}]} {
    %c0_i32 = arith.constant 0 : i32
    %0 = arith.cmpi eq, %arg1, %c0_i32 : i32
    %1 = arith.extui %0 : i1 to i32
    %c0_i32_0 = arith.constant 0 : i32
    %2 = arith.cmpi ne, %1, %c0_i32_0 : i32
    scf.if %2 {
      %cst_20 = arith.constant 0.000000e+00 : f32
      %32 = vector.broadcast %cst_20 : f32 to vector<8x32xf32>
      %c0_21 = arith.constant 0 : index
      %c0_22 = arith.constant 0 : index
      %33 = vector.load %arg9[%c0_21, %c0_22] : memref<8x32xf32, #tpu.memory_space<vmem>>, vector<8x32xf32>
      tpu.vector_store %arg9[%c0_21, %c0_22], %32 {strides = array<i32>} : memref<8x32xf32, #tpu.memory_space<vmem>>, vector<8x32xf32>,
    } else {
    }
    %c0 = arith.constant 0 : index
    %c0_1 = arith.constant 0 : index
    %3 = vector.load %arg2[%c0, %c0_1] : memref<8x32xf32, #tpu.memory_space<vmem>>, vector<8x32xf32>
    %c0_2 = arith.constant 0 : index
    %c0_3 = arith.constant 0 : index
    %4 = memref.load %arg7[%c0_2, %c0_3] : memref<1x1xf32, #tpu.memory_space<smem>>
    %5 = arith.mulf %3, %3 : vector<8x32xf32>
    %cst = arith.constant dense<0.000000e+00> : vector<8xf32>
    %6 = vector.multi_reduction <add>, %5, %cst [1] : vector<8x32xf32> to vector<8xf32>
    %7 = vector.shape_cast %6 : vector<8xf32> to vector<8x1xf32>
    %8 = math.sqrt %7 : vector<8x1xf32>
    %cst_4 = arith.constant 9.99999974E-6 : f32
    %9 = vector.broadcast %cst_4 : f32 to vector<8x1xf32>
    %10 = arith.maximumf %8, %9 : vector<8x1xf32>
    %11 = vector.broadcast %4 : f32 to vector<8x1xf32>
    %12 = arith.divf %11, %10 : vector<8x1xf32>
    %13 = vector.broadcast %12 : vector<8x1xf32> to vector<8x32xf32>
    %14 = arith.mulf %3, %13 : vector<8x32xf32>
    %15 = arith.truncf %14 : vector<8x32xf32> to vector<8x32xbf16>
    %c0_5 = arith.constant 0 : index
    %c0_6 = arith.constant 0 : index
    %16 = vector.load %arg3[%c0_5, %c0_6] : memref<32x64xbf16, #tpu.memory_space<vmem>>, vector<32x64xbf16>
    %cst_7 = arith.constant dense<0.000000e+00> : vector<8x64xf32>
    %17 = tpu.matmul %15, %16, %cst_7 {dimension_numbers = #tpu.dot_dimension_numbers<[1], [0], [0], [1], [0, 0, 1, 1], [], []>} : vector<8x32xbf16>, vector<32x64xbf16>, vector<8x64xf32> -> vector<8x64xf32>
    %c0_8 = arith.constant 0 : index
    %c0_9 = arith.constant 0 : index
    %18 = vector.load %arg4[%c0_8, %c0_9] : memref<1x64xf32, #tpu.memory_space<vmem>>, vector<1x64xf32>
    %19 = vector.broadcast %18 : vector<1x64xf32> to vector<8x64xf32>
    %20 = arith.addf %17, %19 : vector<8x64xf32>
    %cst_10 = arith.constant 0.000000e+00 : f32
    %21 = vector.broadcast %cst_10 : f32 to vector<8x64xf32>
    %22 = arith.maximumf %20, %21 : vector<8x64xf32>
    %c0_11 = arith.constant 0 : index
    %c0_12 = arith.constant 0 : index
    %23 = vector.load %arg9[%c0_11, %c0_12] : memref<8x32xf32, #tpu.memory_space<vmem>>, vector<8x32xf32>
    %24 = arith.truncf %22 : vector<8x64xf32> to vector<8x64xbf16>
    %c0_13 = arith.constant 0 : index
    %c0_14 = arith.constant 0 : index
    %25 = vector.load %arg5[%c0_13, %c0_14] : memref<64x32xbf16, #tpu.memory_space<vmem>>, vector<64x32xbf16>
    %cst_15 = arith.constant dense<0.000000e+00> : vector<8x32xf32>
    %26 = tpu.matmul %24, %25, %cst_15 {dimension_numbers = #tpu.dot_dimension_numbers<[1], [0], [0], [1], [0, 0, 1, 1], [], []>} : vector<8x64xbf16>, vector<64x32xbf16>, vector<8x32xf32> -> vector<8x32xf32>
    %27 = arith.addf %23, %26 : vector<8x32xf32>
    %c0_16 = arith.constant 0 : index
    %c0_17 = arith.constant 0 : index
    %28 = vector.load %arg9[%c0_16, %c0_17] : memref<8x32xf32, #tpu.memory_space<vmem>>, vector<8x32xf32>
    tpu.vector_store %arg9[%c0_16, %c0_17], %27 {strides = array<i32>} : memref<8x32xf32, #tpu.memory_space<vmem>>, vector<8x32xf32>,
    %c0_i32_18 = arith.constant 0 : i32
    %29 = arith.cmpi eq, %arg1, %c0_i32_18 : i32
    %30 = arith.extui %29 : i1 to i32
    %c0_i32_19 = arith.constant 0 : i32
    %31 = arith.cmpi ne, %30, %c0_i32_19 : i32
    scf.if %31 {
      %c0_20 = arith.constant 0 : index
      %c0_21 = arith.constant 0 : index
      %32 = vector.load %arg9[%c0_20, %c0_21] : memref<8x32xf32, #tpu.memory_space<vmem>>, vector<8x32xf32>
      %c0_22 = arith.constant 0 : index
      %c0_23 = arith.constant 0 : index
      %33 = vector.load %arg6[%c0_22, %c0_23] : memref<1x32xf32, #tpu.memory_space<vmem>>, vector<1x32xf32>
      %34 = vector.broadcast %33 : vector<1x32xf32> to vector<8x32xf32>
      %35 = arith.addf %32, %34 : vector<8x32xf32>
      %36 = arith.addf %35, %3 : vector<8x32xf32>
      %c0_24 = arith.constant 0 : index
      %c0_25 = arith.constant 0 : index
      %37 = vector.load %arg8[%c0_24, %c0_25] : memref<8x32xf32, #tpu.memory_space<vmem>>, vector<8x32xf32>
      tpu.vector_store %arg8[%c0_24, %c0_25], %36 {strides = array<i32>} : memref<8x32xf32, #tpu.memory_space<vmem>>, vector<8x32xf32>,
    } else {
    }
    return
  }
  func.func @transform_0(%arg0: i32, %arg1: i32) -> (i32, i32) {
    %c0_i32 = arith.constant 0 : i32
    %c0_i32_0 = arith.constant 0 : i32
    return %arg0, %c0_i32 : i32, i32
  }
  func.func @transform_1(%arg0: i32, %arg1: i32) -> (i32, i32) {
    %c0_i32 = arith.constant 0 : i32
    %c0_i32_0 = arith.constant 0 : i32
    return %c0_i32, %arg1 : i32, i32
  }
  func.func @transform_2(%arg0: i32, %arg1: i32) -> (i32, i32) {
    %c0_i32 = arith.constant 0 : i32
    %c0_i32_0 = arith.constant 0 : i32
    return %c0_i32, %arg1 : i32, i32
  }
  func.func @transform_3(%arg0: i32, %arg1: i32) -> (i32, i32) {
    %c0_i32 = arith.constant 0 : i32
    %c0_i32_0 = arith.constant 0 : i32
    return %arg1, %c0_i32 : i32, i32
  }
  func.func @transform_4(%arg0: i32, %arg1: i32) -> (i32, i32) {
    %c0_i32 = arith.constant 0 : i32
    %c0_i32_0 = arith.constant 0 : i32
    %c0_i32_1 = arith.constant 0 : i32
    return %c0_i32, %c0_i32_0 : i32, i32
  }
  func.func @transform_5(%arg0: i32, %arg1: i32) -> (i32, i32) {
    %c0_i32 = arith.constant 0 : i32
    %c0_i32_0 = arith.constant 0 : i32
    %c0_i32_1 = arith.constant 0 : i32
    return %c0_i32, %c0_i32_0 : i32, i32
  }
  func.func @transform_6(%arg0: i32, %arg1: i32) -> (i32, i32) {
    %c0_i32 = arith.constant 0 : i32
    %c0_i32_0 = arith.constant 0 : i32
    return %arg0, %c0_i32 : i32, i32
  }
}

module attributes {stable_mosaic.version = 11 : i64} {
  func.func @_scale_norm_kernel(%arg0: i32, %arg1: memref<8x32xf32, #tpu.memory_space<vmem>>, %arg2: memref<1x1xf32, #tpu.memory_space<smem>>, %arg3: memref<8x32xf32, #tpu.memory_space<vmem>>) attributes {dimension_semantics = [#tpu.dimension_semantics<parallel>], iteration_bounds = array<i64: 2>, scalar_prefetch = 0 : i64, scratch_operands = 0 : i64, tpu.core_type = #tpu.core_type<tc>, window_params = [{transform_indices = @transform_0, window_bounds = array<i64: 8, 32>}, {transform_indices = @transform_1, window_bounds = array<i64: 1, 1>}, {transform_indices = @transform_2, window_bounds = array<i64: 8, 32>}]} {
    %c0 = arith.constant 0 : index
    %c0_0 = arith.constant 0 : index
    %0 = vector.load %arg1[%c0, %c0_0] : memref<8x32xf32, #tpu.memory_space<vmem>>, vector<8x32xf32>
    %c0_1 = arith.constant 0 : index
    %c0_2 = arith.constant 0 : index
    %1 = memref.load %arg2[%c0_1, %c0_2] : memref<1x1xf32, #tpu.memory_space<smem>>
    %2 = arith.mulf %0, %0 : vector<8x32xf32>
    %cst = arith.constant dense<0.000000e+00> : vector<8xf32>
    %3 = vector.multi_reduction <add>, %2, %cst [1] : vector<8x32xf32> to vector<8xf32>
    %4 = vector.shape_cast %3 : vector<8xf32> to vector<8x1xf32>
    %5 = math.sqrt %4 : vector<8x1xf32>
    %cst_3 = arith.constant 9.99999974E-6 : f32
    %6 = vector.broadcast %cst_3 : f32 to vector<8x1xf32>
    %7 = arith.maximumf %5, %6 : vector<8x1xf32>
    %8 = vector.broadcast %1 : f32 to vector<8x1xf32>
    %9 = arith.divf %8, %7 : vector<8x1xf32>
    %10 = vector.broadcast %9 : vector<8x1xf32> to vector<8x32xf32>
    %11 = arith.mulf %0, %10 : vector<8x32xf32>
    %c0_4 = arith.constant 0 : index
    %c0_5 = arith.constant 0 : index
    %12 = vector.load %arg3[%c0_4, %c0_5] : memref<8x32xf32, #tpu.memory_space<vmem>>, vector<8x32xf32>
    tpu.vector_store %arg3[%c0_4, %c0_5], %11 {strides = array<i32>} : memref<8x32xf32, #tpu.memory_space<vmem>>, vector<8x32xf32>,
    return
  }
  func.func @transform_0(%arg0: i32) -> (i32, i32) {
    %c0_i32 = arith.constant 0 : i32
    %c0_i32_0 = arith.constant 0 : i32
    return %arg0, %c0_i32 : i32, i32
  }
  func.func @transform_1(%arg0: i32) -> (i32, i32) {
    %c0_i32 = arith.constant 0 : i32
    %c0_i32_0 = arith.constant 0 : i32
    %c0_i32_1 = arith.constant 0 : i32
    return %c0_i32, %c0_i32_0 : i32, i32
  }
  func.func @transform_2(%arg0: i32) -> (i32, i32) {
    %c0_i32 = arith.constant 0 : i32
    %c0_i32_0 = arith.constant 0 : i32
    return %arg0, %c0_i32 : i32, i32
  }
}

</mosaic_0001>

<llo_original>
// kernel: decoder.7
$region0: #{decoder.7}
  #allocation0 [shape = 'u32[]', space=smem, size = 0x4, offset = 0x4, fixed_abs, tag = 'smem constant byte address 0x4 - core index']
  #allocation1 [shape = 'u32[144,128]{1,0:T(1,128)}', space=vmem, size = 0x12000, scoped, tag = 'internal scratch']
  #allocation2 [shape = 'f32[8,32]{1,0:T(8,128)}', space=vmem, size = 0x1000, scoped, tag = 'scratch operand']
  #allocation3 [shape = 'f32[1,1]{1,0:T(1,128)S(6)}', space=smem, size = 0x200, scoped, tag = 'scoped memory for decoder.7']
  %s0 = inlined_call_operand.vmem [shape: f32[2,8,32], index: 0, kind: input, shape index: {}]
  %s1 = inlined_call_operand.vmem [shape: bf16[32,96], index: 1, kind: input, shape index: {}]
  %s2 = inlined_call_operand.vmem [shape: f32[1,96], index: 2, kind: input, shape index: {}]
  %s3 = inlined_call_operand.vmem [shape: bf16[32,32], index: 3, kind: input, shape index: {}]
  %s4 = inlined_call_operand.vmem [shape: f32[1,32], index: 4, kind: input, shape index: {}]
  %s5 = inlined_call_operand.<no memory space> [shape: f32[1,1], index: 5, kind: input, shape index: {}]
  %s6 = inlined_call_operand.vmem [shape: f32[2,8,32], index: 6, kind: output, shape index: {}]
  %s7 = sld [smem:[#allocation0]]
  $region57: #{decoder.7} parent=0
    _
  %s9 = ssub.s32 1, %s7
  %s10 = scalar_select 0, %s9, %s7
  %11 = sst [smem:[#allocation3]] %s5
  loop: start=0, step=1, limit=4
  $region2: #{decoder.7} parent=0 // loop_pre_header
    _
  $region3: #{decoder.7} parent=0 // loop_header
    %s13 = sphi 0, %s17
    %p14 = scmp.ge.s32.totalorder %s13, 4
    %s23 = sphi 0, %s25
    %s26 = sphi 0, %s23
    %s27 = sphi 0, %s26
    %s43 = sphi 0, %s27
    %s47 = sphi 0, %s47
    %s49 = sphi 0, %s47
    %s50 = sphi 0, %s49
    %s64 = sphi 0, %s50
    %s68 = sphi 0, %s68
    %s70 = sphi 0, %s68
    %s71 = sphi 0, %s70
    %s85 = sphi 0, %s71
    %s89 = sphi 0, %s89
    %s91 = sphi 0, %s89
    %s92 = sphi 0, %s91
    %s106 = sphi 0, %s92
    %s110 = sphi 0, %s110
    %s112 = sphi 0, %s110
    %s113 = sphi 0, %s112
    %s127 = sphi 0, %s113
    %s131 = sphi 0, %s131
    %s133 = sphi 0, %s131
    %s134 = sphi 0, %s133
    %s148 = sphi 0, %s134
    %s154 = sphi 0, %s156
    %s157 = sphi 0, %s154
    %s158 = sphi 0, %s157
    %s174 = sphi 0, %s158
  $region4: #{decoder.7} parent=0 // loop_header_branch
    %16 = sbr.rel (%p14) target = $region8
  $region5: #{decoder.7} parent=0 // loop_body
    %s18 = ssub.s32 %s13, 1
    %s19 = ssub.s32 %s13, 2
    %s20 = sadd.s32 %s13, 1
    %s21 = ssub.s32 %s13, %s20
    %p22 = scmp.eq.s32.totalorder %s21, 0
    %s24 = sadd.s32 %s23, 1
    %s25 = scalar_select %p22, %s23, %s24
    %p28 = pneg %p22
    %p29 = scmp.eq.s32.totalorder %s13, 1
    %p30 = por %p28, %p29
    %p31 = scmp.ne.s32.totalorder %s23, %s26
    %p32 = scmp.eq.s32.totalorder %s13, 0
    %p33 = por %p31, %p32
    %p34 = scmp.ne.s32.totalorder %s23, %s26
    %p35 = scmp.eq.s32.totalorder %s18, 1
    %p36 = por %p34, %p35
    %p37 = scmp.ne.s32.totalorder %s26, %s27
    %p38 = scmp.eq.s32.totalorder %s18, 0
    %p39 = por %p37, %p38
    %p40 = scmp.ne.s32.totalorder %s26, %s27
    %p41 = scmp.eq.s32.totalorder %s19, 1
    %p42 = por %p40, %p41
    %p44 = scmp.ne.s32.totalorder %s27, %s43
    %p45 = scmp.eq.s32.totalorder %s19, 0
    %p46 = por %p44, %p45
    %s48 = sadd.s32 %s47, 1
    %p51 = scmp.eq.s32.totalorder %s13, 1
    %p52 = scmp.ne.s32.totalorder %s47, %s49
    %p53 = scmp.eq.s32.totalorder %s13, 0
    %p54 = por %p52, %p53
    %p55 = scmp.ne.s32.totalorder %s47, %s49
    %p56 = scmp.eq.s32.totalorder %s18, 1
    %p57 = por %p55, %p56
    %p58 = scmp.ne.s32.totalorder %s49, %s50
    %p59 = scmp.eq.s32.totalorder %s18, 0
    %p60 = por %p58, %p59
    %p61 = scmp.ne.s32.totalorder %s49, %s50
    %p62 = scmp.eq.s32.totalorder %s19, 1
    %p63 = por %p61, %p62
    %p65 = scmp.ne.s32.totalorder %s50, %s64
    %p66 = scmp.eq.s32.totalorder %s19, 0
    %p67 = por %p65, %p66
    %s69 = sadd.s32 %s68, 1
    %p72 = scmp.eq.s32.totalorder %s13, 1
    %p73 = scmp.ne.s32.totalorder %s68, %s70
    %p74 = scmp.eq.s32.totalorder %s13, 0
    %p75 = por %p73, %p74
    %p76 = scmp.ne.s32.totalorder %s68, %s70
    %p77 = scmp.eq.s32.totalorder %s18, 1
    %p78 = por %p76, %p77
    %p79 = scmp.ne.s32.totalorder %s70, %s71
    %p80 = scmp.eq.s32.totalorder %s18, 0
    %p81 = por %p79, %p80
    %p82 = scmp.ne.s32.totalorder %s70, %s71
    %p83 = scmp.eq.s32.totalorder %s19, 1
    %p84 = por %p82, %p83
    %p86 = scmp.ne.s32.totalorder %s71, %s85
    %p87 = scmp.eq.s32.totalorder %s19, 0
    %p88 = por %p86, %p87
    %s90 = sadd.s32 %s89, 1
    %p93 = scmp.eq.s32.totalorder %s13, 1
    %p94 = scmp.ne.s32.totalorder %s89, %s91
    %p95 = scmp.eq.s32.totalorder %s13, 0
    %p96 = por %p94, %p95
    %p97 = scmp.ne.s32.totalorder %s89, %s91
    %p98 = scmp.eq.s32.totalorder %s18, 1
    %p99 = por %p97, %p98
    %p100 = scmp.ne.s32.totalorder %s91, %s92
    %p101 = scmp.eq.s32.totalorder %s18, 0
    %p102 = por %p100, %p101
    %p103 = scmp.ne.s32.totalorder %s91, %s92
    %p104 = scmp.eq.s32.totalorder %s19, 1
    %p105 = por %p103, %p104
    %p107 = scmp.ne.s32.totalorder %s92, %s106
    %p108 = scmp.eq.s32.totalorder %s19, 0
    %p109 = por %p107, %p108
    %s111 = sadd.s32 %s110, 1
    %p114 = scmp.eq.s32.totalorder %s13, 1
    %p115 = scmp.ne.s32.totalorder %s110, %s112
    %p116 = scmp.eq.s32.totalorder %s13, 0
    %p117 = por %p115, %p116
    %p118 = scmp.ne.s32.totalorder %s110, %s112
    %p119 = scmp.eq.s32.totalorder %s18, 1
    %p120 = por %p118, %p119
    %p121 = scmp.ne.s32.totalorder %s112, %s113
    %p122 = scmp.eq.s32.totalorder %s18, 0
    %p123 = por %p121, %p122
    %p124 = scmp.ne.s32.totalorder %s112, %s113
    %p125 = scmp.eq.s32.totalorder %s19, 1
    %p126 = por %p124, %p125
    %p128 = scmp.ne.s32.totalorder %s113, %s127
    %p129 = scmp.eq.s32.totalorder %s19, 0
    %p130 = por %p128, %p129
    %s132 = sadd.s32 %s131, 1
    %p135 = scmp.eq.s32.totalorder %s13, 1
    %p136 = scmp.ne.s32.totalorder %s131, %s133
    %p137 = scmp.eq.s32.totalorder %s13, 0
    %p138 = por %p136, %p137
    %p139 = scmp.ne.s32.totalorder %s131, %s133
    %p140 = scmp.eq.s32.totalorder %s18, 1
    %p141 = por %p139, %p140
    %p142 = scmp.ne.s32.totalorder %s133, %s134
    %p143 = scmp.eq.s32.totalorder %s18, 0
    %p144 = por %p142, %p143
    %p145 = scmp.ne.s32.totalorder %s133, %s134
    %p146 = scmp.eq.s32.totalorder %s19, 1
    %p147 = por %p145, %p146
    %p149 = scmp.ne.s32.totalorder %s134, %s148
    %p150 = scmp.eq.s32.totalorder %s19, 0
    %p151 = por %p149, %p150
    %s152 = ssub.s32 %s13, %s20
    %p153 = scmp.eq.s32.totalorder %s152, 0
    %s155 = sadd.s32 %s154, 1
    %s156 = scalar_select %p153, %s154, %s155
    %p159 = pneg %p153
    %p160 = scmp.eq.s32.totalorder %s13, 1
    %p161 = por %p159, %p160
    %p162 = scmp.ne.s32.totalorder %s154, %s157
    %p163 = scmp.eq.s32.totalorder %s13, 0
    %p164 = por %p162, %p163
    %p165 = scmp.ne.s32.totalorder %s154, %s157
    %p166 = scmp.eq.s32.totalorder %s18, 1
    %p167 = por %p165, %p166
    %p168 = scmp.ne.s32.totalorder %s157, %s158
    %p169 = scmp.eq.s32.totalorder %s18, 0
    %p170 = por %p168, %p169
    %p171 = scmp.ne.s32.totalorder %s157, %s158
    %p172 = scmp.eq.s32.totalorder %s19, 1
    %p173 = por %p171, %p172
    %p175 = scmp.ne.s32.totalorder %s158, %s174
    %p176 = scmp.eq.s32.totalorder %s19, 0
    %p177 = por %p175, %p176
    %p178 = scmp.le.s32.totalorder 1, %s13
    %p179 = scmp.lt.s32.totalorder %s13, 3
    %p180 = pnand %p178, %p179
    %p181 = pneg %p180
    // Predicated region
    $region9: #{decoder.7} parent=5 // pred_check
      _
    $region10: #{decoder.7} parent=5 // pred_check_branch
      %183 = sbr.rel (%p180) target = $region12
    $region11: #{decoder.7} parent=5 // pred_region
      %s184 = ssub.s32 %s13, 1
      // Predicated region
      $region13: #{decoder.7} parent=11 // pred_check
        %p185 = pneg %p60
      $region14: #{decoder.7} parent=11 // pred_check_branch
        %187 = sbr.rel (%p185) target = $region16
      $region15: #{decoder.7} parent=11 // pred_region
        _
      $region16: #{decoder.7} parent=11 // pred_fallthru
        _
      // Predicated region
      $region17: #{decoder.7} parent=11 // pred_check
        %p188 = pneg %p81
      $region18: #{decoder.7} parent=11 // pred_check_branch
        %190 = sbr.rel (%p188) target = $region20
      $region19: #{decoder.7} parent=11 // pred_region
        _
      $region20: #{decoder.7} parent=11 // pred_fallthru
        _
      // Predicated region
      $region21: #{decoder.7} parent=11 // pred_check
        %p191 = pneg %p102
      $region22: #{decoder.7} parent=11 // pred_check_branch
        %193 = sbr.rel (%p191) target = $region24
      $region23: #{decoder.7} parent=11 // pred_region
        _
      $region24: #{decoder.7} parent=11 // pred_fallthru
        _
      // Predicated region
      $region25: #{decoder.7} parent=11 // pred_check
        %p194 = pneg %p123
      $region26: #{decoder.7} parent=11 // pred_check_branch
        %196 = sbr.rel (%p194) target = $region28
      $region27: #{decoder.7} parent=11 // pred_region
        _
      $region28: #{decoder.7} parent=11 // pred_fallthru
        _
      // Predicated region
      $region29: #{decoder.7} parent=11 // pred_check
        %p197 = pneg %p144
      $region30: #{decoder.7} parent=11 // pred_check_branch
        %199 = sbr.rel (%p197) target = $region32
      $region31: #{decoder.7} parent=11 // pred_region
        _
      $region32: #{decoder.7} parent=11 // pred_fallthru
        _
    $region12: #{decoder.7} parent=5 // pred_fallthru
      _
    %p200 = scmp.lt.s32.totalorder %s13, 2
    // Predicated region
    $region33: #{decoder.7} parent=5 // pred_check
      %p201 = pneg %p200
    $region34: #{decoder.7} parent=5 // pred_check_branch
      %203 = sbr.rel (%p201) target = $region36
    $region35: #{decoder.7} parent=5 // pred_region
      // Predicated region
      $region37: #{decoder.7} parent=35 // pred_check
        %p204 = pneg %p33
      $region38: #{decoder.7} parent=35 // pred_check_branch
        %206 = sbr.rel (%p204) target = $region40
      $region39: #{decoder.7} parent=35 // pred_region
        %p207 = scmp.lt.s32.totalorder %s13, 1
        %s208 = scalar_select %p207, %s13, 1
        %s209 = smul.addr %s208, 8
        %s210 = scalar_lea.vmem %s0, %s209
      $region40: #{decoder.7} parent=35 // pred_fallthru
        _
    $region36: #{decoder.7} parent=5 // pred_fallthru
      _
    %p211 = scmp.le.s32.totalorder 1, %s13
    %p212 = scmp.lt.s32.totalorder %s13, 3
    %p213 = pnand %p211, %p212
    %p214 = pneg %p213
    // Predicated region
    $region41: #{decoder.7} parent=5 // pred_check
      _
    $region42: #{decoder.7} parent=5 // pred_check_branch
      %216 = sbr.rel (%p213) target = $region44
    $region43: #{decoder.7} parent=5 // pred_region
      %s217 = ssub.s32 %s13, 1
      %p218 = scmp.lt.s32.totalorder %s18, 1
      %s219 = scalar_select %p218, %s18, 1
      %s220 = smul.addr %s219, 8
      %s221 = scalar_lea.vmem %s0, %s220
      %p222 = pneg %p39
      %p223 = pneg %p36
      %p224 = pneg %p60
      %p225 = pneg %p57
      %p226 = pneg %p81
      %p227 = pneg %p78
      %p228 = pneg %p102
      %p229 = pneg %p99
      %p230 = pneg %p123
      %p231 = pneg %p120
      %p232 = pneg %p144
      %p233 = pneg %p141
      %p234 = pneg %p170
      %p235 = pneg %p167
      %p236 = scmp.lt.s32.totalorder %s18, 1
      %s237 = scalar_select %p236, %s18, 1
      %s238 = smul.addr %s237, 8
      %s239 = scalar_lea.vmem %s6, %s238
      %p240 = scmp.lt.s32.totalorder %s18, 1
      %s241 = scalar_select %p240, %s18, 1
      %s242 = smul.addr %s241, 8
      %s243 = scalar_lea.vmem %s0, %s242
      %p244 = scmp.lt.s32.totalorder %s18, 1
      %s245 = scalar_select %p244, %s18, 1
      %s246 = smul.addr %s245, 8
      %s247 = scalar_lea.vmem %s6, %s246
      %v249 = vld [vmem:[%s243] sm:$0xff]
      %s250 = sld [smem:[#allocation3]]
      %v251 = vmul.f32 %v249, %v249
      %vm252 = vcmask 261120
      %v253 = vsel %vm252, %v251, 0.0
      %254 = vadd.xlane.f32.xlu0 %v253
      %v255 = vpop.xlane.xlu0 %254
      %v256 = vrsqrt.pop %v255
      %v257 = vmul.f32 %v255, %v256
      %vm258 = vcmp.eq.f32.partialorder %v255, inf
      %v259 = vsel %vm258, %v255, %v257
      %vm260 = vcmp.eq.f32.partialorder %v255, 0.0
      %v261 = vand.u32 %v255, 2147483648
      %v262 = vsel %vm260, %v261, %v259
      %v263 = vmax.f32 %v262, 1e-05
      %v264 = vstv %s250
      %v265 = vrcp.pop %v263
      %v266 = vmul.f32 %v264, %v265
      %v267 = vmul.f32 %v249, %v266
      %v268 = vpack.c.bf16 %v267, %v267
      %v269 = vld [vmem:[%s1] sm:$0xf]
      %v270 = vld [vmem:[%s1 + $0x4] sm:$0xf]
      %v271 = vld [vmem:[%s1 + $0x8] sm:$0xf]
      %v272 = vld [vmem:[%s1 + $0xc] sm:$0xf]
      %v273 = vld [vmem:[%s2] sm:$0x1]
      %v275 = vlaneseq
      %v276 = vshrl.u32 %v275, 7
      %v277 = vsub.s32 0, %v276
      %v278 = vrot.slane %v273, %v277
      %v284 = vunpack.c.l.b16 %v269
      %v285 = vunpack.c.l.b16 %v270
      %v286 = vunpack.c.l.b16 %v271
      %v287 = vunpack.c.l.b16 %v272
      %v288 = vpack.c.b16 %v285, %v284
      %v289 = vpack.c.b16 %v287, %v286
      %v293 = vsel %vm252, %v268, 0
      %295 = vmatprep.subr.bf16.mxu0 0
      %296 = vmatpush1.bf16.msra.mxu0 0
      %297 = vmatprep.subr.bf16.mxu0 0
      %298 = vmatpush1.bf16.msra.mxu0 0
      %299 = vmatprep.subr.bf16.mxu0 0
      %300 = vmatpush1.bf16.msra.mxu0 0
      %301 = vmatprep.subr.bf16.mxu0 0
      %302 = vmatpush1.bf16.msra.mxu0 0
      %303 = vmatprep.subr.bf16.mxu0 0
      %304 = vmatpush1.bf16.msra.mxu0 0
      %305 = vmatprep.subr.bf16.mxu0 0
      %306 = vmatpush1.bf16.msra.mxu0 0
      %307 = vmatprep.subr.bf16.mxu0 0
      %308 = vmatpush1.bf16.msra.mxu0 %v289
      %309 = vmatprep.subr.bf16.mxu0 0
      %310 = vmatpush1.bf16.msra.mxu0 %v288
      %311 = vmatprep.subr.bf16.mxu0 0
      %312 = vmatpush2.bf16.msra.mxu0 0
      %313 = vmatprep.subr.bf16.mxu0 0
      %314 = vmatpush2.bf16.msra.mxu0 0
      %315 = vmatprep.subr.bf16.mxu0 0
      %316 = vmatpush2.bf16.msra.mxu0 0
      %317 = vmatprep.subr.bf16.mxu0 0
      %318 = vmatpush2.bf16.msra.mxu0 0
      %319 = vmatprep.subr.bf16.mxu0 0
      %320 = vmatpush2.bf16.msra.mxu0 0
      %321 = vmatprep.subr.bf16.mxu0 0
      %322 = vmatpush2.bf16.msra.mxu0 0
      %323 = vmatprep.subr.bf16.mxu0 0
      %324 = vmatpush2.bf16.msra.mxu0 0
      %325 = vmatprep.subr.bf16.mxu0 0
      %326 = vmatpush2.bf16.msra.mxu0 0
      %327 = vmatprep.mubr.bf16.mxu0 0
      %328 = vmatmul.mubr.bf16.gmra.mxu0 %v293
      %v329 = vpop.f32.mrf.mxu0
      %v330 = vadd.f32 %v278, %v329
      %v331 = vpop.f32.mrf.mxu0
      %v332 = vpop.f32.mrf.mxu0
      %v333 = vpop.f32.mrf.mxu0
      %334 = vdwg.mxu0
      %v335 = vlaneseq
      %v336 = vshrl.u32 %v335, 7
      %v337 = vlaneseq
      %v338 = vand.u32 %v337, 127
      %vm339 = vcmp.ge.s32.totalorder %v336, %v338
      %v340 = vsel %vm339, 0.0, -1e+09
      %v341 = vpack.c.bf16 %v330, %v330
      %343 = vrot.lane.b32.xlu0 %v341, 96
      %v344 = vpop.permute.xlu0 %343
      %vm345 = vcmask 64512
      %v347 = vsel %vm345, %v341, 0
      %v350 = vsel %vm345, %v344, 0
      %352 = vmatprep.subr.bf16.mxu0 0
      %353 = vmatpush1.bf16.xpose.msra.mxu0 0
      %354 = vmatprep.subr.bf16.mxu0 0
      %355 = vmatpush1.bf16.xpose.msra.mxu0 0
      %356 = vmatprep.subr.bf16.mxu0 0
      %357 = vmatpush1.bf16.xpose.msra.mxu0 0
      %358 = vmatprep.subr.bf16.mxu0 0
      %359 = vmatpush1.bf16.xpose.msra.mxu0 0
      %360 = vmatprep.subr.bf16.mxu0 0
      %361 = vmatpush1.bf16.xpose.msra.mxu0 0
      %362 = vmatprep.subr.bf16.mxu0 0
      %363 = vmatpush1.bf16.xpose.msra.mxu0 0
      %364 = vmatprep.subr.bf16.mxu0 0
      %365 = vmatpush1.bf16.xpose.msra.mxu0 0
      %366 = vmatprep.subr.bf16.mxu0 0
      %367 = vmatpush1.bf16.xpose.msra.mxu0 %v350
      %368 = vmatprep.subr.bf16.mxu0 0
      %369 = vmatpush2.bf16.xpose.msra.mxu0 0
      %370 = vmatprep.subr.bf16.mxu0 0
      %371 = vmatpush2.bf16.xpose.msra.mxu0 0
      %372 = vmatprep.subr.bf16.mxu0 0
      %373 = vmatpush2.bf16.xpose.msra.mxu0 0
      %374 = vmatprep.subr.bf16.mxu0 0
      %375 = vmatpush2.bf16.xpose.msra.mxu0 0
      %376 = vmatprep.subr.bf16.mxu0 0
      %377 = vmatpush2.bf16.xpose.msra.mxu0 0
      %378 = vmatprep.subr.bf16.mxu0 0
      %379 = vmatpush2.bf16.xpose.msra.mxu0 0
      %380 = vmatprep.subr.bf16.mxu0 0
      %381 = vmatpush2.bf16.xpose.msra.mxu0 0
      %382 = vmatprep.subr.bf16.mxu0 0
      %383 = vmatpush2.bf16.xpose.msra.mxu0 0
      %384 = vmatprep.mubr.bf16.mxu0 0
      %385 = vmatmul.mubr.bf16.gmra.mxu0 %v347
      %v386 = vpop.f32.mrf.mxu0
      %v387 = vadd.f32 %v340, %v386
      %v388 = vpop.f32.mrf.mxu0
      %v389 = vpop.f32.mrf.mxu0
      %v390 = vpop.f32.mrf.mxu0
      %391 = vdwg.mxu0
      %v392 = vsel %vm345, %v387, -inf
      %393 = vmax.xlane.f32.xlu0 %v392
      %v394 = vpop.xlane.xlu0 %393
      %v395 = vsub.f32 %v387, %v394
      %v396 = vmul.f32 %v395, 1.442695
      %v397 = vpow.pop %v396
      %v398 = vsel %vm345, %v397, 0.0
      %399 = vadd.xlane.f32.xlu0 %v398
      %v400 = vpop.xlane.xlu0 %399
      %v401 = vpack.c.bf16 %v397, %v397
      %402 = vrot.lane.b32.xlu0 %v341, 64
      %v403 = vpop.permute.xlu0 %402
      %v405 = vsel %vm345, %v401, 0
      %vm407 = vcmask 1043456
      %v409 = vsel %vm407, %v403, 0
      %411 = vmatprep.subr.bf16.mxu0 0
      %412 = vmatpush1.bf16.msra.mxu0 0
      %413 = vmatprep.subr.bf16.mxu0 0
      %414 = vmatpush1.bf16.msra.mxu0 0
      %415 = vmatprep.subr.bf16.mxu0 0
      %416 = vmatpush1.bf16.msra.mxu0 0
      %417 = vmatprep.subr.bf16.mxu0 0
      %418 = vmatpush1.bf16.msra.mxu0 0
      %419 = vmatprep.subr.bf16.mxu0 0
      %420 = vmatpush1.bf16.msra.mxu0 0
      %421 = vmatprep.subr.bf16.mxu0 0
      %422 = vmatpush1.bf16.msra.mxu0 0
      %423 = vmatprep.subr.bf16.mxu0 0
      %424 = vmatpush1.bf16.msra.mxu0 0
      %425 = vmatprep.subr.bf16.mxu0 0
      %426 = vmatpush1.bf16.msra.mxu0 %v409
      %427 = vmatprep.subr.bf16.mxu0 0
      %428 = vmatpush2.bf16.msra.mxu0 0
      %429 = vmatprep.subr.bf16.mxu0 0
      %430 = vmatpush2.bf16.msra.mxu0 0
      %431 = vmatprep.subr.bf16.mxu0 0
      %432 = vmatpush2.bf16.msra.mxu0 0
      %433 = vmatprep.subr.bf16.mxu0 0
      %434 = vmatpush2.bf16.msra.mxu0 0
      %435 = vmatprep.subr.bf16.mxu0 0
      %436 = vmatpush2.bf16.msra.mxu0 0
      %437 = vmatprep.subr.bf16.mxu0 0
      %438 = vmatpush2.bf16.msra.mxu0 0
      %439 = vmatprep.subr.bf16.mxu0 0
      %440 = vmatpush2.bf16.msra.mxu0 0
      %441 = vmatprep.subr.bf16.mxu0 0
      %442 = vmatpush2.bf16.msra.mxu0 0
      %443 = vmatprep.mubr.bf16.mxu0 0
      %444 = vmatmul.mubr.bf16.gmra.mxu0 %v405
      %v445 = vpop.f32.mrf.mxu0
      %v446 = vadd.f32 0.0, %v445
      %v447 = vpop.f32.mrf.mxu0
      %v448 = vpop.f32.mrf.mxu0
      %v449 = vpop.f32.mrf.mxu0
      %450 = vdwg.mxu0
      %v451 = vrcp.pop %v400
      %v452 = vmul.f32 %v446, %v451
      %453 = vst.msk [vmem:[#allocation2] sm:$0xff] %vm345, %v452
      %454 = vrot.lane.b32.xlu0 %v341, 120
      %v455 = vpop.permute.xlu0 %454
      %456 = vrot.lane.b32.xlu0 %v341, 88
      %v457 = vpop.permute.xlu0 %456
      %v459 = vsel %vm345, %v455, 0
      %v462 = vsel %vm345, %v457, 0
      %464 = vmatprep.subr.bf16.mxu0 0
      %465 = vmatpush1.bf16.xpose.msra.mxu0 0
      %466 = vmatprep.subr.bf16.mxu0 0
      %467 = vmatpush1.bf16.xpose.msra.mxu0 0
      %468 = vmatprep.subr.bf16.mxu0 0
      %469 = vmatpush1.bf16.xpose.msra.mxu0 0
      %470 = vmatprep.subr.bf16.mxu0 0
      %471 = vmatpush1.bf16.xpose.msra.mxu0 0
      %472 = vmatprep.subr.bf16.mxu0 0
      %473 = vmatpush1.bf16.xpose.msra.mxu0 0
      %474 = vmatprep.subr.bf16.mxu0 0
      %475 = vmatpush1.bf16.xpose.msra.mxu0 0
      %476 = vmatprep.subr.bf16.mxu0 0
      %477 = vmatpush1.bf16.xpose.msra.mxu0 0
      %478 = vmatprep.subr.bf16.mxu0 0
      %479 = vmatpush1.bf16.xpose.msra.mxu0 %v462
      %480 = vmatprep.subr.bf16.mxu0 0
      %481 = vmatpush2.bf16.xpose.msra.mxu0 0
      %482 = vmatprep.subr.bf16.mxu0 0
      %483 = vmatpush2.bf16.xpose.msra.mxu0 0
      %484 = vmatprep.subr.bf16.mxu0 0
      %485 = vmatpush2.bf16.xpose.msra.mxu0 0
      %486 = vmatprep.subr.bf16.mxu0 0
      %487 = vmatpush2.bf16.xpose.msra.mxu0 0
      %488 = vmatprep.subr.bf16.mxu0 0
      %489 = vmatpush2.bf16.xpose.msra.mxu0 0
      %490 = vmatprep.subr.bf16.mxu0 0
      %491 = vmatpush2.bf16.xpose.msra.mxu0 0
      %492 = vmatprep.subr.bf16.mxu0 0
      %493 = vmatpush2.bf16.xpose.msra.mxu0 0
      %494 = vmatprep.subr.bf16.mxu0 0
      %495 = vmatpush2.bf16.xpose.msra.mxu0 0
      %496 = vmatprep.mubr.bf16.mxu0 0
      %497 = vmatmul.mubr.bf16.gmra.mxu0 %v459
      %v498 = vpop.f32.mrf.mxu0
      %v499 = vadd.f32 %v340, %v498
      %v500 = vpop.f32.mrf.mxu0
      %v501 = vpop.f32.mrf.mxu0
      %v502 = vpop.f32.mrf.mxu0
      %503 = vdwg.mxu0
      %v504 = vsel %vm345, %v499, -inf
      %505 = vmax.xlane.f32.xlu0 %v504
      %v506 = vpop.xlane.xlu0 %505
      %v507 = vsub.f32 %v499, %v506
      %v508 = vmul.f32 %v507, 1.442695
      %v509 = vpow.pop %v508
      %v510 = vsel %vm345, %v509, 0.0
      %511 = vadd.xlane.f32.xlu0 %v510
      %v512 = vpop.xlane.xlu0 %511
      %v513 = vpack.c.bf16 %v509, %v509
      %514 = vrot.lane.b32.xlu0 %v341, 56
      %v515 = vpop.permute.xlu0 %514
      %v517 = vsel %vm345, %v513, 0
      %v520 = vsel %vm407, %v515, 0
      %522 = vmatprep.subr.bf16.mxu0 0
      %523 = vmatpush1.bf16.msra.mxu0 0
      %524 = vmatprep.subr.bf16.mxu0 0
      %525 = vmatpush1.bf16.msra.mxu0 0
      %526 = vmatprep.subr.bf16.mxu0 0
      %527 = vmatpush1.bf16.msra.mxu0 0
      %528 = vmatprep.subr.bf16.mxu0 0
      %529 = vmatpush1.bf16.msra.mxu0 0
      %530 = vmatprep.subr.bf16.mxu0 0
      %531 = vmatpush1.bf16.msra.mxu0 0
      %532 = vmatprep.subr.bf16.mxu0 0
      %533 = vmatpush1.bf16.msra.mxu0 0
      %534 = vmatprep.subr.bf16.mxu0 0
      %535 = vmatpush1.bf16.msra.mxu0 0
      %536 = vmatprep.subr.bf16.mxu0 0
      %537 = vmatpush1.bf16.msra.mxu0 %v520
      %538 = vmatprep.subr.bf16.mxu0 0
      %539 = vmatpush2.bf16.msra.mxu0 0
      %540 = vmatprep.subr.bf16.mxu0 0
      %541 = vmatpush2.bf16.msra.mxu0 0
      %542 = vmatprep.subr.bf16.mxu0 0
      %543 = vmatpush2.bf16.msra.mxu0 0
      %544 = vmatprep.subr.bf16.mxu0 0
      %545 = vmatpush2.bf16.msra.mxu0 0
      %546 = vmatprep.subr.bf16.mxu0 0
      %547 = vmatpush2.bf16.msra.mxu0 0
      %548 = vmatprep.subr.bf16.mxu0 0
      %549 = vmatpush2.bf16.msra.mxu0 0
      %550 = vmatprep.subr.bf16.mxu0 0
      %551 = vmatpush2.bf16.msra.mxu0 0
      %552 = vmatprep.subr.bf16.mxu0 0
      %553 = vmatpush2.bf16.msra.mxu0 0
      %554 = vmatprep.mubr.bf16.mxu0 0
      %555 = vmatmul.mubr.bf16.gmra.mxu0 %v517
      %v556 = vpop.f32.mrf.mxu0
      %v557 = vadd.f32 0.0, %v556
      %v558 = vpop.f32.mrf.mxu0
      %v559 = vpop.f32.mrf.mxu0
      %v560 = vpop.f32.mrf.mxu0
      %561 = vdwg.mxu0
      %v562 = vrcp.pop %v512
      %v563 = vmul.f32 %v557, %v562
      %565 = vrot.lane.b32.xlu0 %v563, 8
      %v566 = vpop.permute.xlu0 %565
      %vm568 = vcmask 130112
      %569 = vst.msk [vmem:[#allocation2] sm:$0xff] %vm568, %v566
      %570 = vrot.lane.b32.xlu0 %v341, 112
      %v571 = vpop.permute.xlu0 %570
      %572 = vrot.lane.b32.xlu0 %v341, 80
      %v573 = vpop.permute.xlu0 %572
      %v575 = vsel %vm345, %v571, 0
      %v578 = vsel %vm345, %v573, 0
      %580 = vmatprep.subr.bf16.mxu0 0
      %581 = vmatpush1.bf16.xpose.msra.mxu0 0
      %582 = vmatprep.subr.bf16.mxu0 0
      %583 = vmatpush1.bf16.xpose.msra.mxu0 0
      %584 = vmatprep.subr.bf16.mxu0 0
      %585 = vmatpush1.bf16.xpose.msra.mxu0 0
      %586 = vmatprep.subr.bf16.mxu0 0
      %587 = vmatpush1.bf16.xpose.msra.mxu0 0
      %588 = vmatprep.subr.bf16.mxu0 0
      %589 = vmatpush1.bf16.xpose.msra.mxu0 0
      %590 = vmatprep.subr.bf16.mxu0 0
      %591 = vmatpush1.bf16.xpose.msra.mxu0 0
      %592 = vmatprep.subr.bf16.mxu0 0
      %593 = vmatpush1.bf16.xpose.msra.mxu0 0
      %594 = vmatprep.subr.bf16.mxu0 0
      %595 = vmatpush1.bf16.xpose.msra.mxu0 %v578
      %596 = vmatprep.subr.bf16.mxu0 0
      %597 = vmatpush2.bf16.xpose.msra.mxu0 0
      %598 = vmatprep.subr.bf16.mxu0 0
      %599 = vmatpush2.bf16.xpose.msra.mxu0 0
      %600 = vmatprep.subr.bf16.mxu0 0
      %601 = vmatpush2.bf16.xpose.msra.mxu0 0
      %602 = vmatprep.subr.bf16.mxu0 0
      %603 = vmatpush2.bf16.xpose.msra.mxu0 0
      %604 = vmatprep.subr.bf16.mxu0 0
      %605 = vmatpush2.bf16.xpose.msra.mxu0 0
      %606 = vmatprep.subr.bf16.mxu0 0
      %607 = vmatpush2.bf16.xpose.msra.mxu0 0
      %608 = vmatprep.subr.bf16.mxu0 0
      %609 = vmatpush2.bf16.xpose.msra.mxu0 0
      %610 = vmatprep.subr.bf16.mxu0 0
      %611 = vmatpush2.bf16.xpose.msra.mxu0 0
      %612 = vmatprep.mubr.bf16.mxu0 0
      %613 = vmatmul.mubr.bf16.gmra.mxu0 %v575
      %v614 = vpop.f32.mrf.mxu0
      %v615 = vadd.f32 %v340, %v614
      %v616 = vpop.f32.mrf.mxu0
      %v617 = vpop.f32.mrf.mxu0
      %v618 = vpop.f32.mrf.mxu0
      %619 = vdwg.mxu0
      %v620 = vsel %vm345, %v615, -inf
      %621 = vmax.xlane.f32.xlu0 %v620
      %v622 = vpop.xlane.xlu0 %621
      %v623 = vsub.f32 %v615, %v622
      %v624 = vmul.f32 %v623, 1.442695
      %v625 = vpow.pop %v624
      %v626 = vsel %vm345, %v625, 0.0
      %627 = vadd.xlane.f32.xlu0 %v626
      %v628 = vpop.xlane.xlu0 %627
      %v629 = vpack.c.bf16 %v625, %v625
      %630 = vrot.lane.b32.xlu0 %v341, 48
      %v631 = vpop.permute.xlu0 %630
      %v633 = vsel %vm345, %v629, 0
      %v636 = vsel %vm407, %v631, 0
      %638 = vmatprep.subr.bf16.mxu0 0
      %639 = vmatpush1.bf16.msra.mxu0 0
      %640 = vmatprep.subr.bf16.mxu0 0
      %641 = vmatpush1.bf16.msra.mxu0 0
      %642 = vmatprep.subr.bf16.mxu0 0
      %643 = vmatpush1.bf16.msra.mxu0 0
      %644 = vmatprep.subr.bf16.mxu0 0
      %645 = vmatpush1.bf16.msra.mxu0 0
      %646 = vmatprep.subr.bf16.mxu0 0
      %647 = vmatpush1.bf16.msra.mxu0 0
      %648 = vmatprep.subr.bf16.mxu0 0
      %649 = vmatpush1.bf16.msra.mxu0 0
      %650 = vmatprep.subr.bf16.mxu0 0
      %651 = vmatpush1.bf16.msra.mxu0 0
      %652 = vmatprep.subr.bf16.mxu0 0
      %653 = vmatpush1.bf16.msra.mxu0 %v636
      %654 = vmatprep.subr.bf16.mxu0 0
      %655 = vmatpush2.bf16.msra.mxu0 0
      %656 = vmatprep.subr.bf16.mxu0 0
      %657 = vmatpush2.bf16.msra.mxu0 0
      %658 = vmatprep.subr.bf16.mxu0 0
      %659 = vmatpush2.bf16.msra.mxu0 0
      %660 = vmatprep.subr.bf16.mxu0 0
      %661 = vmatpush2.bf16.msra.mxu0 0
      %662 = vmatprep.subr.bf16.mxu0 0
      %663 = vmatpush2.bf16.msra.mxu0 0
      %664 = vmatprep.subr.bf16.mxu0 0
      %665 = vmatpush2.bf16.msra.mxu0 0
      %666 = vmatprep.subr.bf16.mxu0 0
      %667 = vmatpush2.bf16.msra.mxu0 0
      %668 = vmatprep.subr.bf16.mxu0 0
      %669 = vmatpush2.bf16.msra.mxu0 0
      %670 = vmatprep.mubr.bf16.mxu0 0
      %671 = vmatmul.mubr.bf16.gmra.mxu0 %v633
      %v672 = vpop.f32.mrf.mxu0
      %v673 = vadd.f32 0.0, %v672
      %v674 = vpop.f32.mrf.mxu0
      %v675 = vpop.f32.mrf.mxu0
      %v676 = vpop.f32.mrf.mxu0
      %677 = vdwg.mxu0
      %v678 = vrcp.pop %v628
      %v679 = vmul.f32 %v673, %v678
      %681 = vrot.lane.b32.xlu0 %v679, 16
      %v682 = vpop.permute.xlu0 %681
      %vm684 = vcmask 195712
      %685 = vst.msk [vmem:[#allocation2] sm:$0xff] %vm684, %v682
      %686 = vrot.lane.b32.xlu0 %v341, 104
      %v687 = vpop.permute.xlu0 %686
      %688 = vrot.lane.b32.xlu0 %v341, 72
      %v689 = vpop.permute.xlu0 %688
      %v691 = vsel %vm345, %v687, 0
      %v694 = vsel %vm345, %v689, 0
      %696 = vmatprep.subr.bf16.mxu0 0
      %697 = vmatpush1.bf16.xpose.msra.mxu0 0
      %698 = vmatprep.subr.bf16.mxu0 0
      %699 = vmatpush1.bf16.xpose.msra.mxu0 0
      %700 = vmatprep.subr.bf16.mxu0 0
      %701 = vmatpush1.bf16.xpose.msra.mxu0 0
      %702 = vmatprep.subr.bf16.mxu0 0
      %703 = vmatpush1.bf16.xpose.msra.mxu0 0
      %704 = vmatprep.subr.bf16.mxu0 0
      %705 = vmatpush1.bf16.xpose.msra.mxu0 0
      %706 = vmatprep.subr.bf16.mxu0 0
      %707 = vmatpush1.bf16.xpose.msra.mxu0 0
      %708 = vmatprep.subr.bf16.mxu0 0
      %709 = vmatpush1.bf16.xpose.msra.mxu0 0
      %710 = vmatprep.subr.bf16.mxu0 0
      %711 = vmatpush1.bf16.xpose.msra.mxu0 %v694
      %712 = vmatprep.subr.bf16.mxu0 0
      %713 = vmatpush2.bf16.xpose.msra.mxu0 0
      %714 = vmatprep.subr.bf16.mxu0 0
      %715 = vmatpush2.bf16.xpose.msra.mxu0 0
      %716 = vmatprep.subr.bf16.mxu0 0
      %717 = vmatpush2.bf16.xpose.msra.mxu0 0
      %718 = vmatprep.subr.bf16.mxu0 0
      %719 = vmatpush2.bf16.xpose.msra.mxu0 0
      %720 = vmatprep.subr.bf16.mxu0 0
      %721 = vmatpush2.bf16.xpose.msra.mxu0 0
      %722 = vmatprep.subr.bf16.mxu0 0
      %723 = vmatpush2.bf16.xpose.msra.mxu0 0
      %724 = vmatprep.subr.bf16.mxu0 0
      %725 = vmatpush2.bf16.xpose.msra.mxu0 0
      %726 = vmatprep.subr.bf16.mxu0 0
      %727 = vmatpush2.bf16.xpose.msra.mxu0 0
      %728 = vmatprep.mubr.bf16.mxu0 0
      %729 = vmatmul.mubr.bf16.gmra.mxu0 %v691
      %v730 = vpop.f32.mrf.mxu0
      %v731 = vadd.f32 %v340, %v730
      %v732 = vpop.f32.mrf.mxu0
      %v733 = vpop.f32.mrf.mxu0
      %v734 = vpop.f32.mrf.mxu0
      %735 = vdwg.mxu0
      %v736 = vsel %vm345, %v731, -inf
      %737 = vmax.xlane.f32.xlu0 %v736
      %v738 = vpop.xlane.xlu0 %737
      %v739 = vsub.f32 %v731, %v738
      %v740 = vmul.f32 %v739, 1.442695
      %v741 = vpow.pop %v740
      %v742 = vsel %vm345, %v741, 0.0
      %743 = vadd.xlane.f32.xlu0 %v742
      %v744 = vpop.xlane.xlu0 %743
      %v745 = vpack.c.bf16 %v741, %v741
      %746 = vrot.lane.b32.xlu0 %v341, 40
      %v747 = vpop.permute.xlu0 %746
      %v749 = vsel %vm345, %v745, 0
      %v752 = vsel %vm407, %v747, 0
      %754 = vmatprep.subr.bf16.mxu0 0
      %755 = vmatpush1.bf16.msra.mxu0 0
      %756 = vmatprep.subr.bf16.mxu0 0
      %757 = vmatpush1.bf16.msra.mxu0 0
      %758 = vmatprep.subr.bf16.mxu0 0
      %759 = vmatpush1.bf16.msra.mxu0 0
      %760 = vmatprep.subr.bf16.mxu0 0
      %761 = vmatpush1.bf16.msra.mxu0 0
      %762 = vmatprep.subr.bf16.mxu0 0
      %763 = vmatpush1.bf16.msra.mxu0 0
      %764 = vmatprep.subr.bf16.mxu0 0
      %765 = vmatpush1.bf16.msra.mxu0 0
      %766 = vmatprep.subr.bf16.mxu0 0
      %767 = vmatpush1.bf16.msra.mxu0 0
      %768 = vmatprep.subr.bf16.mxu0 0
      %769 = vmatpush1.bf16.msra.mxu0 %v752
      %770 = vmatprep.subr.bf16.mxu0 0
      %771 = vmatpush2.bf16.msra.mxu0 0
      %772 = vmatprep.subr.bf16.mxu0 0
      %773 = vmatpush2.bf16.msra.mxu0 0
      %774 = vmatprep.subr.bf16.mxu0 0
      %775 = vmatpush2.bf16.msra.mxu0 0
      %776 = vmatprep.subr.bf16.mxu0 0
      %777 = vmatpush2.bf16.msra.mxu0 0
      %778 = vmatprep.subr.bf16.mxu0 0
      %779 = vmatpush2.bf16.msra.mxu0 0
      %780 = vmatprep.subr.bf16.mxu0 0
      %781 = vmatpush2.bf16.msra.mxu0 0
      %782 = vmatprep.subr.bf16.mxu0 0
      %783 = vmatpush2.bf16.msra.mxu0 0
      %784 = vmatprep.subr.bf16.mxu0 0
      %785 = vmatpush2.bf16.msra.mxu0 0
      %786 = vmatprep.mubr.bf16.mxu0 0
      %787 = vmatmul.mubr.bf16.gmra.mxu0 %v749
      %v788 = vpop.f32.mrf.mxu0
      %v789 = vadd.f32 0.0, %v788
      %v790 = vpop.f32.mrf.mxu0
      %v791 = vpop.f32.mrf.mxu0
      %v792 = vpop.f32.mrf.mxu0
      %793 = vdwg.mxu0
      %v794 = vrcp.pop %v744
      %v795 = vmul.f32 %v789, %v794
      %797 = vrot.lane.b32.xlu0 %v795, 24
      %v798 = vpop.permute.xlu0 %797
      %vm800 = vcmask 261312
      %801 = vst.msk [vmem:[#allocation2] sm:$0xff] %vm800, %v798
      %v802 = vld [vmem:[#allocation2] sm:$0xff]
      %v803 = vpack.c.bf16 %v802, %v802
      %v804 = vld [vmem:[%s3] sm:$0xf]
      %v805 = vld [vmem:[%s3 + $0x4] sm:$0xf]
      %v806 = vld [vmem:[%s3 + $0x8] sm:$0xf]
      %v807 = vld [vmem:[%s3 + $0xc] sm:$0xf]
      %v808 = vld [vmem:[%s4] sm:$0x1]
      %v810 = vlaneseq
      %v811 = vshrl.u32 %v810, 7
      %v812 = vsub.s32 0, %v811
      %v813 = vrot.slane %v808, %v812
      %v819 = vunpack.c.l.b16 %v804
      %v820 = vunpack.c.l.b16 %v805
      %v821 = vunpack.c.l.b16 %v806
      %v822 = vunpack.c.l.b16 %v807
      %v823 = vpack.c.b16 %v820, %v819
      %v824 = vpack.c.b16 %v822, %v821
      %v828 = vsel %vm252, %v803, 0
      %830 = vmatprep.subr.bf16.mxu0 0
      %831 = vmatpush1.bf16.msra.mxu0 0
      %832 = vmatprep.subr.bf16.mxu0 0
      %833 = vmatpush1.bf16.msra.mxu0 0
      %834 = vmatprep.subr.bf16.mxu0 0
      %835 = vmatpush1.bf16.msra.mxu0 0
      %836 = vmatprep.subr.bf16.mxu0 0
      %837 = vmatpush1.bf16.msra.mxu0 0
      %838 = vmatprep.subr.bf16.mxu0 0
      %839 = vmatpush1.bf16.msra.mxu0 0
      %840 = vmatprep.subr.bf16.mxu0 0
      %841 = vmatpush1.bf16.msra.mxu0 0
      %842 = vmatprep.subr.bf16.mxu0 0
      %843 = vmatpush1.bf16.msra.mxu0 %v824
      %844 = vmatprep.subr.bf16.mxu0 0
      %845 = vmatpush1.bf16.msra.mxu0 %v823
      %846 = vmatprep.subr.bf16.mxu0 0
      %847 = vmatpush2.bf16.msra.mxu0 0
      %848 = vmatprep.subr.bf16.mxu0 0
      %849 = vmatpush2.bf16.msra.mxu0 0
      %850 = vmatprep.subr.bf16.mxu0 0
      %851 = vmatpush2.bf16.msra.mxu0 0
      %852 = vmatprep.subr.bf16.mxu0 0
      %853 = vmatpush2.bf16.msra.mxu0 0
      %854 = vmatprep.subr.bf16.mxu0 0
      %855 = vmatpush2.bf16.msra.mxu0 0
      %856 = vmatprep.subr.bf16.mxu0 0
      %857 = vmatpush2.bf16.msra.mxu0 0
      %858 = vmatprep.subr.bf16.mxu0 0
      %859 = vmatpush2.bf16.msra.mxu0 0
      %860 = vmatprep.subr.bf16.mxu0 0
      %861 = vmatpush2.bf16.msra.mxu0 0
      %862 = vmatprep.mubr.bf16.mxu0 0
      %863 = vmatmul.mubr.bf16.gmra.mxu0 %v828
      %v864 = vpop.f32.mrf.mxu0
      %v865 = vadd.f32 %v813, %v864
      %v866 = vpop.f32.mrf.mxu0
      %v867 = vpop.f32.mrf.mxu0
      %v868 = vpop.f32.mrf.mxu0
      %869 = vdwg.mxu0
      %v870 = vadd.f32 %v865, %v249
      %871 = vst.msk [vmem:[%s247] sm:$0xff] %vm252, %v870
      %p872 = scmp.lt.s32.totalorder %s18, 1
      %s873 = scalar_select %p872, %s18, 1
      %s874 = smul.addr %s873, 8
      %s875 = scalar_lea.vmem %s6, %s874
      // Predicated region
      $region45: #{decoder.7} parent=43 // pred_check
        %p876 = pneg %p167
      $region46: #{decoder.7} parent=43 // pred_check_branch
        %878 = sbr.rel (%p876) target = $region48
      $region47: #{decoder.7} parent=43 // pred_region
        _
      $region48: #{decoder.7} parent=43 // pred_fallthru
        _
    $region44: #{decoder.7} parent=5 // pred_fallthru
      _
    %p879 = scmp.le.s32.totalorder 2, %s13
    // Predicated region
    $region49: #{decoder.7} parent=5 // pred_check
      %p880 = pneg %p879
    $region50: #{decoder.7} parent=5 // pred_check_branch
      %882 = sbr.rel (%p880) target = $region52
    $region51: #{decoder.7} parent=5 // pred_region
      %s883 = ssub.s32 %s13, 2
      // Predicated region
      $region53: #{decoder.7} parent=51 // pred_check
        %p884 = pneg %p173
      $region54: #{decoder.7} parent=51 // pred_check_branch
        %886 = sbr.rel (%p884) target = $region56
      $region55: #{decoder.7} parent=51 // pred_region
        %p887 = scmp.lt.s32.totalorder %s19, 1
        %s888 = scalar_select %p887, %s19, 1
        %s889 = smul.addr %s888, 8
        %s890 = scalar_lea.vmem %s6, %s889
      $region56: #{decoder.7} parent=51 // pred_fallthru
        _
    $region52: #{decoder.7} parent=5 // pred_fallthru
      _
  $region6: #{decoder.7} parent=0 // loop_footer
    %s17 = sadd.s32 1, %s13
  $region7: #{decoder.7} parent=0 // loop_footer_branch
    %12 = sbr.rel target = $region3
  $region8: #{decoder.7} parent=0 // loop_exit
    _

// kernel: decoder.8
$region0: #{decoder.8}
  #allocation0 [shape = 'u32[]', space=smem, size = 0x4, offset = 0x4, fixed_abs, tag = 'smem constant byte address 0x4 - core index']
  #allocation1 [shape = 'u32[144,128]{1,0:T(1,128)}', space=vmem, size = 0x12000, scoped, tag = 'internal scratch']
  #allocation2 [shape = 'f32[8,32]{1,0:T(8,128)}', space=vmem, size = 0x1000, scoped, tag = 'scratch operand']
  #allocation3 [shape = 'f32[1,1]{1,0:T(1,128)S(6)}', space=smem, size = 0x200, scoped, tag = 'scoped memory for decoder.8']
  %s0 = inlined_call_operand.vmem [shape: f32[2,8,32], index: 0, kind: input, shape index: {}]
  %s1 = inlined_call_operand.vmem [shape: f32[2,10,32], index: 1, kind: input, shape index: {}]
  %s2 = inlined_call_operand.vmem [shape: f32[2,1,10], index: 2, kind: input, shape index: {}]
  %s3 = inlined_call_operand.vmem [shape: bf16[32,32], index: 3, kind: input, shape index: {}]
  %s4 = inlined_call_operand.vmem [shape: f32[1,32], index: 4, kind: input, shape index: {}]
  %s5 = inlined_call_operand.vmem [shape: bf16[32,64], index: 5, kind: input, shape index: {}]
  %s6 = inlined_call_operand.vmem [shape: f32[1,64], index: 6, kind: input, shape index: {}]
  %s7 = inlined_call_operand.vmem [shape: bf16[32,32], index: 7, kind: input, shape index: {}]
  %s8 = inlined_call_operand.vmem [shape: f32[1,32], index: 8, kind: input, shape index: {}]
  %s9 = inlined_call_operand.<no memory space> [shape: f32[1,1], index: 9, kind: input, shape index: {}]
  %s10 = inlined_call_operand.vmem [shape: f32[2,8,32], index: 10, kind: output, shape index: {}]
  %s11 = sld [smem:[#allocation0]]
  $region73: #{decoder.8} parent=0
    _
  %s13 = ssub.s32 1, %s11
  %s14 = scalar_select 0, %s13, %s11
  %15 = sst [smem:[#allocation3]] %s9
  loop: start=0, step=1, limit=4
  $region2: #{decoder.8} parent=0 // loop_pre_header
    _
  $region3: #{decoder.8} parent=0 // loop_header
    %s17 = sphi 0, %s21
    %p18 = scmp.ge.s32.totalorder %s17, 4
    %s27 = sphi 0, %s29
    %s30 = sphi 0, %s27
    %s31 = sphi 0, %s30
    %s47 = sphi 0, %s31
    %s53 = sphi 0, %s55
    %s56 = sphi 0, %s53
    %s57 = sphi 0, %s56
    %s73 = sphi 0, %s57
    %s79 = sphi 0, %s81
    %s82 = sphi 0, %s79
    %s83 = sphi 0, %s82
    %s99 = sphi 0, %s83
    %s103 = sphi 0, %s103
    %s105 = sphi 0, %s103
    %s106 = sphi 0, %s105
    %s120 = sphi 0, %s106
    %s124 = sphi 0, %s124
    %s126 = sphi 0, %s124
    %s127 = sphi 0, %s126
    %s141 = sphi 0, %s127
    %s145 = sphi 0, %s145
    %s147 = sphi 0, %s145
    %s148 = sphi 0, %s147
    %s162 = sphi 0, %s148
    %s166 = sphi 0, %s166
    %s168 = sphi 0, %s166
    %s169 = sphi 0, %s168
    %s183 = sphi 0, %s169
    %s187 = sphi 0, %s187
    %s189 = sphi 0, %s187
    %s190 = sphi 0, %s189
    %s204 = sphi 0, %s190
    %s208 = sphi 0, %s208
    %s210 = sphi 0, %s208
    %s211 = sphi 0, %s210
    %s225 = sphi 0, %s211
    %s229 = sphi 0, %s229
    %s231 = sphi 0, %s229
    %s232 = sphi 0, %s231
    %s246 = sphi 0, %s232
    %s252 = sphi 0, %s254
    %s255 = sphi 0, %s252
    %s256 = sphi 0, %s255
    %s272 = sphi 0, %s256
  $region4: #{decoder.8} parent=0 // loop_header_branch
    %20 = sbr.rel (%p18) target = $region8
  $region5: #{decoder.8} parent=0 // loop_body
    %s22 = ssub.s32 %s17, 1
    %s23 = ssub.s32 %s17, 2
    %s24 = sadd.s32 %s17, 1
    %s25 = ssub.s32 %s17, %s24
    %p26 = scmp.eq.s32.totalorder %s25, 0
    %s28 = sadd.s32 %s27, 1
    %s29 = scalar_select %p26, %s27, %s28
    %p32 = pneg %p26
    %p33 = scmp.eq.s32.totalorder %s17, 1
    %p34 = por %p32, %p33
    %p35 = scmp.ne.s32.totalorder %s27, %s30
    %p36 = scmp.eq.s32.totalorder %s17, 0
    %p37 = por %p35, %p36
    %p38 = scmp.ne.s32.totalorder %s27, %s30
    %p39 = scmp.eq.s32.totalorder %s22, 1
    %p40 = por %p38, %p39
    %p41 = scmp.ne.s32.totalorder %s30, %s31
    %p42 = scmp.eq.s32.totalorder %s22, 0
    %p43 = por %p41, %p42
    %p44 = scmp.ne.s32.totalorder %s30, %s31
    %p45 = scmp.eq.s32.totalorder %s23, 1
    %p46 = por %p44, %p45
    %p48 = scmp.ne.s32.totalorder %s31, %s47
    %p49 = scmp.eq.s32.totalorder %s23, 0
    %p50 = por %p48, %p49
    %s51 = ssub.s32 %s17, %s24
    %p52 = scmp.eq.s32.totalorder %s51, 0
    %s54 = sadd.s32 %s53, 1
    %s55 = scalar_select %p52, %s53, %s54
    %p58 = pneg %p52
    %p59 = scmp.eq.s32.totalorder %s17, 1
    %p60 = por %p58, %p59
    %p61 = scmp.ne.s32.totalorder %s53, %s56
    %p62 = scmp.eq.s32.totalorder %s17, 0
    %p63 = por %p61, %p62
    %p64 = scmp.ne.s32.totalorder %s53, %s56
    %p65 = scmp.eq.s32.totalorder %s22, 1
    %p66 = por %p64, %p65
    %p67 = scmp.ne.s32.totalorder %s56, %s57
    %p68 = scmp.eq.s32.totalorder %s22, 0
    %p69 = por %p67, %p68
    %p70 = scmp.ne.s32.totalorder %s56, %s57
    %p71 = scmp.eq.s32.totalorder %s23, 1
    %p72 = por %p70, %p71
    %p74 = scmp.ne.s32.totalorder %s57, %s73
    %p75 = scmp.eq.s32.totalorder %s23, 0
    %p76 = por %p74, %p75
    %s77 = ssub.s32 %s17, %s24
    %p78 = scmp.eq.s32.totalorder %s77, 0
    %s80 = sadd.s32 %s79, 1
    %s81 = scalar_select %p78, %s79, %s80
    %p84 = pneg %p78
    %p85 = scmp.eq.s32.totalorder %s17, 1
    %p86 = por %p84, %p85
    %p87 = scmp.ne.s32.totalorder %s79, %s82
    %p88 = scmp.eq.s32.totalorder %s17, 0
    %p89 = por %p87, %p88
    %p90 = scmp.ne.s32.totalorder %s79, %s82
    %p91 = scmp.eq.s32.totalorder %s22, 1
    %p92 = por %p90, %p91
    %p93 = scmp.ne.s32.totalorder %s82, %s83
    %p94 = scmp.eq.s32.totalorder %s22, 0
    %p95 = por %p93, %p94
    %p96 = scmp.ne.s32.totalorder %s82, %s83
    %p97 = scmp.eq.s32.totalorder %s23, 1
    %p98 = por %p96, %p97
    %p100 = scmp.ne.s32.totalorder %s83, %s99
    %p101 = scmp.eq.s32.totalorder %s23, 0
    %p102 = por %p100, %p101
    %s104 = sadd.s32 %s103, 1
    %p107 = scmp.eq.s32.totalorder %s17, 1
    %p108 = scmp.ne.s32.totalorder %s103, %s105
    %p109 = scmp.eq.s32.totalorder %s17, 0
    %p110 = por %p108, %p109
    %p111 = scmp.ne.s32.totalorder %s103, %s105
    %p112 = scmp.eq.s32.totalorder %s22, 1
    %p113 = por %p111, %p112
    %p114 = scmp.ne.s32.totalorder %s105, %s106
    %p115 = scmp.eq.s32.totalorder %s22, 0
    %p116 = por %p114, %p115
    %p117 = scmp.ne.s32.totalorder %s105, %s106
    %p118 = scmp.eq.s32.totalorder %s23, 1
    %p119 = por %p117, %p118
    %p121 = scmp.ne.s32.totalorder %s106, %s120
    %p122 = scmp.eq.s32.totalorder %s23, 0
    %p123 = por %p121, %p122
    %s125 = sadd.s32 %s124, 1
    %p128 = scmp.eq.s32.totalorder %s17, 1
    %p129 = scmp.ne.s32.totalorder %s124, %s126
    %p130 = scmp.eq.s32.totalorder %s17, 0
    %p131 = por %p129, %p130
    %p132 = scmp.ne.s32.totalorder %s124, %s126
    %p133 = scmp.eq.s32.totalorder %s22, 1
    %p134 = por %p132, %p133
    %p135 = scmp.ne.s32.totalorder %s126, %s127
    %p136 = scmp.eq.s32.totalorder %s22, 0
    %p137 = por %p135, %p136
    %p138 = scmp.ne.s32.totalorder %s126, %s127
    %p139 = scmp.eq.s32.totalorder %s23, 1
    %p140 = por %p138, %p139
    %p142 = scmp.ne.s32.totalorder %s127, %s141
    %p143 = scmp.eq.s32.totalorder %s23, 0
    %p144 = por %p142, %p143
    %s146 = sadd.s32 %s145, 1
    %p149 = scmp.eq.s32.totalorder %s17, 1
    %p150 = scmp.ne.s32.totalorder %s145, %s147
    %p151 = scmp.eq.s32.totalorder %s17, 0
    %p152 = por %p150, %p151
    %p153 = scmp.ne.s32.totalorder %s145, %s147
    %p154 = scmp.eq.s32.totalorder %s22, 1
    %p155 = por %p153, %p154
    %p156 = scmp.ne.s32.totalorder %s147, %s148
    %p157 = scmp.eq.s32.totalorder %s22, 0
    %p158 = por %p156, %p157
    %p159 = scmp.ne.s32.totalorder %s147, %s148
    %p160 = scmp.eq.s32.totalorder %s23, 1
    %p161 = por %p159, %p160
    %p163 = scmp.ne.s32.totalorder %s148, %s162
    %p164 = scmp.eq.s32.totalorder %s23, 0
    %p165 = por %p163, %p164
    %s167 = sadd.s32 %s166, 1
    %p170 = scmp.eq.s32.totalorder %s17, 1
    %p171 = scmp.ne.s32.totalorder %s166, %s168
    %p172 = scmp.eq.s32.totalorder %s17, 0
    %p173 = por %p171, %p172
    %p174 = scmp.ne.s32.totalorder %s166, %s168
    %p175 = scmp.eq.s32.totalorder %s22, 1
    %p176 = por %p174, %p175
    %p177 = scmp.ne.s32.totalorder %s168, %s169
    %p178 = scmp.eq.s32.totalorder %s22, 0
    %p179 = por %p177, %p178
    %p180 = scmp.ne.s32.totalorder %s168, %s169
    %p181 = scmp.eq.s32.totalorder %s23, 1
    %p182 = por %p180, %p181
    %p184 = scmp.ne.s32.totalorder %s169, %s183
    %p185 = scmp.eq.s32.totalorder %s23, 0
    %p186 = por %p184, %p185
    %s188 = sadd.s32 %s187, 1
    %p191 = scmp.eq.s32.totalorder %s17, 1
    %p192 = scmp.ne.s32.totalorder %s187, %s189
    %p193 = scmp.eq.s32.totalorder %s17, 0
    %p194 = por %p192, %p193
    %p195 = scmp.ne.s32.totalorder %s187, %s189
    %p196 = scmp.eq.s32.totalorder %s22, 1
    %p197 = por %p195, %p196
    %p198 = scmp.ne.s32.totalorder %s189, %s190
    %p199 = scmp.eq.s32.totalorder %s22, 0
    %p200 = por %p198, %p199
    %p201 = scmp.ne.s32.totalorder %s189, %s190
    %p202 = scmp.eq.s32.totalorder %s23, 1
    %p203 = por %p201, %p202
    %p205 = scmp.ne.s32.totalorder %s190, %s204
    %p206 = scmp.eq.s32.totalorder %s23, 0
    %p207 = por %p205, %p206
    %s209 = sadd.s32 %s208, 1
    %p212 = scmp.eq.s32.totalorder %s17, 1
    %p213 = scmp.ne.s32.totalorder %s208, %s210
    %p214 = scmp.eq.s32.totalorder %s17, 0
    %p215 = por %p213, %p214
    %p216 = scmp.ne.s32.totalorder %s208, %s210
    %p217 = scmp.eq.s32.totalorder %s22, 1
    %p218 = por %p216, %p217
    %p219 = scmp.ne.s32.totalorder %s210, %s211
    %p220 = scmp.eq.s32.totalorder %s22, 0
    %p221 = por %p219, %p220
    %p222 = scmp.ne.s32.totalorder %s210, %s211
    %p223 = scmp.eq.s32.totalorder %s23, 1
    %p224 = por %p222, %p223
    %p226 = scmp.ne.s32.totalorder %s211, %s225
    %p227 = scmp.eq.s32.totalorder %s23, 0
    %p228 = por %p226, %p227
    %s230 = sadd.s32 %s229, 1
    %p233 = scmp.eq.s32.totalorder %s17, 1
    %p234 = scmp.ne.s32.totalorder %s229, %s231
    %p235 = scmp.eq.s32.totalorder %s17, 0
    %p236 = por %p234, %p235
    %p237 = scmp.ne.s32.totalorder %s229, %s231
    %p238 = scmp.eq.s32.totalorder %s22, 1
    %p239 = por %p237, %p238
    %p240 = scmp.ne.s32.totalorder %s231, %s232
    %p241 = scmp.eq.s32.totalorder %s22, 0
    %p242 = por %p240, %p241
    %p243 = scmp.ne.s32.totalorder %s231, %s232
    %p244 = scmp.eq.s32.totalorder %s23, 1
    %p245 = por %p243, %p244
    %p247 = scmp.ne.s32.totalorder %s232, %s246
    %p248 = scmp.eq.s32.totalorder %s23, 0
    %p249 = por %p247, %p248
    %s250 = ssub.s32 %s17, %s24
    %p251 = scmp.eq.s32.totalorder %s250, 0
    %s253 = sadd.s32 %s252, 1
    %s254 = scalar_select %p251, %s252, %s253
    %p257 = pneg %p251
    %p258 = scmp.eq.s32.totalorder %s17, 1
    %p259 = por %p257, %p258
    %p260 = scmp.ne.s32.totalorder %s252, %s255
    %p261 = scmp.eq.s32.totalorder %s17, 0
    %p262 = por %p260, %p261
    %p263 = scmp.ne.s32.totalorder %s252, %s255
    %p264 = scmp.eq.s32.totalorder %s22, 1
    %p265 = por %p263, %p264
    %p266 = scmp.ne.s32.totalorder %s255, %s256
    %p267 = scmp.eq.s32.totalorder %s22, 0
    %p268 = por %p266, %p267
    %p269 = scmp.ne.s32.totalorder %s255, %s256
    %p270 = scmp.eq.s32.totalorder %s23, 1
    %p271 = por %p269, %p270
    %p273 = scmp.ne.s32.totalorder %s256, %s272
    %p274 = scmp.eq.s32.totalorder %s23, 0
    %p275 = por %p273, %p274
    %p276 = scmp.le.s32.totalorder 1, %s17
    %p277 = scmp.lt.s32.totalorder %s17, 3
    %p278 = pnand %p276, %p277
    %p279 = pneg %p278
    // Predicated region
    $region9: #{decoder.8} parent=5 // pred_check
      _
    $region10: #{decoder.8} parent=5 // pred_check_branch
      %281 = sbr.rel (%p278) target = $region12
    $region11: #{decoder.8} parent=5 // pred_region
      %s282 = ssub.s32 %s17, 1
      // Predicated region
      $region13: #{decoder.8} parent=11 // pred_check
        %p283 = pneg %p116
      $region14: #{decoder.8} parent=11 // pred_check_branch
        %285 = sbr.rel (%p283) target = $region16
      $region15: #{decoder.8} parent=11 // pred_region
        _
      $region16: #{decoder.8} parent=11 // pred_fallthru
        _
      // Predicated region
      $region17: #{decoder.8} parent=11 // pred_check
        %p286 = pneg %p137
      $region18: #{decoder.8} parent=11 // pred_check_branch
        %288 = sbr.rel (%p286) target = $region20
      $region19: #{decoder.8} parent=11 // pred_region
        _
      $region20: #{decoder.8} parent=11 // pred_fallthru
        _
      // Predicated region
      $region21: #{decoder.8} parent=11 // pred_check
        %p289 = pneg %p158
      $region22: #{decoder.8} parent=11 // pred_check_branch
        %291 = sbr.rel (%p289) target = $region24
      $region23: #{decoder.8} parent=11 // pred_region
        _
      $region24: #{decoder.8} parent=11 // pred_fallthru
        _
      // Predicated region
      $region25: #{decoder.8} parent=11 // pred_check
        %p292 = pneg %p179
      $region26: #{decoder.8} parent=11 // pred_check_branch
        %294 = sbr.rel (%p292) target = $region28
      $region27: #{decoder.8} parent=11 // pred_region
        _
      $region28: #{decoder.8} parent=11 // pred_fallthru
        _
      // Predicated region
      $region29: #{decoder.8} parent=11 // pred_check
        %p295 = pneg %p200
      $region30: #{decoder.8} parent=11 // pred_check_branch
        %297 = sbr.rel (%p295) target = $region32
      $region31: #{decoder.8} parent=11 // pred_region
        _
      $region32: #{decoder.8} parent=11 // pred_fallthru
        _
      // Predicated region
      $region33: #{decoder.8} parent=11 // pred_check
        %p298 = pneg %p221
      $region34: #{decoder.8} parent=11 // pred_check_branch
        %300 = sbr.rel (%p298) target = $region36
      $region35: #{decoder.8} parent=11 // pred_region
        _
      $region36: #{decoder.8} parent=11 // pred_fallthru
        _
      // Predicated region
      $region37: #{decoder.8} parent=11 // pred_check
        %p301 = pneg %p242
      $region38: #{decoder.8} parent=11 // pred_check_branch
        %303 = sbr.rel (%p301) target = $region40
      $region39: #{decoder.8} parent=11 // pred_region
        _
      $region40: #{decoder.8} parent=11 // pred_fallthru
        _
    $region12: #{decoder.8} parent=5 // pred_fallthru
      _
    %p304 = scmp.lt.s32.totalorder %s17, 2
    // Predicated region
    $region41: #{decoder.8} parent=5 // pred_check
      %p305 = pneg %p304
    $region42: #{decoder.8} parent=5 // pred_check_branch
      %307 = sbr.rel (%p305) target = $region44
    $region43: #{decoder.8} parent=5 // pred_region
      // Predicated region
      $region45: #{decoder.8} parent=43 // pred_check
        %p308 = pneg %p37
      $region46: #{decoder.8} parent=43 // pred_check_branch
        %310 = sbr.rel (%p308) target = $region48
      $region47: #{decoder.8} parent=43 // pred_region
        %p311 = scmp.lt.s32.totalorder %s17, 1
        %s312 = scalar_select %p311, %s17, 1
        %s313 = smul.addr %s312, 8
        %s314 = scalar_lea.vmem %s0, %s313
      $region48: #{decoder.8} parent=43 // pred_fallthru
        _
      // Predicated region
      $region49: #{decoder.8} parent=43 // pred_check
        %p315 = pneg %p63
      $region50: #{decoder.8} parent=43 // pred_check_branch
        %317 = sbr.rel (%p315) target = $region52
      $region51: #{decoder.8} parent=43 // pred_region
        %p318 = scmp.lt.s32.totalorder %s17, 1
        %s319 = scalar_select %p318, %s17, 1
        %s320 = smul.addr %s319, 2
        %s321 = smul.addr %s320, 8
        %s322 = scalar_lea.vmem %s1, %s321
      $region52: #{decoder.8} parent=43 // pred_fallthru
        _
      // Predicated region
      $region53: #{decoder.8} parent=43 // pred_check
        %p323 = pneg %p89
      $region54: #{decoder.8} parent=43 // pred_check_branch
        %325 = sbr.rel (%p323) target = $region56
      $region55: #{decoder.8} parent=43 // pred_region
        %p326 = scmp.lt.s32.totalorder %s17, 1
        %s327 = scalar_select %p326, %s17, 1
        %s328 = scalar_lea.vmem %s2, %s327
      $region56: #{decoder.8} parent=43 // pred_fallthru
        _
    $region44: #{decoder.8} parent=5 // pred_fallthru
      _
    %p329 = scmp.le.s32.totalorder 1, %s17
    %p330 = scmp.lt.s32.totalorder %s17, 3
    %p331 = pnand %p329, %p330
    %p332 = pneg %p331
    // Predicated region
    $region57: #{decoder.8} parent=5 // pred_check
      _
    $region58: #{decoder.8} parent=5 // pred_check_branch
      %334 = sbr.rel (%p331) target = $region60
    $region59: #{decoder.8} parent=5 // pred_region
      %s335 = ssub.s32 %s17, 1
      %p336 = scmp.lt.s32.totalorder %s22, 1
      %s337 = scalar_select %p336, %s22, 1
      %s338 = smul.addr %s337, 8
      %s339 = scalar_lea.vmem %s0, %s338
      %p340 = pneg %p43
      %p341 = pneg %p40
      %p342 = scmp.lt.s32.totalorder %s22, 1
      %s343 = scalar_select %p342, %s22, 1
      %s344 = smul.addr %s343, 2
      %s345 = smul.addr %s344, 8
      %s346 = scalar_lea.vmem %s1, %s345
      %p347 = pneg %p69
      %p348 = pneg %p66
      %p349 = scmp.lt.s32.totalorder %s22, 1
      %s350 = scalar_select %p349, %s22, 1
      %s351 = scalar_lea.vmem %s2, %s350
      %p352 = pneg %p95
      %p353 = pneg %p92
      %p354 = pneg %p116
      %p355 = pneg %p113
      %p356 = pneg %p137
      %p357 = pneg %p134
      %p358 = pneg %p158
      %p359 = pneg %p155
      %p360 = pneg %p179
      %p361 = pneg %p176
      %p362 = pneg %p200
      %p363 = pneg %p197
      %p364 = pneg %p221
      %p365 = pneg %p218
      %p366 = pneg %p242
      %p367 = pneg %p239
      %p368 = pneg %p268
      %p369 = pneg %p265
      %p370 = scmp.lt.s32.totalorder %s22, 1
      %s371 = scalar_select %p370, %s22, 1
      %s372 = smul.addr %s371, 8
      %s373 = scalar_lea.vmem %s10, %s372
      %p374 = scmp.lt.s32.totalorder %s22, 1
      %s375 = scalar_select %p374, %s22, 1
      %s376 = smul.addr %s375, 8
      %s377 = scalar_lea.vmem %s0, %s376
      %p378 = scmp.lt.s32.totalorder %s22, 1
      %s379 = scalar_select %p378, %s22, 1
      %s380 = smul.addr %s379, 2
      %s381 = smul.addr %s380, 8
      %s382 = scalar_lea.vmem %s1, %s381
      %p383 = scmp.lt.s32.totalorder %s22, 1
      %s384 = scalar_select %p383, %s22, 1
      %s385 = scalar_lea.vmem %s2, %s384
      %p386 = scmp.lt.s32.totalorder %s22, 1
      %s387 = scalar_select %p386, %s22, 1
      %s388 = smul.addr %s387, 8
      %s389 = scalar_lea.vmem %s10, %s388
      %v391 = vld [vmem:[%s377] sm:$0xff]
      %s392 = sld [smem:[#allocation3]]
      %v393 = vmul.f32 %v391, %v391
      %vm394 = vcmask 261120
      %v395 = vsel %vm394, %v393, 0.0
      %396 = vadd.xlane.f32.xlu0 %v395
      %v397 = vpop.xlane.xlu0 %396
      %v398 = vrsqrt.pop %v397
      %v399 = vmul.f32 %v397, %v398
      %vm400 = vcmp.eq.f32.partialorder %v397, inf
      %v401 = vsel %vm400, %v397, %v399
      %vm402 = vcmp.eq.f32.partialorder %v397, 0.0
      %v403 = vand.u32 %v397, 2147483648
      %v404 = vsel %vm402, %v403, %v401
      %v405 = vmax.f32 %v404, 1e-05
      %v406 = vstv %s392
      %v407 = vrcp.pop %v405
      %v408 = vmul.f32 %v406, %v407
      %v409 = vmul.f32 %v391, %v408
      %v410 = vpack.c.bf16 %v409, %v409
      %v411 = vld [vmem:[%s382] sm:$0xff]
      %v412 = vld [vmem:[%s382 + $0x8] sm:$0x3]
      %v413 = vpack.c.bf16 %v412, %v411
      %v414 = vld [vmem:[%s3] sm:$0xf]
      %v415 = vld [vmem:[%s3 + $0x4] sm:$0xf]
      %v416 = vld [vmem:[%s3 + $0x8] sm:$0xf]
      %v417 = vld [vmem:[%s3 + $0xc] sm:$0xf]
      %v418 = vld [vmem:[%s4] sm:$0x1]
      %v420 = vlaneseq
      %v421 = vshrl.u32 %v420, 7
      %v422 = vsub.s32 0, %v421
      %v423 = vrot.slane %v418, %v422
      %v429 = vunpack.c.l.b16 %v414
      %v430 = vunpack.c.l.b16 %v415
      %v431 = vunpack.c.l.b16 %v416
      %v432 = vunpack.c.l.b16 %v417
      %v433 = vpack.c.b16 %v430, %v429
      %v434 = vpack.c.b16 %v432, %v431
      %v438 = vsel %vm394, %v410, 0
      %440 = vmatprep.subr.bf16.mxu0 0
      %441 = vmatpush1.bf16.msra.mxu0 0
      %442 = vmatprep.subr.bf16.mxu0 0
      %443 = vmatpush1.bf16.msra.mxu0 0
      %444 = vmatprep.subr.bf16.mxu0 0
      %445 = vmatpush1.bf16.msra.mxu0 0
      %446 = vmatprep.subr.bf16.mxu0 0
      %447 = vmatpush1.bf16.msra.mxu0 0
      %448 = vmatprep.subr.bf16.mxu0 0
      %449 = vmatpush1.bf16.msra.mxu0 0
      %450 = vmatprep.subr.bf16.mxu0 0
      %451 = vmatpush1.bf16.msra.mxu0 0
      %452 = vmatprep.subr.bf16.mxu0 0
      %453 = vmatpush1.bf16.msra.mxu0 %v434
      %454 = vmatprep.subr.bf16.mxu0 0
      %455 = vmatpush1.bf16.msra.mxu0 %v433
      %456 = vmatprep.subr.bf16.mxu0 0
      %457 = vmatpush2.bf16.msra.mxu0 0
      %458 = vmatprep.subr.bf16.mxu0 0
      %459 = vmatpush2.bf16.msra.mxu0 0
      %460 = vmatprep.subr.bf16.mxu0 0
      %461 = vmatpush2.bf16.msra.mxu0 0
      %462 = vmatprep.subr.bf16.mxu0 0
      %463 = vmatpush2.bf16.msra.mxu0 0
      %464 = vmatprep.subr.bf16.mxu0 0
      %465 = vmatpush2.bf16.msra.mxu0 0
      %466 = vmatprep.subr.bf16.mxu0 0
      %467 = vmatpush2.bf16.msra.mxu0 0
      %468 = vmatprep.subr.bf16.mxu0 0
      %469 = vmatpush2.bf16.msra.mxu0 0
      %470 = vmatprep.subr.bf16.mxu0 0
      %471 = vmatpush2.bf16.msra.mxu0 0
      %472 = vmatprep.mubr.bf16.mxu0 0
      %473 = vmatmul.mubr.bf16.gmra.mxu0 %v438
      %v474 = vpop.f32.mrf.mxu0
      %v475 = vadd.f32 %v423, %v474
      %v476 = vpop.f32.mrf.mxu0
      %v477 = vpop.f32.mrf.mxu0
      %v478 = vpop.f32.mrf.mxu0
      %479 = vdwg.mxu0
      %v480 = vld [vmem:[%s5] sm:$0xf]
      %v481 = vld [vmem:[%s5 + $0x4] sm:$0xf]
      %v482 = vld [vmem:[%s5 + $0x8] sm:$0xf]
      %v483 = vld [vmem:[%s5 + $0xc] sm:$0xf]
      %v484 = vld [vmem:[%s6] sm:$0x1]
      %v486 = vlaneseq
      %v487 = vshrl.u32 %v486, 7
      %v488 = vsub.s32 0, %v487
      %v489 = vrot.slane %v484, %v488
      %v495 = vunpack.c.l.b16 %v480
      %v496 = vunpack.c.l.b16 %v481
      %v497 = vunpack.c.l.b16 %v482
      %v498 = vunpack.c.l.b16 %v483
      %v499 = vpack.c.b16 %v496, %v495
      %v500 = vpack.c.b16 %v498, %v497
      %v504 = vsel %vm394, %v413, 0
      %506 = vmatprep.subr.bf16.mxu0 0
      %507 = vmatpush1.bf16.msra.mxu0 0
      %508 = vmatprep.subr.bf16.mxu0 0
      %509 = vmatpush1.bf16.msra.mxu0 0
      %510 = vmatprep.subr.bf16.mxu0 0
      %511 = vmatpush1.bf16.msra.mxu0 0
      %512 = vmatprep.subr.bf16.mxu0 0
      %513 = vmatpush1.bf16.msra.mxu0 0
      %514 = vmatprep.subr.bf16.mxu0 0
      %515 = vmatpush1.bf16.msra.mxu0 0
      %516 = vmatprep.subr.bf16.mxu0 0
      %517 = vmatpush1.bf16.msra.mxu0 0
      %518 = vmatprep.subr.bf16.mxu0 0
      %519 = vmatpush1.bf16.msra.mxu0 %v500
      %520 = vmatprep.subr.bf16.mxu0 0
      %521 = vmatpush1.bf16.msra.mxu0 %v499
      %522 = vmatprep.subr.bf16.mxu0 0
      %523 = vmatpush2.bf16.msra.mxu0 0
      %524 = vmatprep.subr.bf16.mxu0 0
      %525 = vmatpush2.bf16.msra.mxu0 0
      %526 = vmatprep.subr.bf16.mxu0 0
      %527 = vmatpush2.bf16.msra.mxu0 0
      %528 = vmatprep.subr.bf16.mxu0 0
      %529 = vmatpush2.bf16.msra.mxu0 0
      %530 = vmatprep.subr.bf16.mxu0 0
      %531 = vmatpush2.bf16.msra.mxu0 0
      %532 = vmatprep.subr.bf16.mxu0 0
      %533 = vmatpush2.bf16.msra.mxu0 0
      %534 = vmatprep.subr.bf16.mxu0 0
      %535 = vmatpush2.bf16.msra.mxu0 0
      %536 = vmatprep.subr.bf16.mxu0 0
      %537 = vmatpush2.bf16.msra.mxu0 0
      %538 = vmatprep.mubr.bf16.mxu0 0
      %539 = vmatmul.mubr.bf16.gmra.mxu0 %v504
      %v540 = vpop.f32.mrf.mxu0
      %v541 = vadd.f32 %v489, %v540
      %v542 = vpop.f32.mrf.mxu0
      %v543 = vpop.f32.mrf.mxu0
      %v544 = vadd.f32 %v489, %v543
      %v545 = vpop.f32.mrf.mxu0
      %546 = vdwg.mxu0
      %v547 = vld [vmem:[%s385] sm:$0x1]
      %v548 = vpack.c.bf16 %v475, %v475
      %v549 = vpack.c.bf16 %v544, %v541
      %v551 = vlaneseq
      %v552 = vshrl.u32 %v551, 7
      %v553 = vsub.s32 0, %v552
      %v554 = vrot.slane %v547, %v553
      %vm556 = vcmask 64512
      %v558 = vsel %vm556, %v548, 0
      %v561 = vsel %vm556, %v549, 0
      %563 = vmatprep.subr.bf16.mxu0 0
      %564 = vmatpush1.bf16.xpose.msra.mxu0 0
      %565 = vmatprep.subr.bf16.mxu0 0
      %566 = vmatpush1.bf16.xpose.msra.mxu0 0
      %567 = vmatprep.subr.bf16.mxu0 0
      %568 = vmatpush1.bf16.xpose.msra.mxu0 0
      %569 = vmatprep.subr.bf16.mxu0 0
      %570 = vmatpush1.bf16.xpose.msra.mxu0 0
      %571 = vmatprep.subr.bf16.mxu0 0
      %572 = vmatpush1.bf16.xpose.msra.mxu0 0
      %573 = vmatprep.subr.bf16.mxu0 0
      %574 = vmatpush1.bf16.xpose.msra.mxu0 0
      %575 = vmatprep.subr.bf16.mxu0 0
      %576 = vmatpush1.bf16.xpose.msra.mxu0 0
      %577 = vmatprep.subr.bf16.mxu0 0
      %578 = vmatpush1.bf16.xpose.msra.mxu0 %v561
      %579 = vmatprep.subr.bf16.mxu0 0
      %580 = vmatpush2.bf16.xpose.msra.mxu0 0
      %581 = vmatprep.subr.bf16.mxu0 0
      %582 = vmatpush2.bf16.xpose.msra.mxu0 0
      %583 = vmatprep.subr.bf16.mxu0 0
      %584 = vmatpush2.bf16.xpose.msra.mxu0 0
      %585 = vmatprep.subr.bf16.mxu0 0
      %586 = vmatpush2.bf16.xpose.msra.mxu0 0
      %587 = vmatprep.subr.bf16.mxu0 0
      %588 = vmatpush2.bf16.xpose.msra.mxu0 0
      %589 = vmatprep.subr.bf16.mxu0 0
      %590 = vmatpush2.bf16.xpose.msra.mxu0 0
      %591 = vmatprep.subr.bf16.mxu0 0
      %592 = vmatpush2.bf16.xpose.msra.mxu0 0
      %593 = vmatprep.subr.bf16.mxu0 0
      %594 = vmatpush2.bf16.xpose.msra.mxu0 0
      %595 = vmatprep.mubr.bf16.mxu0 0
      %596 = vmatmul.mubr.bf16.gmra.mxu0 %v558
      %v597 = vpop.f32.mrf.mxu0
      %v598 = vadd.f32 %v554, %v597
      %v599 = vpop.f32.mrf.mxu0
      %v600 = vpop.f32.mrf.mxu0
      %v601 = vpop.f32.mrf.mxu0
      %602 = vdwg.mxu0
      %vm603 = vcmask 80896
      %v604 = vsel %vm603, %v598, -inf
      %605 = vmax.xlane.f32.xlu0 %v604
      %v606 = vpop.xlane.xlu0 %605
      %v607 = vsub.f32 %v598, %v606
      %v608 = vmul.f32 %v607, 1.442695
      %v609 = vpow.pop %v608
      %v610 = vsel %vm603, %v609, 0.0
      %611 = vadd.xlane.f32.xlu0 %v610
      %v612 = vpop.xlane.xlu0 %611
      %v613 = vpack.c.bf16 %v609, %v609
      %615 = vrot.lane.b32.xlu0 %v549, 96
      %v616 = vpop.permute.xlu0 %615
      %v618 = vsel %vm603, %v613, 0
      %vm620 = vcmask 1044480
      %v622 = vsel %vm620, %v616, 0
      %624 = vmatprep.subr.bf16.mxu0 0
      %625 = vmatpush1.bf16.msra.mxu0 0
      %626 = vmatprep.subr.bf16.mxu0 0
      %627 = vmatpush1.bf16.msra.mxu0 0
      %628 = vmatprep.subr.bf16.mxu0 0
      %629 = vmatpush1.bf16.msra.mxu0 0
      %630 = vmatprep.subr.bf16.mxu0 0
      %631 = vmatpush1.bf16.msra.mxu0 0
      %632 = vmatprep.subr.bf16.mxu0 0
      %633 = vmatpush1.bf16.msra.mxu0 0
      %634 = vmatprep.subr.bf16.mxu0 0
      %635 = vmatpush1.bf16.msra.mxu0 0
      %636 = vmatprep.subr.bf16.mxu0 0
      %637 = vmatpush1.bf16.msra.mxu0 0
      %638 = vmatprep.subr.bf16.mxu0 0
      %639 = vmatpush1.bf16.msra.mxu0 %v622
      %640 = vmatprep.subr.bf16.mxu0 0
      %641 = vmatpush2.bf16.msra.mxu0 0
      %642 = vmatprep.subr.bf16.mxu0 0
      %643 = vmatpush2.bf16.msra.mxu0 0
      %644 = vmatprep.subr.bf16.mxu0 0
      %645 = vmatpush2.bf16.msra.mxu0 0
      %646 = vmatprep.subr.bf16.mxu0 0
      %647 = vmatpush2.bf16.msra.mxu0 0
      %648 = vmatprep.subr.bf16.mxu0 0
      %649 = vmatpush2.bf16.msra.mxu0 0
      %650 = vmatprep.subr.bf16.mxu0 0
      %651 = vmatpush2.bf16.msra.mxu0 0
      %652 = vmatprep.subr.bf16.mxu0 0
      %653 = vmatpush2.bf16.msra.mxu0 0
      %654 = vmatprep.subr.bf16.mxu0 0
      %655 = vmatpush2.bf16.msra.mxu0 0
      %656 = vmatprep.mubr.bf16.mxu0 0
      %657 = vmatmul.mubr.bf16.gmra.mxu0 %v618
      %v658 = vpop.f32.mrf.mxu0
      %v659 = vadd.f32 0.0, %v658
      %v660 = vpop.f32.mrf.mxu0
      %v661 = vpop.f32.mrf.mxu0
      %v662 = vpop.f32.mrf.mxu0
      %663 = vdwg.mxu0
      %v664 = vrcp.pop %v612
      %v665 = vmul.f32 %v659, %v664
      %666 = vst.msk [vmem:[#allocation2] sm:$0xff] %vm556, %v665
      %668 = vrot.lane.b32.xlu0 %v548, 120
      %v669 = vpop.permute.xlu0 %668
      %670 = vrot.lane.b32.xlu0 %v549, 120
      %v671 = vpop.permute.xlu0 %670
      %v673 = vsel %vm556, %v669, 0
      %v676 = vsel %vm556, %v671, 0
      %678 = vmatprep.subr.bf16.mxu0 0
      %679 = vmatpush1.bf16.xpose.msra.mxu0 0
      %680 = vmatprep.subr.bf16.mxu0 0
      %681 = vmatpush1.bf16.xpose.msra.mxu0 0
      %682 = vmatprep.subr.bf16.mxu0 0
      %683 = vmatpush1.bf16.xpose.msra.mxu0 0
      %684 = vmatprep.subr.bf16.mxu0 0
      %685 = vmatpush1.bf16.xpose.msra.mxu0 0
      %686 = vmatprep.subr.bf16.mxu0 0
      %687 = vmatpush1.bf16.xpose.msra.mxu0 0
      %688 = vmatprep.subr.bf16.mxu0 0
      %689 = vmatpush1.bf16.xpose.msra.mxu0 0
      %690 = vmatprep.subr.bf16.mxu0 0
      %691 = vmatpush1.bf16.xpose.msra.mxu0 0
      %692 = vmatprep.subr.bf16.mxu0 0
      %693 = vmatpush1.bf16.xpose.msra.mxu0 %v676
      %694 = vmatprep.subr.bf16.mxu0 0
      %695 = vmatpush2.bf16.xpose.msra.mxu0 0
      %696 = vmatprep.subr.bf16.mxu0 0
      %697 = vmatpush2.bf16.xpose.msra.mxu0 0
      %698 = vmatprep.subr.bf16.mxu0 0
      %699 = vmatpush2.bf16.xpose.msra.mxu0 0
      %700 = vmatprep.subr.bf16.mxu0 0
      %701 = vmatpush2.bf16.xpose.msra.mxu0 0
      %702 = vmatprep.subr.bf16.mxu0 0
      %703 = vmatpush2.bf16.xpose.msra.mxu0 0
      %704 = vmatprep.subr.bf16.mxu0 0
      %705 = vmatpush2.bf16.xpose.msra.mxu0 0
      %706 = vmatprep.subr.bf16.mxu0 0
      %707 = vmatpush2.bf16.xpose.msra.mxu0 0
      %708 = vmatprep.subr.bf16.mxu0 0
      %709 = vmatpush2.bf16.xpose.msra.mxu0 0
      %710 = vmatprep.mubr.bf16.mxu0 0
      %711 = vmatmul.mubr.bf16.gmra.mxu0 %v673
      %v712 = vpop.f32.mrf.mxu0
      %v713 = vadd.f32 %v554, %v712
      %v714 = vpop.f32.mrf.mxu0
      %v715 = vpop.f32.mrf.mxu0
      %v716 = vpop.f32.mrf.mxu0
      %717 = vdwg.mxu0
      %v718 = vsel %vm603, %v713, -inf
      %719 = vmax.xlane.f32.xlu0 %v718
      %v720 = vpop.xlane.xlu0 %719
      %v721 = vsub.f32 %v713, %v720
      %v722 = vmul.f32 %v721, 1.442695
      %v723 = vpow.pop %v722
      %v724 = vsel %vm603, %v723, 0.0
      %725 = vadd.xlane.f32.xlu0 %v724
      %v726 = vpop.xlane.xlu0 %725
      %v727 = vpack.c.bf16 %v723, %v723
      %728 = vrot.lane.b32.xlu0 %v549, 88
      %v729 = vpop.permute.xlu0 %728
      %v731 = vsel %vm603, %v727, 0
      %v734 = vsel %vm620, %v729, 0
      %736 = vmatprep.subr.bf16.mxu0 0
      %737 = vmatpush1.bf16.msra.mxu0 0
      %738 = vmatprep.subr.bf16.mxu0 0
      %739 = vmatpush1.bf16.msra.mxu0 0
      %740 = vmatprep.subr.bf16.mxu0 0
      %741 = vmatpush1.bf16.msra.mxu0 0
      %742 = vmatprep.subr.bf16.mxu0 0
      %743 = vmatpush1.bf16.msra.mxu0 0
      %744 = vmatprep.subr.bf16.mxu0 0
      %745 = vmatpush1.bf16.msra.mxu0 0
      %746 = vmatprep.subr.bf16.mxu0 0
      %747 = vmatpush1.bf16.msra.mxu0 0
      %748 = vmatprep.subr.bf16.mxu0 0
      %749 = vmatpush1.bf16.msra.mxu0 0
      %750 = vmatprep.subr.bf16.mxu0 0
      %751 = vmatpush1.bf16.msra.mxu0 %v734
      %752 = vmatprep.subr.bf16.mxu0 0
      %753 = vmatpush2.bf16.msra.mxu0 0
      %754 = vmatprep.subr.bf16.mxu0 0
      %755 = vmatpush2.bf16.msra.mxu0 0
      %756 = vmatprep.subr.bf16.mxu0 0
      %757 = vmatpush2.bf16.msra.mxu0 0
      %758 = vmatprep.subr.bf16.mxu0 0
      %759 = vmatpush2.bf16.msra.mxu0 0
      %760 = vmatprep.subr.bf16.mxu0 0
      %761 = vmatpush2.bf16.msra.mxu0 0
      %762 = vmatprep.subr.bf16.mxu0 0
      %763 = vmatpush2.bf16.msra.mxu0 0
      %764 = vmatprep.subr.bf16.mxu0 0
      %765 = vmatpush2.bf16.msra.mxu0 0
      %766 = vmatprep.subr.bf16.mxu0 0
      %767 = vmatpush2.bf16.msra.mxu0 0
      %768 = vmatprep.mubr.bf16.mxu0 0
      %769 = vmatmul.mubr.bf16.gmra.mxu0 %v731
      %v770 = vpop.f32.mrf.mxu0
      %v771 = vadd.f32 0.0, %v770
      %v772 = vpop.f32.mrf.mxu0
      %v773 = vpop.f32.mrf.mxu0
      %v774 = vpop.f32.mrf.mxu0
      %775 = vdwg.mxu0
      %v776 = vrcp.pop %v726
      %v777 = vmul.f32 %v771, %v776
      %779 = vrot.lane.b32.xlu0 %v777, 8
      %v780 = vpop.permute.xlu0 %779
      %vm782 = vcmask 130112
      %783 = vst.msk [vmem:[#allocation2] sm:$0xff] %vm782, %v780
      %784 = vrot.lane.b32.xlu0 %v548, 112
      %v785 = vpop.permute.xlu0 %784
      %786 = vrot.lane.b32.xlu0 %v549, 112
      %v787 = vpop.permute.xlu0 %786
      %v789 = vsel %vm556, %v785, 0
      %v792 = vsel %vm556, %v787, 0
      %794 = vmatprep.subr.bf16.mxu0 0
      %795 = vmatpush1.bf16.xpose.msra.mxu0 0
      %796 = vmatprep.subr.bf16.mxu0 0
      %797 = vmatpush1.bf16.xpose.msra.mxu0 0
      %798 = vmatprep.subr.bf16.mxu0 0
      %799 = vmatpush1.bf16.xpose.msra.mxu0 0
      %800 = vmatprep.subr.bf16.mxu0 0
      %801 = vmatpush1.bf16.xpose.msra.mxu0 0
      %802 = vmatprep.subr.bf16.mxu0 0
      %803 = vmatpush1.bf16.xpose.msra.mxu0 0
      %804 = vmatprep.subr.bf16.mxu0 0
      %805 = vmatpush1.bf16.xpose.msra.mxu0 0
      %806 = vmatprep.subr.bf16.mxu0 0
      %807 = vmatpush1.bf16.xpose.msra.mxu0 0
      %808 = vmatprep.subr.bf16.mxu0 0
      %809 = vmatpush1.bf16.xpose.msra.mxu0 %v792
      %810 = vmatprep.subr.bf16.mxu0 0
      %811 = vmatpush2.bf16.xpose.msra.mxu0 0
      %812 = vmatprep.subr.bf16.mxu0 0
      %813 = vmatpush2.bf16.xpose.msra.mxu0 0
      %814 = vmatprep.subr.bf16.mxu0 0
      %815 = vmatpush2.bf16.xpose.msra.mxu0 0
      %816 = vmatprep.subr.bf16.mxu0 0
      %817 = vmatpush2.bf16.xpose.msra.mxu0 0
      %818 = vmatprep.subr.bf16.mxu0 0
      %819 = vmatpush2.bf16.xpose.msra.mxu0 0
      %820 = vmatprep.subr.bf16.mxu0 0
      %821 = vmatpush2.bf16.xpose.msra.mxu0 0
      %822 = vmatprep.subr.bf16.mxu0 0
      %823 = vmatpush2.bf16.xpose.msra.mxu0 0
      %824 = vmatprep.subr.bf16.mxu0 0
      %825 = vmatpush2.bf16.xpose.msra.mxu0 0
      %826 = vmatprep.mubr.bf16.mxu0 0
      %827 = vmatmul.mubr.bf16.gmra.mxu0 %v789
      %v828 = vpop.f32.mrf.mxu0
      %v829 = vadd.f32 %v554, %v828
      %v830 = vpop.f32.mrf.mxu0
      %v831 = vpop.f32.mrf.mxu0
      %v832 = vpop.f32.mrf.mxu0
      %833 = vdwg.mxu0
      %v834 = vsel %vm603, %v829, -inf
      %835 = vmax.xlane.f32.xlu0 %v834
      %v836 = vpop.xlane.xlu0 %835
      %v837 = vsub.f32 %v829, %v836
      %v838 = vmul.f32 %v837, 1.442695
      %v839 = vpow.pop %v838
      %v840 = vsel %vm603, %v839, 0.0
      %841 = vadd.xlane.f32.xlu0 %v840
      %v842 = vpop.xlane.xlu0 %841
      %v843 = vpack.c.bf16 %v839, %v839
      %844 = vrot.lane.b32.xlu0 %v549, 80
      %v845 = vpop.permute.xlu0 %844
      %v847 = vsel %vm603, %v843, 0
      %v850 = vsel %vm620, %v845, 0
      %852 = vmatprep.subr.bf16.mxu0 0
      %853 = vmatpush1.bf16.msra.mxu0 0
      %854 = vmatprep.subr.bf16.mxu0 0
      %855 = vmatpush1.bf16.msra.mxu0 0
      %856 = vmatprep.subr.bf16.mxu0 0
      %857 = vmatpush1.bf16.msra.mxu0 0
      %858 = vmatprep.subr.bf16.mxu0 0
      %859 = vmatpush1.bf16.msra.mxu0 0
      %860 = vmatprep.subr.bf16.mxu0 0
      %861 = vmatpush1.bf16.msra.mxu0 0
      %862 = vmatprep.subr.bf16.mxu0 0
      %863 = vmatpush1.bf16.msra.mxu0 0
      %864 = vmatprep.subr.bf16.mxu0 0
      %865 = vmatpush1.bf16.msra.mxu0 0
      %866 = vmatprep.subr.bf16.mxu0 0
      %867 = vmatpush1.bf16.msra.mxu0 %v850
      %868 = vmatprep.subr.bf16.mxu0 0
      %869 = vmatpush2.bf16.msra.mxu0 0
      %870 = vmatprep.subr.bf16.mxu0 0
      %871 = vmatpush2.bf16.msra.mxu0 0
      %872 = vmatprep.subr.bf16.mxu0 0
      %873 = vmatpush2.bf16.msra.mxu0 0
      %874 = vmatprep.subr.bf16.mxu0 0
      %875 = vmatpush2.bf16.msra.mxu0 0
      %876 = vmatprep.subr.bf16.mxu0 0
      %877 = vmatpush2.bf16.msra.mxu0 0
      %878 = vmatprep.subr.bf16.mxu0 0
      %879 = vmatpush2.bf16.msra.mxu0 0
      %880 = vmatprep.subr.bf16.mxu0 0
      %881 = vmatpush2.bf16.msra.mxu0 0
      %882 = vmatprep.subr.bf16.mxu0 0
      %883 = vmatpush2.bf16.msra.mxu0 0
      %884 = vmatprep.mubr.bf16.mxu0 0
      %885 = vmatmul.mubr.bf16.gmra.mxu0 %v847
      %v886 = vpop.f32.mrf.mxu0
      %v887 = vadd.f32 0.0, %v886
      %v888 = vpop.f32.mrf.mxu0
      %v889 = vpop.f32.mrf.mxu0
      %v890 = vpop.f32.mrf.mxu0
      %891 = vdwg.mxu0
      %v892 = vrcp.pop %v842
      %v893 = vmul.f32 %v887, %v892
      %895 = vrot.lane.b32.xlu0 %v893, 16
      %v896 = vpop.permute.xlu0 %895
      %vm898 = vcmask 195712
      %899 = vst.msk [vmem:[#allocation2] sm:$0xff] %vm898, %v896
      %900 = vrot.lane.b32.xlu0 %v548, 104
      %v901 = vpop.permute.xlu0 %900
      %902 = vrot.lane.b32.xlu0 %v549, 104
      %v903 = vpop.permute.xlu0 %902
      %v905 = vsel %vm556, %v901, 0
      %v908 = vsel %vm556, %v903, 0
      %910 = vmatprep.subr.bf16.mxu0 0
      %911 = vmatpush1.bf16.xpose.msra.mxu0 0
      %912 = vmatprep.subr.bf16.mxu0 0
      %913 = vmatpush1.bf16.xpose.msra.mxu0 0
      %914 = vmatprep.subr.bf16.mxu0 0
      %915 = vmatpush1.bf16.xpose.msra.mxu0 0
      %916 = vmatprep.subr.bf16.mxu0 0
      %917 = vmatpush1.bf16.xpose.msra.mxu0 0
      %918 = vmatprep.subr.bf16.mxu0 0
      %919 = vmatpush1.bf16.xpose.msra.mxu0 0
      %920 = vmatprep.subr.bf16.mxu0 0
      %921 = vmatpush1.bf16.xpose.msra.mxu0 0
      %922 = vmatprep.subr.bf16.mxu0 0
      %923 = vmatpush1.bf16.xpose.msra.mxu0 0
      %924 = vmatprep.subr.bf16.mxu0 0
      %925 = vmatpush1.bf16.xpose.msra.mxu0 %v908
      %926 = vmatprep.subr.bf16.mxu0 0
      %927 = vmatpush2.bf16.xpose.msra.mxu0 0
      %928 = vmatprep.subr.bf16.mxu0 0
      %929 = vmatpush2.bf16.xpose.msra.mxu0 0
      %930 = vmatprep.subr.bf16.mxu0 0
      %931 = vmatpush2.bf16.xpose.msra.mxu0 0
      %932 = vmatprep.subr.bf16.mxu0 0
      %933 = vmatpush2.bf16.xpose.msra.mxu0 0
      %934 = vmatprep.subr.bf16.mxu0 0
      %935 = vmatpush2.bf16.xpose.msra.mxu0 0
      %936 = vmatprep.subr.bf16.mxu0 0
      %937 = vmatpush2.bf16.xpose.msra.mxu0 0
      %938 = vmatprep.subr.bf16.mxu0 0
      %939 = vmatpush2.bf16.xpose.msra.mxu0 0
      %940 = vmatprep.subr.bf16.mxu0 0
      %941 = vmatpush2.bf16.xpose.msra.mxu0 0
      %942 = vmatprep.mubr.bf16.mxu0 0
      %943 = vmatmul.mubr.bf16.gmra.mxu0 %v905
      %v944 = vpop.f32.mrf.mxu0
      %v945 = vadd.f32 %v554, %v944
      %v946 = vpop.f32.mrf.mxu0
      %v947 = vpop.f32.mrf.mxu0
      %v948 = vpop.f32.mrf.mxu0
      %949 = vdwg.mxu0
      %v950 = vsel %vm603, %v945, -inf
      %951 = vmax.xlane.f32.xlu0 %v950
      %v952 = vpop.xlane.xlu0 %951
      %v953 = vsub.f32 %v945, %v952
      %v954 = vmul.f32 %v953, 1.442695
      %v955 = vpow.pop %v954
      %v956 = vsel %vm603, %v955, 0.0
      %957 = vadd.xlane.f32.xlu0 %v956
      %v958 = vpop.xlane.xlu0 %957
      %v959 = vpack.c.bf16 %v955, %v955
      %960 = vrot.lane.b32.xlu0 %v549, 72
      %v961 = vpop.permute.xlu0 %960
      %v963 = vsel %vm603, %v959, 0
      %v966 = vsel %vm620, %v961, 0
      %968 = vmatprep.subr.bf16.mxu0 0
      %969 = vmatpush1.bf16.msra.mxu0 0
      %970 = vmatprep.subr.bf16.mxu0 0
      %971 = vmatpush1.bf16.msra.mxu0 0
      %972 = vmatprep.subr.bf16.mxu0 0
      %973 = vmatpush1.bf16.msra.mxu0 0
      %974 = vmatprep.subr.bf16.mxu0 0
      %975 = vmatpush1.bf16.msra.mxu0 0
      %976 = vmatprep.subr.bf16.mxu0 0
      %977 = vmatpush1.bf16.msra.mxu0 0
      %978 = vmatprep.subr.bf16.mxu0 0
      %979 = vmatpush1.bf16.msra.mxu0 0
      %980 = vmatprep.subr.bf16.mxu0 0
      %981 = vmatpush1.bf16.msra.mxu0 0
      %982 = vmatprep.subr.bf16.mxu0 0
      %983 = vmatpush1.bf16.msra.mxu0 %v966
      %984 = vmatprep.subr.bf16.mxu0 0
      %985 = vmatpush2.bf16.msra.mxu0 0
      %986 = vmatprep.subr.bf16.mxu0 0
      %987 = vmatpush2.bf16.msra.mxu0 0
      %988 = vmatprep.subr.bf16.mxu0 0
      %989 = vmatpush2.bf16.msra.mxu0 0
      %990 = vmatprep.subr.bf16.mxu0 0
      %991 = vmatpush2.bf16.msra.mxu0 0
      %992 = vmatprep.subr.bf16.mxu0 0
      %993 = vmatpush2.bf16.msra.mxu0 0
      %994 = vmatprep.subr.bf16.mxu0 0
      %995 = vmatpush2.bf16.msra.mxu0 0
      %996 = vmatprep.subr.bf16.mxu0 0
      %997 = vmatpush2.bf16.msra.mxu0 0
      %998 = vmatprep.subr.bf16.mxu0 0
      %999 = vmatpush2.bf16.msra.mxu0 0
      %1000 = vmatprep.mubr.bf16.mxu0 0
      %1001 = vmatmul.mubr.bf16.gmra.mxu0 %v963
      %v1002 = vpop.f32.mrf.mxu0
      %v1003 = vadd.f32 0.0, %v1002
      %v1004 = vpop.f32.mrf.mxu0
      %v1005 = vpop.f32.mrf.mxu0
      %v1006 = vpop.f32.mrf.mxu0
      %1007 = vdwg.mxu0
      %v1008 = vrcp.pop %v958
      %v1009 = vmul.f32 %v1003, %v1008
      %1011 = vrot.lane.b32.xlu0 %v1009, 24
      %v1012 = vpop.permute.xlu0 %1011
      %vm1014 = vcmask 261312
      %1015 = vst.msk [vmem:[#allocation2] sm:$0xff] %vm1014, %v1012
      %v1016 = vld [vmem:[#allocation2] sm:$0xff]
      %v1017 = vpack.c.bf16 %v1016, %v1016
      %v1018 = vld [vmem:[%s7] sm:$0xf]
      %v1019 = vld [vmem:[%s7 + $0x4] sm:$0xf]
      %v1020 = vld [vmem:[%s7 + $0x8] sm:$0xf]
      %v1021 = vld [vmem:[%s7 + $0xc] sm:$0xf]
      %v1022 = vld [vmem:[%s8] sm:$0x1]
      %v1024 = vlaneseq
      %v1025 = vshrl.u32 %v1024, 7
      %v1026 = vsub.s32 0, %v1025
      %v1027 = vrot.slane %v1022, %v1026
      %v1033 = vunpack.c.l.b16 %v1018
      %v1034 = vunpack.c.l.b16 %v1019
      %v1035 = vunpack.c.l.b16 %v1020
      %v1036 = vunpack.c.l.b16 %v1021
      %v1037 = vpack.c.b16 %v1034, %v1033
      %v1038 = vpack.c.b16 %v1036, %v1035
      %v1042 = vsel %vm394, %v1017, 0
      %1044 = vmatprep.subr.bf16.mxu0 0
      %1045 = vmatpush1.bf16.msra.mxu0 0
      %1046 = vmatprep.subr.bf16.mxu0 0
      %1047 = vmatpush1.bf16.msra.mxu0 0
      %1048 = vmatprep.subr.bf16.mxu0 0
      %1049 = vmatpush1.bf16.msra.mxu0 0
      %1050 = vmatprep.subr.bf16.mxu0 0
      %1051 = vmatpush1.bf16.msra.mxu0 0
      %1052 = vmatprep.subr.bf16.mxu0 0
      %1053 = vmatpush1.bf16.msra.mxu0 0
      %1054 = vmatprep.subr.bf16.mxu0 0
      %1055 = vmatpush1.bf16.msra.mxu0 0
      %1056 = vmatprep.subr.bf16.mxu0 0
      %1057 = vmatpush1.bf16.msra.mxu0 %v1038
      %1058 = vmatprep.subr.bf16.mxu0 0
      %1059 = vmatpush1.bf16.msra.mxu0 %v1037
      %1060 = vmatprep.subr.bf16.mxu0 0
      %1061 = vmatpush2.bf16.msra.mxu0 0
      %1062 = vmatprep.subr.bf16.mxu0 0
      %1063 = vmatpush2.bf16.msra.mxu0 0
      %1064 = vmatprep.subr.bf16.mxu0 0
      %1065 = vmatpush2.bf16.msra.mxu0 0
      %1066 = vmatprep.subr.bf16.mxu0 0
      %1067 = vmatpush2.bf16.msra.mxu0 0
      %1068 = vmatprep.subr.bf16.mxu0 0
      %1069 = vmatpush2.bf16.msra.mxu0 0
      %1070 = vmatprep.subr.bf16.mxu0 0
      %1071 = vmatpush2.bf16.msra.mxu0 0
      %1072 = vmatprep.subr.bf16.mxu0 0
      %1073 = vmatpush2.bf16.msra.mxu0 0
      %1074 = vmatprep.subr.bf16.mxu0 0
      %1075 = vmatpush2.bf16.msra.mxu0 0
      %1076 = vmatprep.mubr.bf16.mxu0 0
      %1077 = vmatmul.mubr.bf16.gmra.mxu0 %v1042
      %v1078 = vpop.f32.mrf.mxu0
      %v1079 = vadd.f32 %v1027, %v1078
      %v1080 = vpop.f32.mrf.mxu0
      %v1081 = vpop.f32.mrf.mxu0
      %v1082 = vpop.f32.mrf.mxu0
      %1083 = vdwg.mxu0
      %v1084 = vadd.f32 %v1079, %v391
      %1085 = vst.msk [vmem:[%s389] sm:$0xff] %vm394, %v1084
      %p1086 = scmp.lt.s32.totalorder %s22, 1
      %s1087 = scalar_select %p1086, %s22, 1
      %s1088 = smul.addr %s1087, 8
      %s1089 = scalar_lea.vmem %s10, %s1088
      // Predicated region
      $region61: #{decoder.8} parent=59 // pred_check
        %p1090 = pneg %p265
      $region62: #{decoder.8} parent=59 // pred_check_branch
        %1092 = sbr.rel (%p1090) target = $region64
      $region63: #{decoder.8} parent=59 // pred_region
        _
      $region64: #{decoder.8} parent=59 // pred_fallthru
        _
    $region60: #{decoder.8} parent=5 // pred_fallthru
      _
    %p1093 = scmp.le.s32.totalorder 2, %s17
    // Predicated region
    $region65: #{decoder.8} parent=5 // pred_check
      %p1094 = pneg %p1093
    $region66: #{decoder.8} parent=5 // pred_check_branch
      %1096 = sbr.rel (%p1094) target = $region68
    $region67: #{decoder.8} parent=5 // pred_region
      %s1097 = ssub.s32 %s17, 2
      // Predicated region
      $region69: #{decoder.8} parent=67 // pred_check
        %p1098 = pneg %p271
      $region70: #{decoder.8} parent=67 // pred_check_branch
        %1100 = sbr.rel (%p1098) target = $region72
      $region71: #{decoder.8} parent=67 // pred_region
        %p1101 = scmp.lt.s32.totalorder %s23, 1
        %s1102 = scalar_select %p1101, %s23, 1
        %s1103 = smul.addr %s1102, 8
        %s1104 = scalar_lea.vmem %s10, %s1103
      $region72: #{decoder.8} parent=67 // pred_fallthru
        _
    $region68: #{decoder.8} parent=5 // pred_fallthru
      _
  $region6: #{decoder.8} parent=0 // loop_footer
    %s21 = sadd.s32 1, %s17
  $region7: #{decoder.8} parent=0 // loop_footer_branch
    %16 = sbr.rel target = $region3
  $region8: #{decoder.8} parent=0 // loop_exit
    _

// kernel: decoder.13
$region0: #{decoder.13}
  #allocation0 [shape = 'u32[]', space=smem, size = 0x4, offset = 0x4, fixed_abs, tag = 'smem constant byte address 0x4 - core index']
  #allocation1 [shape = 'u32[144,128]{1,0:T(1,128)}', space=vmem, size = 0x12000, scoped, tag = 'internal scratch']
  #allocation2 [shape = 'f32[1,1]{1,0:T(1,128)S(6)}', space=smem, size = 0x200, scoped, tag = 'scoped memory for decoder.13']
  %s0 = inlined_call_operand.vmem [shape: f32[16,32], index: 0, kind: input, shape index: {}]
  %s1 = inlined_call_operand.<no memory space> [shape: f32[1,1], index: 1, kind: input, shape index: {}]
  %s2 = inlined_call_operand.hbm [shape: f32[16,32], index: 2, kind: output, shape index: {}]
  %s3 = sld [smem:[#allocation0]]
  $region41: #{decoder.13} parent=0
    _
  %s5 = ssub.s32 1, %s3
  %s6 = scalar_select 0, %s5, %s3
  %7 = sst [smem:[#allocation2]] %s1
  $region1: #{decoder.13} parent=0
    #allocation3 [shape = 'u8[8192]{0}', space=vmem, size = 0x2000, scoped, tag = 'output window, operand 0']
    #allocation4 [shape = 's32[2]{0}', space=sflag, size = 0x8, scoped, tag = 'scoped memory for decoder.13']
    %8 = vsyncpa [#allocation4], 0
    %s9 = scalar_lea.sflag [#allocation4], 1
    %10 = vsyncpa %s9, 0
    loop: start=0, step=1, limit=4
    $region2: #{decoder.13} parent=1 // loop_pre_header
      _
    $region3: #{decoder.13} parent=1 // loop_header
      %s12 = sphi 0, %s16
      %p13 = scmp.ge.s32.totalorder %s12, 4
      %s22 = sphi 0, %s24
      %s25 = sphi 0, %s22
      %s26 = sphi 0, %s25
      %s42 = sphi 0, %s26
      %s46 = sphi 0, %s46
      %s48 = sphi 0, %s46
      %s49 = sphi 0, %s48
      %s63 = sphi 0, %s49
      %s69 = sphi 0, %s71
      %s72 = sphi 0, %s69
      %s73 = sphi 0, %s72
      %s89 = sphi 0, %s73
    $region4: #{decoder.13} parent=1 // loop_header_branch
      %15 = sbr.rel (%p13) target = $region8
    $region5: #{decoder.13} parent=1 // loop_body
      %s17 = ssub.s32 %s12, 1
      %s18 = ssub.s32 %s12, 2
      %s19 = sadd.s32 %s12, 1
      %s20 = ssub.s32 %s12, %s19
      %p21 = scmp.eq.s32.totalorder %s20, 0
      %s23 = sadd.s32 %s22, 1
      %s24 = scalar_select %p21, %s22, %s23
      %p27 = pneg %p21
      %p28 = scmp.eq.s32.totalorder %s12, 1
      %p29 = por %p27, %p28
      %p30 = scmp.ne.s32.totalorder %s22, %s25
      %p31 = scmp.eq.s32.totalorder %s12, 0
      %p32 = por %p30, %p31
      %p33 = scmp.ne.s32.totalorder %s22, %s25
      %p34 = scmp.eq.s32.totalorder %s17, 1
      %p35 = por %p33, %p34
      %p36 = scmp.ne.s32.totalorder %s25, %s26
      %p37 = scmp.eq.s32.totalorder %s17, 0
      %p38 = por %p36, %p37
      %p39 = scmp.ne.s32.totalorder %s25, %s26
      %p40 = scmp.eq.s32.totalorder %s18, 1
      %p41 = por %p39, %p40
      %p43 = scmp.ne.s32.totalorder %s26, %s42
      %p44 = scmp.eq.s32.totalorder %s18, 0
      %p45 = por %p43, %p44
      %s47 = sadd.s32 %s46, 1
      %p50 = scmp.eq.s32.totalorder %s12, 1
      %p51 = scmp.ne.s32.totalorder %s46, %s48
      %p52 = scmp.eq.s32.totalorder %s12, 0
      %p53 = por %p51, %p52
      %p54 = scmp.ne.s32.totalorder %s46, %s48
      %p55 = scmp.eq.s32.totalorder %s17, 1
      %p56 = por %p54, %p55
      %p57 = scmp.ne.s32.totalorder %s48, %s49
      %p58 = scmp.eq.s32.totalorder %s17, 0
      %p59 = por %p57, %p58
      %p60 = scmp.ne.s32.totalorder %s48, %s49
      %p61 = scmp.eq.s32.totalorder %s18, 1
      %p62 = por %p60, %p61
      %p64 = scmp.ne.s32.totalorder %s49, %s63
      %p65 = scmp.eq.s32.totalorder %s18, 0
      %p66 = por %p64, %p65
      %s67 = ssub.s32 %s12, %s19
      %p68 = scmp.eq.s32.totalorder %s67, 0
      %s70 = sadd.s32 %s69, 1
      %s71 = scalar_select %p68, %s69, %s70
      %p74 = pneg %p68
      %p75 = scmp.eq.s32.totalorder %s12, 1
      %p76 = por %p74, %p75
      %p77 = scmp.ne.s32.totalorder %s69, %s72
      %p78 = scmp.eq.s32.totalorder %s12, 0
      %p79 = por %p77, %p78
      %p80 = scmp.ne.s32.totalorder %s69, %s72
      %p81 = scmp.eq.s32.totalorder %s17, 1
      %p82 = por %p80, %p81
      %p83 = scmp.ne.s32.totalorder %s72, %s73
      %p84 = scmp.eq.s32.totalorder %s17, 0
      %p85 = por %p83, %p84
      %p86 = scmp.ne.s32.totalorder %s72, %s73
      %p87 = scmp.eq.s32.totalorder %s18, 1
      %p88 = por %p86, %p87
      %p90 = scmp.ne.s32.totalorder %s73, %s89
      %p91 = scmp.eq.s32.totalorder %s18, 0
      %p92 = por %p90, %p91
      %p93 = scmp.le.s32.totalorder 1, %s12
      %p94 = scmp.lt.s32.totalorder %s12, 3
      %p95 = pnand %p93, %p94
      %p96 = pneg %p95
      // Predicated region
      $region9: #{decoder.13} parent=5 // pred_check
        _
      $region10: #{decoder.13} parent=5 // pred_check_branch
        %98 = sbr.rel (%p95) target = $region12
      $region11: #{decoder.13} parent=5 // pred_region
        %s99 = ssub.s32 %s12, 1
        // Predicated region
        $region13: #{decoder.13} parent=11 // pred_check
          %p100 = pneg %p59
        $region14: #{decoder.13} parent=11 // pred_check_branch
          %102 = sbr.rel (%p100) target = $region16
        $region15: #{decoder.13} parent=11 // pred_region
          _
        $region16: #{decoder.13} parent=11 // pred_fallthru
          _
      $region12: #{decoder.13} parent=5 // pred_fallthru
        _
      %p103 = scmp.lt.s32.totalorder %s12, 2
      // Predicated region
      $region17: #{decoder.13} parent=5 // pred_check
        %p104 = pneg %p103
      $region18: #{decoder.13} parent=5 // pred_check_branch
        %106 = sbr.rel (%p104) target = $region20
      $region19: #{decoder.13} parent=5 // pred_region
        // Predicated region
        $region21: #{decoder.13} parent=19 // pred_check
          %p107 = pneg %p32
        $region22: #{decoder.13} parent=19 // pred_check_branch
          %109 = sbr.rel (%p107) target = $region24
        $region23: #{decoder.13} parent=19 // pred_region
          %p110 = scmp.lt.s32.totalorder %s12, 1
          %s111 = scalar_select %p110, %s12, 1
          %s112 = smul.addr %s111, 8
          %s113 = scalar_lea.vmem %s0, %s112
        $region24: #{decoder.13} parent=19 // pred_fallthru
          _
      $region20: #{decoder.13} parent=5 // pred_fallthru
        _
      %p114 = scmp.le.s32.totalorder 1, %s12
      %p115 = scmp.lt.s32.totalorder %s12, 3
      %p116 = pnand %p114, %p115
      %p117 = pneg %p116
      // Predicated region
      $region25: #{decoder.13} parent=5 // pred_check
        _
      $region26: #{decoder.13} parent=5 // pred_check_branch
        %119 = sbr.rel (%p116) target = $region28
      $region27: #{decoder.13} parent=5 // pred_region
        %s120 = ssub.s32 %s12, 1
        %p121 = scmp.lt.s32.totalorder %s17, 1
        %s122 = scalar_select %p121, %s17, 1
        %s123 = smul.addr %s122, 8
        %s124 = scalar_lea.vmem %s0, %s123
        %p125 = pneg %p38
        %p126 = pneg %p35
        %p127 = pneg %p59
        %p128 = pneg %p56
        %p129 = pneg %p85
        %p130 = pneg %p82
        %s131 = sand.u32 %s72, 1
        %s132 = scalar_lea.sflag [#allocation4], %s131
        %s133 = sand.u32 %s72, 1
        %s134 = smul.addr %s133, 8
        %s135 = scalar_lea.vmem [#allocation3], %s134
        %p136 = scmp.lt.s32.totalorder %s17, 1
        %s137 = scalar_select %p136, %s17, 1
        %s138 = smul.addr %s137, 8
        %s139 = scalar_lea.vmem %s0, %s138
        %v140 = vld [vmem:[%s139] sm:$0xff]
        %s141 = sld [smem:[#allocation2]]
        %v142 = vmul.f32 %v140, %v140
        %vm143 = vcmask 261120
        %v144 = vsel %vm143, %v142, 0.0
        %145 = vadd.xlane.f32.xlu0 %v144
        %v146 = vpop.xlane.xlu0 %145
        %v147 = vrsqrt.pop %v146
        %v148 = vmul.f32 %v146, %v147
        %vm149 = vcmp.eq.f32.partialorder %v146, inf
        %v150 = vsel %vm149, %v146, %v148
        %vm151 = vcmp.eq.f32.partialorder %v146, 0.0
        %v152 = vand.u32 %v146, 2147483648
        %v153 = vsel %vm151, %v152, %v150
        %v154 = vmax.f32 %v153, 1e-05
        %v155 = vstv %s141
        %v156 = vrcp.pop %v154
        %v157 = vmul.f32 %v155, %v156
        %v158 = vmul.f32 %v140, %v157
        %159 = vst.msk [vmem:[%s135] sm:$0xff] %vm143, %v158
        %s160 = sand.u32 %s72, 1
        %s161 = scalar_lea.sflag [#allocation4], %s160
        %s162 = sand.u32 %s72, 1
        %s163 = smul.addr %s162, 8
        %s164 = scalar_lea.vmem [#allocation3], %s163
        // Predicated region
        $region29: #{decoder.13} parent=27 // pred_check
          %p165 = pneg %p82
        $region30: #{decoder.13} parent=27 // pred_check_branch
          %167 = sbr.rel (%p165) target = $region32
        $region31: #{decoder.13} parent=27 // pred_region
          %s169 = ssub.s32 128, 128
          %170 = vsyncadd %s161, %s169
          %s171 = smul.addr %s17, 128
          %s172 = scalar_lea.hbm %s2, %s171
          %s174 = sshll.u32 %s164, 4
          %s175 = int_to_ptr.vmem [resolvable:$true] %s174
          %177 = dma.vmem_to_hbm [thread:$0]  %s175, 128, %s172, %s161
        $region32: #{decoder.13} parent=27 // pred_fallthru
          _
      $region28: #{decoder.13} parent=5 // pred_fallthru
        _
      %p178 = scmp.le.s32.totalorder 2, %s12
      // Predicated region
      $region33: #{decoder.13} parent=5 // pred_check
        %p179 = pneg %p178
      $region34: #{decoder.13} parent=5 // pred_check_branch
        %181 = sbr.rel (%p179) target = $region36
      $region35: #{decoder.13} parent=5 // pred_region
        %s182 = ssub.s32 %s12, 2
        // Predicated region
        $region37: #{decoder.13} parent=35 // pred_check
          %p183 = pneg %p88
        $region38: #{decoder.13} parent=35 // pred_check_branch
          %185 = sbr.rel (%p183) target = $region40
        $region39: #{decoder.13} parent=35 // pred_region
          %s186 = sand.u32 %s73, 1
          %s187 = scalar_lea.sflag [#allocation4], %s186
          %s188 = sand.u32 %s73, 1
          %s189 = smul.addr %s188, 8
          %s190 = scalar_lea.vmem [#allocation3], %s189
          %191 = dma.done %s187, 128
        $region40: #{decoder.13} parent=35 // pred_fallthru
          _
      $region36: #{decoder.13} parent=5 // pred_fallthru
        _
    $region6: #{decoder.13} parent=1 // loop_footer
      %s16 = sadd.s32 1, %s12
    $region7: #{decoder.13} parent=1 // loop_footer_branch
      %11 = sbr.rel target = $region3
    $region8: #{decoder.13} parent=1 // loop_exit
      _
    %192 = vsyncpa [#allocation4], 1
    %s193 = scalar_lea.sflag [#allocation4], 1
    %194 = vsyncpa %s193, 1

// kernel: decoder.9
$region0: #{decoder.9}
  #allocation0 [shape = 'u32[]', space=smem, size = 0x4, offset = 0x4, fixed_abs, tag = 'smem constant byte address 0x4 - core index']
  #allocation1 [shape = 'u32[144,128]{1,0:T(1,128)}', space=vmem, size = 0x12000, scoped, tag = 'internal scratch']
  #allocation2 [shape = 'f32[8,32]{1,0:T(8,128)}', space=vmem, size = 0x1000, scoped, tag = 'scratch operand']
  #allocation3 [shape = 'f32[1,1]{1,0:T(1,128)S(6)}', space=smem, size = 0x200, scoped, tag = 'scoped memory for decoder.9']
  %s0 = inlined_call_operand.vmem [shape: f32[16,32], index: 0, kind: input, shape index: {}]
  %s1 = inlined_call_operand.vmem [shape: bf16[32,64], index: 1, kind: input, shape index: {}]
  %s2 = inlined_call_operand.vmem [shape: f32[1,64], index: 2, kind: input, shape index: {}]
  %s3 = inlined_call_operand.vmem [shape: bf16[64,32], index: 3, kind: input, shape index: {}]
  %s4 = inlined_call_operand.vmem [shape: f32[1,32], index: 4, kind: input, shape index: {}]
  %s5 = inlined_call_operand.<no memory space> [shape: f32[1,1], index: 5, kind: input, shape index: {}]
  %s6 = inlined_call_operand.vmem [shape: f32[16,32], index: 6, kind: output, shape index: {}]
  %s7 = sld [smem:[#allocation0]]
  $region65: #{decoder.9} parent=0
    _
  %s9 = ssub.s32 1, %s7
  %s10 = scalar_select 0, %s9, %s7
  %11 = sst [smem:[#allocation3]] %s5
  loop: start=0, step=1, limit=4
  $region2: #{decoder.9} parent=0 // loop_pre_header
    _
  $region3: #{decoder.9} parent=0 // loop_header
    %s13 = sphi 0, %s17
    %p14 = scmp.ge.s32.totalorder %s13, 4
    %s20 = sphi 0, %s32
    %s21 = sphi 0, %s28
    %s22 = sphi 0, %s20
    %s23 = sphi 0, %s21
    %s24 = sphi 0, %s22
    %s25 = sphi 0, %s23
    %s35 = sphi 0, %s37
    %s38 = sphi 0, %s35
    %s39 = sphi 0, %s38
    %s55 = sphi 0, %s39
    %s61 = sphi 0, %s63
    %s64 = sphi 0, %s61
    %s65 = sphi 0, %s64
    %s81 = sphi 0, %s65
    %s87 = sphi 0, %s89
    %s90 = sphi 0, %s87
    %s91 = sphi 0, %s90
    %s107 = sphi 0, %s91
    %s113 = sphi 0, %s115
    %s116 = sphi 0, %s113
    %s117 = sphi 0, %s116
    %s133 = sphi 0, %s117
    %s137 = sphi 0, %s137
    %s139 = sphi 0, %s137
    %s140 = sphi 0, %s139
    %s154 = sphi 0, %s140
    %s158 = sphi 0, %s158
    %s160 = sphi 0, %s158
    %s161 = sphi 0, %s160
    %s175 = sphi 0, %s161
    %s181 = sphi 0, %s183
    %s184 = sphi 0, %s181
    %s185 = sphi 0, %s184
    %s201 = sphi 0, %s185
  $region4: #{decoder.9} parent=0 // loop_header_branch
    %16 = sbr.rel (%p14) target = $region8
  $region5: #{decoder.9} parent=0 // loop_body
    %s18 = ssub.s32 %s13, 1
    %s19 = ssub.s32 %s13, 2
    %s26 = sadd.s32 1, %s21
    %p27 = scmp.ge.s32.totalorder %s26, 1
    %s28 = scalar_select %p27, 0, %s26
    %s29 = sadd.s32 1, %s20
    %s30 = scalar_select %p27, %s29, %s20
    %p31 = scmp.ge.s32.totalorder %s30, 2
    %s32 = scalar_select %p31, 0, %s30
    %s33 = ssub.s32 %s20, %s32
    %p34 = scmp.eq.s32.totalorder %s33, 0
    %s36 = sadd.s32 %s35, 1
    %s37 = scalar_select %p34, %s35, %s36
    %p40 = pneg %p34
    %p41 = scmp.eq.s32.totalorder %s13, 1
    %p42 = por %p40, %p41
    %p43 = scmp.ne.s32.totalorder %s35, %s38
    %p44 = scmp.eq.s32.totalorder %s13, 0
    %p45 = por %p43, %p44
    %p46 = scmp.ne.s32.totalorder %s35, %s38
    %p47 = scmp.eq.s32.totalorder %s18, 1
    %p48 = por %p46, %p47
    %p49 = scmp.ne.s32.totalorder %s38, %s39
    %p50 = scmp.eq.s32.totalorder %s18, 0
    %p51 = por %p49, %p50
    %p52 = scmp.ne.s32.totalorder %s38, %s39
    %p53 = scmp.eq.s32.totalorder %s19, 1
    %p54 = por %p52, %p53
    %p56 = scmp.ne.s32.totalorder %s39, %s55
    %p57 = scmp.eq.s32.totalorder %s19, 0
    %p58 = por %p56, %p57
    %s59 = ssub.s32 %s21, %s28
    %p60 = scmp.eq.s32.totalorder %s59, 0
    %s62 = sadd.s32 %s61, 1
    %s63 = scalar_select %p60, %s61, %s62
    %p66 = pneg %p60
    %p67 = scmp.eq.s32.totalorder %s13, 1
    %p68 = por %p66, %p67
    %p69 = scmp.ne.s32.totalorder %s61, %s64
    %p70 = scmp.eq.s32.totalorder %s13, 0
    %p71 = por %p69, %p70
    %p72 = scmp.ne.s32.totalorder %s61, %s64
    %p73 = scmp.eq.s32.totalorder %s18, 1
    %p74 = por %p72, %p73
    %p75 = scmp.ne.s32.totalorder %s64, %s65
    %p76 = scmp.eq.s32.totalorder %s18, 0
    %p77 = por %p75, %p76
    %p78 = scmp.ne.s32.totalorder %s64, %s65
    %p79 = scmp.eq.s32.totalorder %s19, 1
    %p80 = por %p78, %p79
    %p82 = scmp.ne.s32.totalorder %s65, %s81
    %p83 = scmp.eq.s32.totalorder %s19, 0
    %p84 = por %p82, %p83
    %s85 = ssub.s32 %s21, %s28
    %p86 = scmp.eq.s32.totalorder %s85, 0
    %s88 = sadd.s32 %s87, 1
    %s89 = scalar_select %p86, %s87, %s88
    %p92 = pneg %p86
    %p93 = scmp.eq.s32.totalorder %s13, 1
    %p94 = por %p92, %p93
    %p95 = scmp.ne.s32.totalorder %s87, %s90
    %p96 = scmp.eq.s32.totalorder %s13, 0
    %p97 = por %p95, %p96
    %p98 = scmp.ne.s32.totalorder %s87, %s90
    %p99 = scmp.eq.s32.totalorder %s18, 1
    %p100 = por %p98, %p99
    %p101 = scmp.ne.s32.totalorder %s90, %s91
    %p102 = scmp.eq.s32.totalorder %s18, 0
    %p103 = por %p101, %p102
    %p104 = scmp.ne.s32.totalorder %s90, %s91
    %p105 = scmp.eq.s32.totalorder %s19, 1
    %p106 = por %p104, %p105
    %p108 = scmp.ne.s32.totalorder %s91, %s107
    %p109 = scmp.eq.s32.totalorder %s19, 0
    %p110 = por %p108, %p109
    %s111 = ssub.s32 %s21, %s28
    %p112 = scmp.eq.s32.totalorder %s111, 0
    %s114 = sadd.s32 %s113, 1
    %s115 = scalar_select %p112, %s113, %s114
    %p118 = pneg %p112
    %p119 = scmp.eq.s32.totalorder %s13, 1
    %p120 = por %p118, %p119
    %p121 = scmp.ne.s32.totalorder %s113, %s116
    %p122 = scmp.eq.s32.totalorder %s13, 0
    %p123 = por %p121, %p122
    %p124 = scmp.ne.s32.totalorder %s113, %s116
    %p125 = scmp.eq.s32.totalorder %s18, 1
    %p126 = por %p124, %p125
    %p127 = scmp.ne.s32.totalorder %s116, %s117
    %p128 = scmp.eq.s32.totalorder %s18, 0
    %p129 = por %p127, %p128
    %p130 = scmp.ne.s32.totalorder %s116, %s117
    %p131 = scmp.eq.s32.totalorder %s19, 1
    %p132 = por %p130, %p131
    %p134 = scmp.ne.s32.totalorder %s117, %s133
    %p135 = scmp.eq.s32.totalorder %s19, 0
    %p136 = por %p134, %p135
    %s138 = sadd.s32 %s137, 1
    %p141 = scmp.eq.s32.totalorder %s13, 1
    %p142 = scmp.ne.s32.totalorder %s137, %s139
    %p143 = scmp.eq.s32.totalorder %s13, 0
    %p144 = por %p142, %p143
    %p145 = scmp.ne.s32.totalorder %s137, %s139
    %p146 = scmp.eq.s32.totalorder %s18, 1
    %p147 = por %p145, %p146
    %p148 = scmp.ne.s32.totalorder %s139, %s140
    %p149 = scmp.eq.s32.totalorder %s18, 0
    %p150 = por %p148, %p149
    %p151 = scmp.ne.s32.totalorder %s139, %s140
    %p152 = scmp.eq.s32.totalorder %s19, 1
    %p153 = por %p151, %p152
    %p155 = scmp.ne.s32.totalorder %s140, %s154
    %p156 = scmp.eq.s32.totalorder %s19, 0
    %p157 = por %p155, %p156
    %s159 = sadd.s32 %s158, 1
    %p162 = scmp.eq.s32.totalorder %s13, 1
    %p163 = scmp.ne.s32.totalorder %s158, %s160
    %p164 = scmp.eq.s32.totalorder %s13, 0
    %p165 = por %p163, %p164
    %p166 = scmp.ne.s32.totalorder %s158, %s160
    %p167 = scmp.eq.s32.totalorder %s18, 1
    %p168 = por %p166, %p167
    %p169 = scmp.ne.s32.totalorder %s160, %s161
    %p170 = scmp.eq.s32.totalorder %s18, 0
    %p171 = por %p169, %p170
    %p172 = scmp.ne.s32.totalorder %s160, %s161
    %p173 = scmp.eq.s32.totalorder %s19, 1
    %p174 = por %p172, %p173
    %p176 = scmp.ne.s32.totalorder %s161, %s175
    %p177 = scmp.eq.s32.totalorder %s19, 0
    %p178 = por %p176, %p177
    %s179 = ssub.s32 %s20, %s32
    %p180 = scmp.eq.s32.totalorder %s179, 0
    %s182 = sadd.s32 %s181, 1
    %s183 = scalar_select %p180, %s181, %s182
    %p186 = pneg %p180
    %p187 = scmp.eq.s32.totalorder %s13, 1
    %p188 = por %p186, %p187
    %p189 = scmp.ne.s32.totalorder %s181, %s184
    %p190 = scmp.eq.s32.totalorder %s13, 0
    %p191 = por %p189, %p190
    %p192 = scmp.ne.s32.totalorder %s181, %s184
    %p193 = scmp.eq.s32.totalorder %s18, 1
    %p194 = por %p192, %p193
    %p195 = scmp.ne.s32.totalorder %s184, %s185
    %p196 = scmp.eq.s32.totalorder %s18, 0
    %p197 = por %p195, %p196
    %p198 = scmp.ne.s32.totalorder %s184, %s185
    %p199 = scmp.eq.s32.totalorder %s19, 1
    %p200 = por %p198, %p199
    %p202 = scmp.ne.s32.totalorder %s185, %s201
    %p203 = scmp.eq.s32.totalorder %s19, 0
    %p204 = por %p202, %p203
    %p205 = scmp.le.s32.totalorder 1, %s13
    %p206 = scmp.lt.s32.totalorder %s13, 3
    %p207 = pnand %p205, %p206
    %p208 = pneg %p207
    // Predicated region
    $region9: #{decoder.9} parent=5 // pred_check
      _
    $region10: #{decoder.9} parent=5 // pred_check_branch
      %210 = sbr.rel (%p207) target = $region12
    $region11: #{decoder.9} parent=5 // pred_region
      %s211 = ssub.s32 %s13, 1
      // Predicated region
      $region13: #{decoder.9} parent=11 // pred_check
        %p212 = pneg %p77
      $region14: #{decoder.9} parent=11 // pred_check_branch
        %214 = sbr.rel (%p212) target = $region16
      $region15: #{decoder.9} parent=11 // pred_region
        %p215 = scmp.lt.s32.totalorder %s23, 0
        %s216 = scalar_select %p215, %s23, 0
        %s217 = smul.addr %s216, 4
        %s218 = scalar_lea.vmem %s1, %s217
      $region16: #{decoder.9} parent=11 // pred_fallthru
        _
      // Predicated region
      $region17: #{decoder.9} parent=11 // pred_check
        %p219 = pneg %p103
      $region18: #{decoder.9} parent=11 // pred_check_branch
        %221 = sbr.rel (%p219) target = $region20
      $region19: #{decoder.9} parent=11 // pred_region
        %p222 = scmp.lt.s32.totalorder %s23, 0
        %s223 = scalar_select %p222, %s23, 0
        %s224 = scalar_lea.vmem %s2, %s223
      $region20: #{decoder.9} parent=11 // pred_fallthru
        _
      // Predicated region
      $region21: #{decoder.9} parent=11 // pred_check
        %p225 = pneg %p129
      $region22: #{decoder.9} parent=11 // pred_check_branch
        %227 = sbr.rel (%p225) target = $region24
      $region23: #{decoder.9} parent=11 // pred_region
        %s228 = smul.u32 8, %s23
        %p229 = scmp.lt.s32.totalorder %s228, 7
        %s230 = scalar_select %p229, %s228, 7
        %s231 = smul.addr %s230, 4
        %s232 = scalar_lea.vmem %s3, %s231
        %s233 = smul.u32 8, %s23
      $region24: #{decoder.9} parent=11 // pred_fallthru
        _
      // Predicated region
      $region25: #{decoder.9} parent=11 // pred_check
        %p234 = pneg %p150
      $region26: #{decoder.9} parent=11 // pred_check_branch
        %236 = sbr.rel (%p234) target = $region28
      $region27: #{decoder.9} parent=11 // pred_region
        _
      $region28: #{decoder.9} parent=11 // pred_fallthru
        _
      // Predicated region
      $region29: #{decoder.9} parent=11 // pred_check
        %p237 = pneg %p171
      $region30: #{decoder.9} parent=11 // pred_check_branch
        %239 = sbr.rel (%p237) target = $region32
      $region31: #{decoder.9} parent=11 // pred_region
        _
      $region32: #{decoder.9} parent=11 // pred_fallthru
        _
    $region12: #{decoder.9} parent=5 // pred_fallthru
      _
    %p240 = scmp.lt.s32.totalorder %s13, 2
    // Predicated region
    $region33: #{decoder.9} parent=5 // pred_check
      %p241 = pneg %p240
    $region34: #{decoder.9} parent=5 // pred_check_branch
      %243 = sbr.rel (%p241) target = $region36
    $region35: #{decoder.9} parent=5 // pred_region
      // Predicated region
      $region37: #{decoder.9} parent=35 // pred_check
        %p244 = pneg %p45
      $region38: #{decoder.9} parent=35 // pred_check_branch
        %246 = sbr.rel (%p244) target = $region40
      $region39: #{decoder.9} parent=35 // pred_region
        %p247 = scmp.lt.s32.totalorder %s20, 1
        %s248 = scalar_select %p247, %s20, 1
        %s249 = smul.addr %s248, 8
        %s250 = scalar_lea.vmem %s0, %s249
      $region40: #{decoder.9} parent=35 // pred_fallthru
        _
    $region36: #{decoder.9} parent=5 // pred_fallthru
      _
    %p251 = scmp.le.s32.totalorder 1, %s13
    %p252 = scmp.lt.s32.totalorder %s13, 3
    %p253 = pnand %p251, %p252
    %p254 = pneg %p253
    // Predicated region
    $region41: #{decoder.9} parent=5 // pred_check
      _
    $region42: #{decoder.9} parent=5 // pred_check_branch
      %256 = sbr.rel (%p253) target = $region44
    $region43: #{decoder.9} parent=5 // pred_region
      %s257 = ssub.s32 %s13, 1
      %p258 = scmp.lt.s32.totalorder %s22, 1
      %s259 = scalar_select %p258, %s22, 1
      %s260 = smul.addr %s259, 8
      %s261 = scalar_lea.vmem %s0, %s260
      %p262 = pneg %p51
      %p263 = pneg %p48
      %p264 = scmp.lt.s32.totalorder %s23, 0
      %s265 = scalar_select %p264, %s23, 0
      %s266 = smul.addr %s265, 4
      %s267 = scalar_lea.vmem %s1, %s266
      %p268 = pneg %p77
      %p269 = pneg %p74
      %p270 = scmp.lt.s32.totalorder %s23, 0
      %s271 = scalar_select %p270, %s23, 0
      %s272 = scalar_lea.vmem %s2, %s271
      %p273 = pneg %p103
      %p274 = pneg %p100
      %s275 = smul.u32 8, %s23
      %p276 = scmp.lt.s32.totalorder %s275, 7
      %s277 = scalar_select %p276, %s275, 7
      %s278 = smul.addr %s277, 4
      %s279 = scalar_lea.vmem %s3, %s278
      %p280 = pneg %p129
      %p281 = pneg %p126
      %p282 = pneg %p150
      %p283 = pneg %p147
      %p284 = pneg %p171
      %p285 = pneg %p168
      %p286 = pneg %p197
      %p287 = pneg %p194
      %p288 = scmp.lt.s32.totalorder %s22, 1
      %s289 = scalar_select %p288, %s22, 1
      %s290 = smul.addr %s289, 8
      %s291 = scalar_lea.vmem %s6, %s290
      %p292 = scmp.lt.s32.totalorder %s22, 1
      %s293 = scalar_select %p292, %s22, 1
      %s294 = smul.addr %s293, 8
      %s295 = scalar_lea.vmem %s0, %s294
      %p296 = scmp.lt.s32.totalorder %s23, 0
      %s297 = scalar_select %p296, %s23, 0
      %s298 = smul.addr %s297, 4
      %s299 = scalar_lea.vmem %s1, %s298
      %p300 = scmp.lt.s32.totalorder %s23, 0
      %s301 = scalar_select %p300, %s23, 0
      %s302 = scalar_lea.vmem %s2, %s301
      %s303 = smul.u32 8, %s23
      %p304 = scmp.lt.s32.totalorder %s303, 7
      %s305 = scalar_select %p304, %s303, 7
      %s306 = smul.addr %s305, 4
      %s307 = scalar_lea.vmem %s3, %s306
      %s308 = smul.u32 8, %s23
      %p309 = scmp.lt.s32.totalorder %s22, 1
      %s310 = scalar_select %p309, %s22, 1
      %s311 = smul.addr %s310, 8
      %s312 = scalar_lea.vmem %s6, %s311
      %p314 = scmp.eq.s32.totalorder %s23, 0
      // Predicated region
      $region45: #{decoder.9} parent=43 // pred_check
        %p315 = pneg %p314
      $region46: #{decoder.9} parent=43 // pred_check_branch
        %317 = sbr.rel (%p315) target = $region48
      $region47: #{decoder.9} parent=43 // pred_region
        %vm318 = vcmask 261120
        %319 = vst.msk [vmem:[#allocation2] sm:$0xff] %vm318, 0.0
      $region48: #{decoder.9} parent=43 // pred_fallthru
        _
      %v320 = vld [vmem:[%s295] sm:$0xff]
      %s321 = sld [smem:[#allocation3]]
      %v322 = vmul.f32 %v320, %v320
      %vm323 = vcmask 261120
      %v324 = vsel %vm323, %v322, 0.0
      %325 = vadd.xlane.f32.xlu0 %v324
      %v326 = vpop.xlane.xlu0 %325
      %v327 = vrsqrt.pop %v326
      %v328 = vmul.f32 %v326, %v327
      %vm329 = vcmp.eq.f32.partialorder %v326, inf
      %v330 = vsel %vm329, %v326, %v328
      %vm331 = vcmp.eq.f32.partialorder %v326, 0.0
      %v332 = vand.u32 %v326, 2147483648
      %v333 = vsel %vm331, %v332, %v330
      %v334 = vmax.f32 %v333, 1e-05
      %v335 = vstv %s321
      %v336 = vrcp.pop %v334
      %v337 = vmul.f32 %v335, %v336
      %v338 = vmul.f32 %v320, %v337
      %v339 = vpack.c.bf16 %v338, %v338
      %v340 = vld [vmem:[%s299] sm:$0xf]
      %v341 = vld [vmem:[%s299 + $0x4] sm:$0xf]
      %v342 = vld [vmem:[%s299 + $0x8] sm:$0xf]
      %v343 = vld [vmem:[%s299 + $0xc] sm:$0xf]
      %v344 = vld [vmem:[%s302] sm:$0x1]
      %v346 = vlaneseq
      %v347 = vshrl.u32 %v346, 7
      %v348 = vsub.s32 0, %v347
      %v349 = vrot.slane %v344, %v348
      %v355 = vunpack.c.l.b16 %v340
      %v356 = vunpack.c.l.b16 %v341
      %v357 = vunpack.c.l.b16 %v342
      %v358 = vunpack.c.l.b16 %v343
      %v359 = vpack.c.b16 %v356, %v355
      %v360 = vpack.c.b16 %v358, %v357
      %v364 = vsel %vm323, %v339, 0
      %366 = vmatprep.subr.bf16.mxu0 0
      %367 = vmatpush1.bf16.msra.mxu0 0
      %368 = vmatprep.subr.bf16.mxu0 0
      %369 = vmatpush1.bf16.msra.mxu0 0
      %370 = vmatprep.subr.bf16.mxu0 0
      %371 = vmatpush1.bf16.msra.mxu0 0
      %372 = vmatprep.subr.bf16.mxu0 0
      %373 = vmatpush1.bf16.msra.mxu0 0
      %374 = vmatprep.subr.bf16.mxu0 0
      %375 = vmatpush1.bf16.msra.mxu0 0
      %376 = vmatprep.subr.bf16.mxu0 0
      %377 = vmatpush1.bf16.msra.mxu0 0
      %378 = vmatprep.subr.bf16.mxu0 0
      %379 = vmatpush1.bf16.msra.mxu0 %v360
      %380 = vmatprep.subr.bf16.mxu0 0
      %381 = vmatpush1.bf16.msra.mxu0 %v359
      %382 = vmatprep.subr.bf16.mxu0 0
      %383 = vmatpush2.bf16.msra.mxu0 0
      %384 = vmatprep.subr.bf16.mxu0 0
      %385 = vmatpush2.bf16.msra.mxu0 0
      %386 = vmatprep.subr.bf16.mxu0 0
      %387 = vmatpush2.bf16.msra.mxu0 0
      %388 = vmatprep.subr.bf16.mxu0 0
      %389 = vmatpush2.bf16.msra.mxu0 0
      %390 = vmatprep.subr.bf16.mxu0 0
      %391 = vmatpush2.bf16.msra.mxu0 0
      %392 = vmatprep.subr.bf16.mxu0 0
      %393 = vmatpush2.bf16.msra.mxu0 0
      %394 = vmatprep.subr.bf16.mxu0 0
      %395 = vmatpush2.bf16.msra.mxu0 0
      %396 = vmatprep.subr.bf16.mxu0 0
      %397 = vmatpush2.bf16.msra.mxu0 0
      %398 = vmatprep.mubr.bf16.mxu0 0
      %399 = vmatmul.mubr.bf16.gmra.mxu0 %v364
      %v400 = vpop.f32.mrf.mxu0
      %v401 = vadd.f32 %v349, %v400
      %v402 = vpop.f32.mrf.mxu0
      %v403 = vpop.f32.mrf.mxu0
      %v404 = vpop.f32.mrf.mxu0
      %405 = vdwg.mxu0
      %v406 = vmax.f32 %v401, 0.0
      %v407 = vld [vmem:[#allocation2] sm:$0xff]
      %v408 = vpack.c.bf16 %v406, %v406
      %v409 = vld [vmem:[%s307] sm:$0xf]
      %v410 = vld [vmem:[%s307 + $0x4] sm:$0xf]
      %v411 = vld [vmem:[%s307 + $0x8] sm:$0xf]
      %v412 = vld [vmem:[%s307 + $0xc] sm:$0xf]
      %v413 = vld [vmem:[%s307 + $0x10] sm:$0xf]
      %v414 = vld [vmem:[%s307 + $0x14] sm:$0xf]
      %v415 = vld [vmem:[%s307 + $0x18] sm:$0xf]
      %v416 = vld [vmem:[%s307 + $0x1c] sm:$0xf]
      %v425 = vunpack.c.l.b16 %v409
      %v426 = vunpack.c.l.b16 %v410
      %v427 = vunpack.c.l.b16 %v411
      %v428 = vunpack.c.l.b16 %v412
      %v429 = vunpack.c.l.b16 %v413
      %v430 = vunpack.c.l.b16 %v414
      %v431 = vunpack.c.l.b16 %v415
      %v432 = vunpack.c.l.b16 %v416
      %v433 = vpack.c.b16 %v426, %v425
      %v434 = vpack.c.b16 %v428, %v427
      %v435 = vpack.c.b16 %v430, %v429
      %v436 = vpack.c.b16 %v432, %v431
      %vm441 = vcmask 523264
      %v443 = vsel %vm441, %v408, 0
      %445 = vmatprep.subr.bf16.mxu0 0
      %446 = vmatpush1.bf16.msra.mxu0 0
      %447 = vmatprep.subr.bf16.mxu0 0
      %448 = vmatpush1.bf16.msra.mxu0 0
      %449 = vmatprep.subr.bf16.mxu0 0
      %450 = vmatpush1.bf16.msra.mxu0 0
      %451 = vmatprep.subr.bf16.mxu0 0
      %452 = vmatpush1.bf16.msra.mxu0 0
      %453 = vmatprep.subr.bf16.mxu0 0
      %454 = vmatpush1.bf16.msra.mxu0 %v436
      %455 = vmatprep.subr.bf16.mxu0 0
      %456 = vmatpush1.bf16.msra.mxu0 %v435
      %457 = vmatprep.subr.bf16.mxu0 0
      %458 = vmatpush1.bf16.msra.mxu0 %v434
      %459 = vmatprep.subr.bf16.mxu0 0
      %460 = vmatpush1.bf16.msra.mxu0 %v433
      %461 = vmatprep.subr.bf16.mxu0 0
      %462 = vmatpush2.bf16.msra.mxu0 0
      %463 = vmatprep.subr.bf16.mxu0 0
      %464 = vmatpush2.bf16.msra.mxu0 0
      %465 = vmatprep.subr.bf16.mxu0 0
      %466 = vmatpush2.bf16.msra.mxu0 0
      %467 = vmatprep.subr.bf16.mxu0 0
      %468 = vmatpush2.bf16.msra.mxu0 0
      %469 = vmatprep.subr.bf16.mxu0 0
      %470 = vmatpush2.bf16.msra.mxu0 0
      %471 = vmatprep.subr.bf16.mxu0 0
      %472 = vmatpush2.bf16.msra.mxu0 0
      %473 = vmatprep.subr.bf16.mxu0 0
      %474 = vmatpush2.bf16.msra.mxu0 0
      %475 = vmatprep.subr.bf16.mxu0 0
      %476 = vmatpush2.bf16.msra.mxu0 0
      %477 = vmatprep.mubr.bf16.mxu0 0
      %478 = vmatmul.mubr.bf16.gmra.mxu0 %v443
      %v479 = vpop.f32.mrf.mxu0
      %v480 = vadd.f32 0.0, %v479
      %v481 = vpop.f32.mrf.mxu0
      %v482 = vpop.f32.mrf.mxu0
      %v483 = vpop.f32.mrf.mxu0
      %484 = vdwg.mxu0
      %v485 = vadd.f32 %v407, %v480
      %486 = vst.msk [vmem:[#allocation2] sm:$0xff] %vm323, %v485
      // Predicated region
      $region49: #{decoder.9} parent=43 // pred_check
        %p487 = pneg %p314
      $region50: #{decoder.9} parent=43 // pred_check_branch
        %489 = sbr.rel (%p487) target = $region52
      $region51: #{decoder.9} parent=43 // pred_region
        %v490 = vld [vmem:[#allocation2] sm:$0xff]
        %v491 = vld [vmem:[%s4] sm:$0x1]
        %v493 = vlaneseq
        %v494 = vshrl.u32 %v493, 7
        %v495 = vsub.s32 0, %v494
        %v496 = vrot.slane %v491, %v495
        %v498 = vadd.f32 %v490, %v496
        %v499 = vadd.f32 %v498, %v320
        %500 = vst.msk [vmem:[%s312] sm:$0xff] %vm323, %v499
      $region52: #{decoder.9} parent=43 // pred_fallthru
        _
      %p501 = scmp.lt.s32.totalorder %s22, 1
      %s502 = scalar_select %p501, %s22, 1
      %s503 = smul.addr %s502, 8
      %s504 = scalar_lea.vmem %s6, %s503
      // Predicated region
      $region53: #{decoder.9} parent=43 // pred_check
        %p505 = pneg %p194
      $region54: #{decoder.9} parent=43 // pred_check_branch
        %507 = sbr.rel (%p505) target = $region56
      $region55: #{decoder.9} parent=43 // pred_region
        _
      $region56: #{decoder.9} parent=43 // pred_fallthru
        _
    $region44: #{decoder.9} parent=5 // pred_fallthru
      _
    %p508 = scmp.le.s32.totalorder 2, %s13
    // Predicated region
    $region57: #{decoder.9} parent=5 // pred_check
      %p509 = pneg %p508
    $region58: #{decoder.9} parent=5 // pred_check_branch
      %511 = sbr.rel (%p509) target = $region60
    $region59: #{decoder.9} parent=5 // pred_region
      %s512 = ssub.s32 %s13, 2
      // Predicated region
      $region61: #{decoder.9} parent=59 // pred_check
        %p513 = pneg %p200
      $region62: #{decoder.9} parent=59 // pred_check_branch
        %515 = sbr.rel (%p513) target = $region64
      $region63: #{decoder.9} parent=59 // pred_region
        %p516 = scmp.lt.s32.totalorder %s24, 1
        %s517 = scalar_select %p516, %s24, 1
        %s518 = smul.addr %s517, 8
        %s519 = scalar_lea.vmem %s6, %s518
      $region64: #{decoder.9} parent=59 // pred_fallthru
        _
    $region60: #{decoder.9} parent=5 // pred_fallthru
      _
  $region6: #{decoder.9} parent=0 // loop_footer
    %s17 = sadd.s32 1, %s13
  $region7: #{decoder.9} parent=0 // loop_footer_branch
    %12 = sbr.rel target = $region3
  $region8: #{decoder.9} parent=0 // loop_exit
    _

</llo_original>
